<compile_context>
chip_gen: v6e
topology: v6e:2x2x1
jax: 0.10.0
libtpu: 0.0.40
codegen_flags: <defaults>
</compile_context>

<pallas_src>
import jax
import jax.numpy as jnp
from jax.experimental import pallas as pl
from jax.experimental.pallas import tpu as pltpu

DROP_P = 0.01   # torch.nn.Dropout(p=0.01)
LANES = 128     # TPU vreg lane width -> lane-dense output slab


def _make_kernel(training: bool):
    """Fused forward; `training` toggles the dropout multiplies (module.is_training)."""

    def kernel(ww_ref,          # SMEM (3,): wee_weighter [w_for_h1, w_for_h2, bias]
               p1_ref,          # (B, F)
               p2_ref,          # (B, F)  original row order (even/odd read via stride)
               w_ref,           # (5F, F) rows: [Wss_lo^T | Wss_hi^T | Wih^T | Whh^T | Cw^T]
               b_ref,           # (4, F)  rows: [bss_lo, bss_hi, b_ih+b_hh, cb]
               *rest):
        if training:
            m_ref, out_ref = rest          # m_ref: (5B, F) pre-scaled keep masks
        else:
            (out_ref,) = rest

        B, F = p1_ref.shape
        half = B // 2
        w0, w1, wb = ww_ref[0], ww_ref[1], ww_ref[2]

        p1 = p1_ref[...]
        # packed weights: static, tile-aligned row blocks of the single (5F, F) input
        wss_lo = w_ref[0 * F:1 * F, :]
        wss_hi = w_ref[1 * F:2 * F, :]
        wih    = w_ref[2 * F:3 * F, :]
        whh    = w_ref[3 * F:4 * F, :]
        cw     = w_ref[4 * F:5 * F, :]
        b_lo   = b_ref[0:1, :]
        b_hi   = b_ref[1:2, :]
        rnn_b  = b_ref[2:3, :]
        cb     = b_ref[3:4, :]

        # --- ss + Hardtanh + dropout --------------------------------------------------
        # Wss split into lo/hi halves keeps both ss outputs at lane offset 0 (no lane-
        # offset slice, no 4-way concat).  Row r of y_lo/y_hi covers BOTH RNN timesteps:
        # rows [0:half) are timestep-1 inputs, rows [half:B) are timestep-2 inputs, for
        # the even (lo) / odd (hi) original batch rows respectively (torch reshape(2,B,F)).
        y_lo = jnp.clip(jnp.dot(p1, wss_lo, preferred_element_type=jnp.float32) + b_lo,
                        -1.0, 1.0)
        y_hi = jnp.clip(jnp.dot(p1, wss_hi, preferred_element_type=jnp.float32) + b_hi,
                        -1.0, 1.0)
        if training:
            y_lo = y_lo * m_ref[0:B, :]
            y_hi = y_hi * m_ref[B:2 * B, :]

        # --- vanilla RNN (tanh), 1 layer, h0 = 0, seq_len = 2 ---------------------------
        # one input projection per half-batch covers both timesteps
        zih_lo = jnp.dot(y_lo, wih, preferred_element_type=jnp.float32) + rnn_b
        zih_hi = jnp.dot(y_hi, wih, preferred_element_type=jnp.float32) + rnn_b

        h1_lo = jnp.tanh(zih_lo[:half, :])
        h2_lo = jnp.tanh(zih_lo[half:, :] +
                         jnp.dot(h1_lo, whh, preferred_element_type=jnp.float32))
        h1_hi = jnp.tanh(zih_hi[:half, :])
        h2_hi = jnp.tanh(zih_hi[half:, :] +
                         jnp.dot(h1_hi, whh, preferred_element_type=jnp.float32))

        if training:   # dropout on the RNN *output* (wee), after the recurrence (as torch)
            h1_lo = h1_lo * m_ref[2 * B:2 * B + half, :]
            h2_lo = h2_lo * m_ref[2 * B + half:3 * B, :]
            h1_hi = h1_hi * m_ref[3 * B:3 * B + half, :]
            h2_hi = h2_hi * m_ref[3 * B + half:4 * B, :]

        # --- wee_weighter(wee.permute(1, 2, 0)).squeeze() ------------------------------
        w_even = h1_lo * w0 + h2_lo * w1 + wb        # even original rows
        w_odd  = h1_hi * w0 + h2_hi * w1 + wb        # odd original rows

        # --- ss_compressor + Hardtanh + dropout ----------------------------------------
        c_even = jnp.clip(jnp.dot(w_even, cw, preferred_element_type=jnp.float32) + cb,
                          -1.0, 1.0)
        c_odd  = jnp.clip(jnp.dot(w_odd, cw, preferred_element_type=jnp.float32) + cb,
                          -1.0, 1.0)
        if training:
            c_even = c_even * m_ref[4 * B:4 * B + half, :]
            c_odd  = c_odd * m_ref[4 * B + half:5 * B, :]

        # --- sigmoid((compressed * p2).sum(1)) ------------------------------------------
        # p2 stays in original row order; even/odd rows come from strided sublane loads.
        p2_even = p2_ref[pl.ds(0, half, stride=2), :]
        p2_odd  = p2_ref[pl.ds(1, half, stride=2), :]
        s_even = jax.nn.sigmoid(jnp.sum(c_even * p2_even, axis=1, keepdims=True))
        s_odd  = jax.nn.sigmoid(jnp.sum(c_odd * p2_odd, axis=1, keepdims=True))

        # lane-dense output slab: lanes [0,128) = even rows, lanes [128,256) = odd rows
        out_ref[:, :LANES] = jnp.broadcast_to(s_even, (half, LANES))
        out_ref[:, LANES:] = jnp.broadcast_to(s_odd, (half, LANES))

    return kernel


def prepare_params(params):
    """One-time parameter re-layout (hoisted out of the per-step forward path)."""
    F = params["rnn_w_ih"].shape[0]
    w_stack = jnp.concatenate(
        [params["ss_w"][:F, :].T,      # Wss_lo^T : ss output features [0, F)
         params["ss_w"][F:, :].T,      # Wss_hi^T : ss output features [F, 2F)
         params["rnn_w_ih"].T,
         params["rnn_w_hh"].T,
         params["comp_w"].T],
        axis=0).astype(jnp.float32)                                   # (5F, F)
    b_stack = jnp.stack(
        [params["ss_b"][:F],
         params["ss_b"][F:],
         params["rnn_b_ih"] + params["rnn_b_hh"],
         params["comp_b"]],
        axis=0).astype(jnp.float32)                                   # (4, F)
    ww = jnp.concatenate([params["ww_w"].reshape(-1),
                          params["ww_b"].reshape(-1)]).astype(jnp.float32)   # (3,)
    return dict(w_stack=w_stack, b_stack=b_stack, ww=ww)


def complicated_text_model_forward(prepped, p1, p2, key=None, training=True,
                                   dropout_mask=None):
    """Single pallas_call; the only wrapper glue is the lane-column readout."""
    B, F = p1.shape
    assert B % 2 == 0, "kernel assumes an even batch"
    # TODO(synk): odd-B fallback (torch's reshape(2,B,F) splits a row across layers).
    half = B // 2

    p1 = p1.astype(jnp.float32)
    p2 = p2.astype(jnp.float32)

    vmem = pl.BlockSpec(memory_space=pltpu.MemorySpace.VMEM)
    smem = pl.BlockSpec(memory_space=pltpu.MemorySpace.SMEM)

    args = [prepped["ww"], p1, p2, prepped["w_stack"], prepped["b_stack"]]
    n_vmem = 4
    if training:
        if dropout_mask is None:
            # TODO(synk): dropout RNG cannot bit-match torch's generator; semantics
            # (drop prob p, scale 1/(1-p)) are reproduced with one fused draw.
            # Callers must vary `key` per training step.
            if key is None:
                key = jax.random.PRNGKey(0)
            keep = jax.random.bernoulli(key, 1.0 - DROP_P, (5 * B, F))
            dropout_mask = keep.astype(jnp.float32) * (1.0 / (1.0 - DROP_P))
        assert dropout_mask.shape == (5 * B, F)
        args.append(dropout_mask.astype(jnp.float32))
        n_vmem += 1

    flops = 12 * B * F * F                         # 8 small MXU matmuls
    bytes_accessed = 4 * (2 * B * F + 5 * F * F + 4 * F + 3
                          + (5 * B * F if training else 0) + half * 2 * LANES)
    out_slab = pl.pallas_call(
        _make_kernel(training),
        out_shape=jax.ShapeDtypeStruct((half, 2 * LANES), jnp.float32),
        in_specs=[smem] + [vmem] * n_vmem,
        out_specs=vmem,
        cost_estimate=pl.CostEstimate(flops=flops,
                                      transcendentals=2 * B * F + B,
                                      bytes_accessed=bytes_accessed),
        # Single block: at B=8, F=32 everything fits in VMEM with huge headroom.
    )(*args)

    # columns 0 and 128 are the even / odd per-row results -> original row order
    return out_slab[:, ::LANES].reshape(B, 1)


def reference_forward(params, p1, p2, masks=None):
    """Pure-JAX mirror of the PyTorch forward.  masks=None -> eval mode; otherwise a dict
    of pre-scaled keep masks in *torch tensor layout*: emb (2,B,F), wee (2,B,F), comp (B,F)."""
    B, F = p1.shape
    emb = jnp.clip((p1 @ params["ss_w"].T + params["ss_b"]).reshape(2, B, F), -1.0, 1.0)
    if masks is not None:
        emb = emb * masks["emb"]
    rnn_b = params["rnn_b_ih"] + params["rnn_b_hh"]
    h1 = jnp.tanh(emb[0] @ params["rnn_w_ih"].T + rnn_b)                    # h0 = 0
    h2 = jnp.tanh(emb[1] @ params["rnn_w_ih"].T + rnn_b + h1 @ params["rnn_w_hh"].T)
    wee = jnp.stack([h1, h2], axis=0)                                       # (2, B, F)
    if masks is not None:
        wee = wee * masks["wee"]
    weighted = jnp.squeeze(jnp.transpose(wee, (1, 2, 0)) @ params["ww_w"].T
                           + params["ww_b"], -1)                            # (B, F)
    comp = jnp.clip(weighted @ params["comp_w"].T + params["comp_b"], -1.0, 1.0)
    if masks is not None:
        comp = comp * masks["comp"]
    return jax.nn.sigmoid(jnp.sum(comp * p2, axis=1))[:, None]


def _torch_layout_masks(mask, B, F):
    """Map the kernel's packed (5B, F) mask blocks onto torch-layout tensors."""
    half = B // 2
    memb = jnp.zeros((2, B, F), jnp.float32)
    memb = memb.at[0, 0::2].set(mask[0:half]).at[1, 0::2].set(mask[half:B])
    memb = memb.at[0, 1::2].set(mask[B:B + half]).at[1, 1::2].set(mask[B + half:2 * B])
    mwee = jnp.zeros((2, B, F), jnp.float32)
    mwee = mwee.at[0, 0::2].set(mask[2 * B:2 * B + half])
    mwee = mwee.at[1, 0::2].set(mask[2 * B + half:3 * B])
    mwee = mwee.at[0, 1::2].set(mask[3 * B:3 * B + half])
    mwee = mwee.at[1, 1::2].set(mask[3 * B + half:4 * B])
    mcomp = jnp.zeros((B, F), jnp.float32)
    mcomp = mcomp.at[0::2].set(mask[4 * B:4 * B + half])
    mcomp = mcomp.at[1::2].set(mask[4 * B + half:5 * B])
    return dict(emb=memb, wee=mwee, comp=mcomp)


def init_params(key, F):
    """Deterministic synthetic parameters matching the module's layer shapes."""
    ks = jax.random.split(key, 10)
    kf = 1.0 / (F ** 0.5)
    k2 = 1.0 / (2.0 ** 0.5)
    u = lambda k, shape, bound: jax.random.uniform(k, shape, jnp.float32, -bound, bound)
    return dict(
        ss_w=u(ks[0], (2 * F, F), kf), ss_b=u(ks[1], (2 * F,), kf),
        rnn_w_ih=u(ks[2], (F, F), kf), rnn_w_hh=u(ks[3], (F, F), kf),
        rnn_b_ih=u(ks[4], (F,), kf), rnn_b_hh=u(ks[5], (F,), kf),
        comp_w=u(ks[6], (F, F), kf), comp_b=u(ks[7], (F,), kf),
        ww_w=u(ks[8], (1, 2), k2), ww_b=u(ks[9], (1,), k2),
        # p2_trans / wee / relu / softmax exist in __init__ but are unused in forward.
    )


if __name__ == "__main__":
    # Full f32 matmuls everywhere so the reference and the kernel agree tightly on TPU.
    jax.config.update("jax_default_matmul_precision", "float32")

    B, F = 8, 32  # batch, n_features (n_layers is fixed at 2 by the module)
    key = jax.random.PRNGKey(0)
    kp, k1, k2, kc, kd = jax.random.split(key, 5)

    params = init_params(kp, F)
    prepped = prepare_params(params)          # one-time parameter re-layout
    p1 = jax.random.normal(k1, (B, F), jnp.float32)
    p2 = jax.random.normal(k2, (B, F), jnp.float32)
    c = jax.random.normal(kc, (B, F), jnp.float32)  # predictor 'c' is fetched but unused

    fwd = jax.jit(complicated_text_model_forward, static_argnames=("training",))

    # Main run: training mode (module default is_training=True, dropout active).
    keep = jax.random.bernoulli(kd, 1.0 - DROP_P, (5 * B, F))
    mask = keep.astype(jnp.float32) * (1.0 / (1.0 - DROP_P))
    out_train = fwd(prepped, p1, p2, training=True, dropout_mask=mask)
    jax.block_until_ready(out_train)
    assert out_train.shape == (B, 1)
    assert bool(jnp.all(jnp.isfinite(out_train)))

    # Training-path check against the torch-faithful reference with the same masks.
    ref_train = reference_forward(params, p1, p2, masks=_torch_layout_masks(mask, B, F))
    assert jnp.allclose(out_train, ref_train, atol=2e-5, rtol=2e-5), (out_train, ref_train)

    # Eval-path check (dropout = identity).
    out_eval = fwd(prepped, p1, p2, training=False)
    ref_eval = reference_forward(params, p1, p2)
    jax.block_until_ready(out_eval)
    assert jnp.allclose(out_eval, ref_eval, atol=2e-5, rtol=2e-5), (out_eval, ref_eval)

    print("KERNEL_OK")
</pallas_src>

<mosaic_0001>
module attributes {stable_mosaic.version = 11 : i64} {
  func.func @kernel(%arg0: memref<3xf32, #tpu.memory_space<smem>>, %arg1: memref<8x32xf32, #tpu.memory_space<vmem>>, %arg2: memref<8x32xf32, #tpu.memory_space<vmem>>, %arg3: memref<160x32xf32, #tpu.memory_space<vmem>>, %arg4: memref<4x32xf32, #tpu.memory_space<vmem>>, %arg5: memref<40x32xf32, #tpu.memory_space<vmem>>, %arg6: memref<4x256xf32, #tpu.memory_space<vmem>>) attributes {dimension_semantics = [], scalar_prefetch = 0 : i64, scratch_operands = 0 : i64, tpu.core_type = #tpu.core_type<tc>} {
    %c0 = arith.constant 0 : index
    %0 = memref.load %arg0[%c0] : memref<3xf32, #tpu.memory_space<smem>>
    %c1 = arith.constant 1 : index
    %1 = memref.load %arg0[%c1] : memref<3xf32, #tpu.memory_space<smem>>
    %c2 = arith.constant 2 : index
    %2 = memref.load %arg0[%c2] : memref<3xf32, #tpu.memory_space<smem>>
    %c0_0 = arith.constant 0 : index
    %c0_1 = arith.constant 0 : index
    %3 = vector.load %arg1[%c0_0, %c0_1] : memref<8x32xf32, #tpu.memory_space<vmem>>, vector<8x32xf32>
    %c0_2 = arith.constant 0 : index
    %c0_3 = arith.constant 0 : index
    %4 = vector.load %arg3[%c0_2, %c0_3] : memref<160x32xf32, #tpu.memory_space<vmem>>, vector<32x32xf32>
    %c32 = arith.constant 32 : index
    %c0_4 = arith.constant 0 : index
    %5 = vector.load %arg3[%c32, %c0_4] : memref<160x32xf32, #tpu.memory_space<vmem>>, vector<32x32xf32>
    %c64 = arith.constant 64 : index
    %c0_5 = arith.constant 0 : index
    %6 = vector.load %arg3[%c64, %c0_5] : memref<160x32xf32, #tpu.memory_space<vmem>>, vector<32x32xf32>
    %c96 = arith.constant 96 : index
    %c0_6 = arith.constant 0 : index
    %7 = vector.load %arg3[%c96, %c0_6] : memref<160x32xf32, #tpu.memory_space<vmem>>, vector<32x32xf32>
    %c128 = arith.constant 128 : index
    %c0_7 = arith.constant 0 : index
    %8 = vector.load %arg3[%c128, %c0_7] : memref<160x32xf32, #tpu.memory_space<vmem>>, vector<32x32xf32>
    %c0_8 = arith.constant 0 : index
    %c0_9 = arith.constant 0 : index
    %9 = vector.load %arg4[%c0_8, %c0_9] : memref<4x32xf32, #tpu.memory_space<vmem>>, vector<1x32xf32>
    %c1_10 = arith.constant 1 : index
    %c0_11 = arith.constant 0 : index
    %10 = vector.load %arg4[%c1_10, %c0_11] : memref<4x32xf32, #tpu.memory_space<vmem>>, vector<1x32xf32>
    %c2_12 = arith.constant 2 : index
    %c0_13 = arith.constant 0 : index
    %11 = vector.load %arg4[%c2_12, %c0_13] : memref<4x32xf32, #tpu.memory_space<vmem>>, vector<1x32xf32>
    %c3 = arith.constant 3 : index
    %c0_14 = arith.constant 0 : index
    %12 = vector.load %arg4[%c3, %c0_14] : memref<4x32xf32, #tpu.memory_space<vmem>>, vector<1x32xf32>
    %cst = arith.constant dense<0.000000e+00> : vector<8x32xf32>
    %13 = tpu.matmul %3, %4, %cst {dimension_numbers = #tpu.dot_dimension_numbers<[1], [0], [0], [1], [0, 0, 1, 1], [], []>, precision = #tpu.contract_precision<fp32>} : vector<8x32xf32>, vector<32x32xf32>, vector<8x32xf32> -> vector<8x32xf32>
    %14 = vector.broadcast %9 : vector<1x32xf32> to vector<8x32xf32>
    %15 = arith.addf %13, %14 : vector<8x32xf32>
    %cst_15 = arith.constant -1.000000e+00 : f32
    %cst_16 = arith.constant 1.000000e+00 : f32
    %16 = vector.broadcast %cst_15 : f32 to vector<8x32xf32>
    %17 = arith.maximumf %16, %15 : vector<8x32xf32>
    %18 = vector.broadcast %cst_16 : f32 to vector<8x32xf32>
    %19 = arith.minimumf %18, %17 : vector<8x32xf32>
    %cst_17 = arith.constant dense<0.000000e+00> : vector<8x32xf32>
    %20 = tpu.matmul %3, %5, %cst_17 {dimension_numbers = #tpu.dot_dimension_numbers<[1], [0], [0], [1], [0, 0, 1, 1], [], []>, precision = #tpu.contract_precision<fp32>} : vector<8x32xf32>, vector<32x32xf32>, vector<8x32xf32> -> vector<8x32xf32>
    %21 = vector.broadcast %10 : vector<1x32xf32> to vector<8x32xf32>
    %22 = arith.addf %20, %21 : vector<8x32xf32>
    %cst_18 = arith.constant -1.000000e+00 : f32
    %cst_19 = arith.constant 1.000000e+00 : f32
    %23 = vector.broadcast %cst_18 : f32 to vector<8x32xf32>
    %24 = arith.maximumf %23, %22 : vector<8x32xf32>
    %25 = vector.broadcast %cst_19 : f32 to vector<8x32xf32>
    %26 = arith.minimumf %25, %24 : vector<8x32xf32>
    %c0_20 = arith.constant 0 : index
    %c0_21 = arith.constant 0 : index
    %27 = vector.load %arg5[%c0_20, %c0_21] : memref<40x32xf32, #tpu.memory_space<vmem>>, vector<8x32xf32>
    %28 = arith.mulf %19, %27 : vector<8x32xf32>
    %c8 = arith.constant 8 : index
    %c0_22 = arith.constant 0 : index
    %29 = vector.load %arg5[%c8, %c0_22] : memref<40x32xf32, #tpu.memory_space<vmem>>, vector<8x32xf32>
    %30 = arith.mulf %26, %29 : vector<8x32xf32>
    %cst_23 = arith.constant dense<0.000000e+00> : vector<8x32xf32>
    %31 = tpu.matmul %28, %6, %cst_23 {dimension_numbers = #tpu.dot_dimension_numbers<[1], [0], [0], [1], [0, 0, 1, 1], [], []>, precision = #tpu.contract_precision<fp32>} : vector<8x32xf32>, vector<32x32xf32>, vector<8x32xf32> -> vector<8x32xf32>
    %32 = vector.broadcast %11 : vector<1x32xf32> to vector<8x32xf32>
    %33 = arith.addf %31, %32 : vector<8x32xf32>
    %cst_24 = arith.constant dense<0.000000e+00> : vector<8x32xf32>
    %34 = tpu.matmul %30, %6, %cst_24 {dimension_numbers = #tpu.dot_dimension_numbers<[1], [0], [0], [1], [0, 0, 1, 1], [], []>, precision = #tpu.contract_precision<fp32>} : vector<8x32xf32>, vector<32x32xf32>, vector<8x32xf32> -> vector<8x32xf32>
    %35 = vector.broadcast %11 : vector<1x32xf32> to vector<8x32xf32>
    %36 = arith.addf %34, %35 : vector<8x32xf32>
    %37 = vector.extract_strided_slice %33 {offsets = [0, 0], sizes = [4, 32], strides = [1, 1]} : vector<8x32xf32> to vector<4x32xf32>
    %38 = math.tanh %37 : vector<4x32xf32>
    %39 = vector.extract_strided_slice %33 {offsets = [4, 0], sizes = [4, 32], strides = [1, 1]} : vector<8x32xf32> to vector<4x32xf32>
    %cst_25 = arith.constant dense<0.000000e+00> : vector<4x32xf32>
    %40 = tpu.matmul %38, %7, %cst_25 {dimension_numbers = #tpu.dot_dimension_numbers<[1], [0], [0], [1], [0, 0, 1, 1], [], []>, precision = #tpu.contract_precision<fp32>} : vector<4x32xf32>, vector<32x32xf32>, vector<4x32xf32> -> vector<4x32xf32>
    %41 = arith.addf %39, %40 : vector<4x32xf32>
    %42 = math.tanh %41 : vector<4x32xf32>
    %43 = vector.extract_strided_slice %36 {offsets = [0, 0], sizes = [4, 32], strides = [1, 1]} : vector<8x32xf32> to vector<4x32xf32>
    %44 = math.tanh %43 : vector<4x32xf32>
    %45 = vector.extract_strided_slice %36 {offsets = [4, 0], sizes = [4, 32], strides = [1, 1]} : vector<8x32xf32> to vector<4x32xf32>
    %cst_26 = arith.constant dense<0.000000e+00> : vector<4x32xf32>
    %46 = tpu.matmul %44, %7, %cst_26 {dimension_numbers = #tpu.dot_dimension_numbers<[1], [0], [0], [1], [0, 0, 1, 1], [], []>, precision = #tpu.contract_precision<fp32>} : vector<4x32xf32>, vector<32x32xf32>, vector<4x32xf32> -> vector<4x32xf32>
    %47 = arith.addf %45, %46 : vector<4x32xf32>
    %48 = math.tanh %47 : vector<4x32xf32>
    %c16 = arith.constant 16 : index
    %c0_27 = arith.constant 0 : index
    %49 = vector.load %arg5[%c16, %c0_27] : memref<40x32xf32, #tpu.memory_space<vmem>>, vector<4x32xf32>
    %50 = arith.mulf %38, %49 : vector<4x32xf32>
    %c20 = arith.constant 20 : index
    %c0_28 = arith.constant 0 : index
    %51 = vector.load %arg5[%c20, %c0_28] : memref<40x32xf32, #tpu.memory_space<vmem>>, vector<4x32xf32>
    %52 = arith.mulf %42, %51 : vector<4x32xf32>
    %c24 = arith.constant 24 : index
    %c0_29 = arith.constant 0 : index
    %53 = vector.load %arg5[%c24, %c0_29] : memref<40x32xf32, #tpu.memory_space<vmem>>, vector<4x32xf32>
    %54 = arith.mulf %44, %53 : vector<4x32xf32>
    %c28 = arith.constant 28 : index
    %c0_30 = arith.constant 0 : index
    %55 = vector.load %arg5[%c28, %c0_30] : memref<40x32xf32, #tpu.memory_space<vmem>>, vector<4x32xf32>
    %56 = arith.mulf %48, %55 : vector<4x32xf32>
    %57 = vector.broadcast %0 : f32 to vector<4x32xf32>
    %58 = arith.mulf %50, %57 : vector<4x32xf32>
    %59 = vector.broadcast %1 : f32 to vector<4x32xf32>
    %60 = arith.mulf %52, %59 : vector<4x32xf32>
    %61 = arith.addf %58, %60 : vector<4x32xf32>
    %62 = vector.broadcast %2 : f32 to vector<4x32xf32>
    %63 = arith.addf %61, %62 : vector<4x32xf32>
    %64 = vector.broadcast %0 : f32 to vector<4x32xf32>
    %65 = arith.mulf %54, %64 : vector<4x32xf32>
    %66 = vector.broadcast %1 : f32 to vector<4x32xf32>
    %67 = arith.mulf %56, %66 : vector<4x32xf32>
    %68 = arith.addf %65, %67 : vector<4x32xf32>
    %69 = vector.broadcast %2 : f32 to vector<4x32xf32>
    %70 = arith.addf %68, %69 : vector<4x32xf32>
    %cst_31 = arith.constant dense<0.000000e+00> : vector<4x32xf32>
    %71 = tpu.matmul %63, %8, %cst_31 {dimension_numbers = #tpu.dot_dimension_numbers<[1], [0], [0], [1], [0, 0, 1, 1], [], []>, precision = #tpu.contract_precision<fp32>} : vector<4x32xf32>, vector<32x32xf32>, vector<4x32xf32> -> vector<4x32xf32>
    %72 = vector.broadcast %12 : vector<1x32xf32> to vector<4x32xf32>
    %73 = arith.addf %71, %72 : vector<4x32xf32>
    %cst_32 = arith.constant -1.000000e+00 : f32
    %cst_33 = arith.constant 1.000000e+00 : f32
    %74 = vector.broadcast %cst_32 : f32 to vector<4x32xf32>
    %75 = arith.maximumf %74, %73 : vector<4x32xf32>
    %76 = vector.broadcast %cst_33 : f32 to vector<4x32xf32>
    %77 = arith.minimumf %76, %75 : vector<4x32xf32>
    %cst_34 = arith.constant dense<0.000000e+00> : vector<4x32xf32>
    %78 = tpu.matmul %70, %8, %cst_34 {dimension_numbers = #tpu.dot_dimension_numbers<[1], [0], [0], [1], [0, 0, 1, 1], [], []>, precision = #tpu.contract_precision<fp32>} : vector<4x32xf32>, vector<32x32xf32>, vector<4x32xf32> -> vector<4x32xf32>
    %79 = vector.broadcast %12 : vector<1x32xf32> to vector<4x32xf32>
    %80 = arith.addf %78, %79 : vector<4x32xf32>
    %cst_35 = arith.constant -1.000000e+00 : f32
    %cst_36 = arith.constant 1.000000e+00 : f32
    %81 = vector.broadcast %cst_35 : f32 to vector<4x32xf32>
    %82 = arith.maximumf %81, %80 : vector<4x32xf32>
    %83 = vector.broadcast %cst_36 : f32 to vector<4x32xf32>
    %84 = arith.minimumf %83, %82 : vector<4x32xf32>
    %c32_37 = arith.constant 32 : index
    %c0_38 = arith.constant 0 : index
    %85 = vector.load %arg5[%c32_37, %c0_38] : memref<40x32xf32, #tpu.memory_space<vmem>>, vector<4x32xf32>
    %86 = arith.mulf %77, %85 : vector<4x32xf32>
    %c36 = arith.constant 36 : index
    %c0_39 = arith.constant 0 : index
    %87 = vector.load %arg5[%c36, %c0_39] : memref<40x32xf32, #tpu.memory_space<vmem>>, vector<4x32xf32>
    %88 = arith.mulf %84, %87 : vector<4x32xf32>
    %c0_40 = arith.constant 0 : index
    %c0_41 = arith.constant 0 : index
    %89 = tpu.strided_load %arg2[%c0_40, %c0_41] {strides = array<i32: 2, 1>} : memref<8x32xf32, #tpu.memory_space<vmem>>, vector<4x32xf32>
    %c1_42 = arith.constant 1 : index
    %c0_43 = arith.constant 0 : index
    %90 = tpu.strided_load %arg2[%c1_42, %c0_43] {strides = array<i32: 2, 1>} : memref<8x32xf32, #tpu.memory_space<vmem>>, vector<4x32xf32>
    %91 = arith.mulf %86, %89 : vector<4x32xf32>
    %cst_44 = arith.constant dense<0.000000e+00> : vector<4xf32>
    %92 = vector.multi_reduction <add>, %91, %cst_44 [1] : vector<4x32xf32> to vector<4xf32>
    %93 = vector.shape_cast %92 : vector<4xf32> to vector<4x1xf32>
    %94 = arith.negf %93 : vector<4x1xf32>
    %95 = math.exp %94 : vector<4x1xf32>
    %cst_45 = arith.constant 1.000000e+00 : f32
    %96 = vector.broadcast %cst_45 : f32 to vector<4x1xf32>
    %97 = arith.addf %96, %95 : vector<4x1xf32>
    %98 = arith.divf %96, %97 : vector<4x1xf32>
    %99 = arith.mulf %88, %90 : vector<4x32xf32>
    %cst_46 = arith.constant dense<0.000000e+00> : vector<4xf32>
    %100 = vector.multi_reduction <add>, %99, %cst_46 [1] : vector<4x32xf32> to vector<4xf32>
    %101 = vector.shape_cast %100 : vector<4xf32> to vector<4x1xf32>
    %102 = arith.negf %101 : vector<4x1xf32>
    %103 = math.exp %102 : vector<4x1xf32>
    %cst_47 = arith.constant 1.000000e+00 : f32
    %104 = vector.broadcast %cst_47 : f32 to vector<4x1xf32>
    %105 = arith.addf %104, %103 : vector<4x1xf32>
    %106 = arith.divf %104, %105 : vector<4x1xf32>
    %107 = vector.shape_cast %98 : vector<4x1xf32> to vector<4x1xf32>
    %108 = vector.broadcast %107 : vector<4x1xf32> to vector<4x128xf32>
    %c0_48 = arith.constant 0 : index
    %c0_49 = arith.constant 0 : index
    %109 = vector.load %arg6[%c0_48, %c0_49] : memref<4x256xf32, #tpu.memory_space<vmem>>, vector<4x128xf32>
    tpu.vector_store %arg6[%c0_48, %c0_49], %108 {strides = array<i32>} : memref<4x256xf32, #tpu.memory_space<vmem>>, vector<4x128xf32>,
    %110 = vector.shape_cast %106 : vector<4x1xf32> to vector<4x1xf32>
    %111 = vector.broadcast %110 : vector<4x1xf32> to vector<4x128xf32>
    %c0_50 = arith.constant 0 : index
    %c128_51 = arith.constant 128 : index
    %112 = vector.load %arg6[%c0_50, %c128_51] : memref<4x256xf32, #tpu.memory_space<vmem>>, vector<4x128xf32>
    tpu.vector_store %arg6[%c0_50, %c128_51], %111 {strides = array<i32>} : memref<4x256xf32, #tpu.memory_space<vmem>>, vector<4x128xf32>,
    return
  }
}

</mosaic_0001>

<llo_original>
// kernel: complicated_text_model_forward.1
$region0: #{complicated_text_model_forward.1}
  #allocation0 [shape = 'u32[]', space=smem, size = 0x4, offset = 0x4, fixed_abs, tag = 'smem constant byte address 0x4 - core index']
  #allocation1 [shape = 'u32[144,128]{1,0:T(1,128)}', space=vmem, size = 0x12000, scoped, tag = 'internal scratch']
  %s0 = inlined_call_operand.vmem [shape: f32[3], index: 0, kind: input, shape index: {}]
  %s1 = inlined_call_operand.vmem [shape: f32[8,32], index: 1, kind: input, shape index: {}]
  %s2 = inlined_call_operand.vmem [shape: f32[8,32], index: 2, kind: input, shape index: {}]
  %s3 = inlined_call_operand.vmem [shape: f32[160,32], index: 3, kind: input, shape index: {}]
  %s4 = inlined_call_operand.vmem [shape: f32[4,32], index: 4, kind: input, shape index: {}]
  %s5 = inlined_call_operand.vmem [shape: f32[40,32], index: 5, kind: input, shape index: {}]
  %s6 = inlined_call_operand.vmem [shape: f32[4,256], index: 6, kind: output, shape index: {}]
  %s7 = sld [smem:[#allocation0]]
  $region38: #{complicated_text_model_forward.1} parent=0
    _
  %s9 = ssub.s32 1, %s7
  %s10 = scalar_select 0, %s9, %s7
  $region1: #{complicated_text_model_forward.1} parent=0
    #allocation2 [shape = 'u8[512]{0}', space=smem, size = 0x200, scoped, tag = 'input window, operand 0, single buffered']
    #allocation3 [shape = 's32[1]{0}', space=sflag, size = 0x4, scoped, tag = 'scoped memory for complicated_text_model_forward.1']
    %11 = vsyncpa [#allocation3], 0
    // Predicated region
    $region2: #{complicated_text_model_forward.1} parent=1 // pred_check
      _
    $region3: #{complicated_text_model_forward.1} parent=1 // pred_check_branch
      %13 = sbr.rel (0) target = $region5
    $region4: #{complicated_text_model_forward.1} parent=1 // pred_region
      %s15 = ssub.s32 16, 16
      %16 = vsyncadd [#allocation3], %s15
      %s18 = sshll.u32 %s0, 4
      %s19 = int_to_ptr.vmem [resolvable:$true] %s18
      %21 = dma.vmem_to_smem %s19, 16, [#allocation2], [#allocation3]
    $region5: #{complicated_text_model_forward.1} parent=1 // pred_fallthru
      _
    // Predicated region
    $region6: #{complicated_text_model_forward.1} parent=1 // pred_check
      _
    $region7: #{complicated_text_model_forward.1} parent=1 // pred_check_branch
      %23 = sbr.rel (0) target = $region9
    $region8: #{complicated_text_model_forward.1} parent=1 // pred_region
      _
    $region9: #{complicated_text_model_forward.1} parent=1 // pred_fallthru
      _
    // Predicated region
    $region10: #{complicated_text_model_forward.1} parent=1 // pred_check
      _
    $region11: #{complicated_text_model_forward.1} parent=1 // pred_check_branch
      %25 = sbr.rel (0) target = $region13
    $region12: #{complicated_text_model_forward.1} parent=1 // pred_region
      _
    $region13: #{complicated_text_model_forward.1} parent=1 // pred_fallthru
      _
    // Predicated region
    $region14: #{complicated_text_model_forward.1} parent=1 // pred_check
      _
    $region15: #{complicated_text_model_forward.1} parent=1 // pred_check_branch
      %27 = sbr.rel (0) target = $region17
    $region16: #{complicated_text_model_forward.1} parent=1 // pred_region
      _
    $region17: #{complicated_text_model_forward.1} parent=1 // pred_fallthru
      _
    // Predicated region
    $region18: #{complicated_text_model_forward.1} parent=1 // pred_check
      _
    $region19: #{complicated_text_model_forward.1} parent=1 // pred_check_branch
      %29 = sbr.rel (0) target = $region21
    $region20: #{complicated_text_model_forward.1} parent=1 // pred_region
      _
    $region21: #{complicated_text_model_forward.1} parent=1 // pred_fallthru
      _
    // Predicated region
    $region22: #{complicated_text_model_forward.1} parent=1 // pred_check
      _
    $region23: #{complicated_text_model_forward.1} parent=1 // pred_check_branch
      %31 = sbr.rel (0) target = $region25
    $region24: #{complicated_text_model_forward.1} parent=1 // pred_region
      _
    $region25: #{complicated_text_model_forward.1} parent=1 // pred_fallthru
      _
    // Predicated region
    $region26: #{complicated_text_model_forward.1} parent=1 // pred_check
      _
    $region27: #{complicated_text_model_forward.1} parent=1 // pred_check_branch
      %33 = sbr.rel (0) target = $region29
    $region28: #{complicated_text_model_forward.1} parent=1 // pred_region
      %34 = dma.done [#allocation3], 16
    $region29: #{complicated_text_model_forward.1} parent=1 // pred_fallthru
      _
    %35 = sfence
    %s36 = sld [smem:[#allocation2]]
    %s37 = sld [smem:[#allocation2 + $0x1]]
    %s38 = sld [smem:[#allocation2 + $0x2]]
    %v39 = vld [vmem:[%s1] sm:$0xff]
    %v40 = vld [vmem:[%s3] sm:$0xff]
    %v41 = vld [vmem:[%s3 + $0x8] sm:$0xff]
    %v42 = vld [vmem:[%s3 + $0x10] sm:$0xff]
    %v43 = vld [vmem:[%s3 + $0x18] sm:$0xff]
    %v44 = vld [vmem:[%s3 + $0x20] sm:$0xff]
    %v45 = vld [vmem:[%s3 + $0x28] sm:$0xff]
    %v46 = vld [vmem:[%s3 + $0x30] sm:$0xff]
    %v47 = vld [vmem:[%s3 + $0x38] sm:$0xff]
    %v48 = vld [vmem:[%s3 + $0x40] sm:$0xff]
    %v49 = vld [vmem:[%s3 + $0x48] sm:$0xff]
    %v50 = vld [vmem:[%s3 + $0x50] sm:$0xff]
    %v51 = vld [vmem:[%s3 + $0x58] sm:$0xff]
    %v52 = vld [vmem:[%s3 + $0x60] sm:$0xff]
    %v53 = vld [vmem:[%s3 + $0x68] sm:$0xff]
    %v54 = vld [vmem:[%s3 + $0x70] sm:$0xff]
    %v55 = vld [vmem:[%s3 + $0x78] sm:$0xff]
    %v56 = vld [vmem:[%s3 + $0x80] sm:$0xff]
    %v57 = vld [vmem:[%s3 + $0x88] sm:$0xff]
    %v58 = vld [vmem:[%s3 + $0x90] sm:$0xff]
    %v59 = vld [vmem:[%s3 + $0x98] sm:$0xff]
    %v60 = vld [vmem:[%s4] sm:$0x1]
    %v61 = vld [vmem:[%s4 + $0x1] sm:$0x1]
    %v62 = vld [vmem:[%s4 + $0x2] sm:$0x1]
    %v63 = vld [vmem:[%s4 + $0x3] sm:$0x1]
    %v64 = vlaneseq
    %v65 = vshrl.u32 %v64, 7
    %v66 = vsub.s32 0, %v65
    %v67 = vrot.slane %v60, %v66
    %vm68 = vcmask 261120
    %v70 = vsel %vm68, %v39, 0
    %72 = vmatprep.subr.mxu0 0.0
    %73 = vmatpush1.msra.mxu0 0.0
    %74 = vmatprep.subr.mxu0 0.0
    %75 = vmatpush1.msra.mxu0 0.0
    %76 = vmatprep.subr.mxu0 0.0
    %77 = vmatpush1.msra.mxu0 0.0
    %78 = vmatprep.subr.mxu0 0.0
    %79 = vmatpush1.msra.mxu0 0.0
    %80 = vmatprep.subr.mxu0 0.0
    %81 = vmatpush1.msra.mxu0 0.0
    %82 = vmatprep.subr.mxu0 0.0
    %83 = vmatpush1.msra.mxu0 0.0
    %84 = vmatprep.subr.mxu0 0.0
    %85 = vmatpush1.msra.mxu0 0.0
    %86 = vmatprep.subr.mxu0 0.0
    %87 = vmatpush1.msra.mxu0 0.0
    %88 = vmatprep.subr.mxu0 0.0
    %89 = vmatpush1.msra.mxu0 0.0
    %90 = vmatprep.subr.mxu0 0.0
    %91 = vmatpush1.msra.mxu0 0.0
    %92 = vmatprep.subr.mxu0 0.0
    %93 = vmatpush1.msra.mxu0 0.0
    %94 = vmatprep.subr.mxu0 0.0
    %95 = vmatpush1.msra.mxu0 0.0
    %96 = vmatprep.subr.mxu0 0.0
    %v97 = vand.u32 %v43, 4294901760
    %98 = vmatpush1.msra.mxu0 %v97
    %99 = vmatprep.subr.mxu0 0.0
    %v100 = vand.u32 %v42, 4294901760
    %101 = vmatpush1.msra.mxu0 %v100
    %102 = vmatprep.subr.mxu0 0.0
    %v103 = vand.u32 %v41, 4294901760
    %104 = vmatpush1.msra.mxu0 %v103
    %105 = vmatprep.subr.mxu0 0.0
    %v106 = vand.u32 %v40, 4294901760
    %107 = vmatpush1.msra.mxu0 %v106
    %108 = vmatprep.subr.mxu0 0.0
    %109 = vmatpush2.msra.mxu0 0.0
    %110 = vmatprep.subr.mxu0 0.0
    %111 = vmatpush2.msra.mxu0 0.0
    %112 = vmatprep.subr.mxu0 0.0
    %113 = vmatpush2.msra.mxu0 0.0
    %114 = vmatprep.subr.mxu0 0.0
    %115 = vmatpush2.msra.mxu0 0.0
    %116 = vmatprep.subr.mxu0 0.0
    %117 = vmatpush2.msra.mxu0 0.0
    %118 = vmatprep.subr.mxu0 0.0
    %119 = vmatpush2.msra.mxu0 0.0
    %120 = vmatprep.subr.mxu0 0.0
    %121 = vmatpush2.msra.mxu0 0.0
    %122 = vmatprep.subr.mxu0 0.0
    %123 = vmatpush2.msra.mxu0 0.0
    %124 = vmatprep.subr.mxu0 0.0
    %125 = vmatpush2.msra.mxu0 0.0
    %126 = vmatprep.subr.mxu0 0.0
    %127 = vmatpush2.msra.mxu0 0.0
    %128 = vmatprep.subr.mxu0 0.0
    %129 = vmatpush2.msra.mxu0 0.0
    %130 = vmatprep.subr.mxu0 0.0
    %131 = vmatpush2.msra.mxu0 0.0
    %132 = vmatprep.subr.mxu0 0.0
    %133 = vmatpush2.msra.mxu0 0.0
    %134 = vmatprep.subr.mxu0 0.0
    %135 = vmatpush2.msra.mxu0 0.0
    %136 = vmatprep.subr.mxu0 0.0
    %137 = vmatpush2.msra.mxu0 0.0
    %138 = vmatprep.subr.mxu0 0.0
    %139 = vmatpush2.msra.mxu0 0.0
    %140 = vmatprep.mubr.f32.mxu0 0.0
    %v141 = vand.u32 %v70, 4294901760
    %v142 = vsub.f32 %v70, %v141
    %v143 = vand.u32 %v142, 4294901760
    %v144 = vsub.f32 %v142, %v143
    %v145 = vand.u32 %v144, 4294901760
    %146 = vmatmul.mubr.f32.gmra.mxu0 %v145
    %v147 = vpop.f32.mrf.mxu0
    %v148 = vadd.f32 %v67, %v147
    %v149 = vpop.f32.mrf.mxu0
    %150 = vdwg.mxu0
    %151 = vmatprep.subr.mxu0 0.0
    %152 = vmatpush1.msra.mxu0 0.0
    %153 = vmatprep.subr.mxu0 0.0
    %154 = vmatpush1.msra.mxu0 0.0
    %155 = vmatprep.subr.mxu0 0.0
    %156 = vmatpush1.msra.mxu0 0.0
    %157 = vmatprep.subr.mxu0 0.0
    %158 = vmatpush1.msra.mxu0 0.0
    %159 = vmatprep.subr.mxu0 0.0
    %160 = vmatpush1.msra.mxu0 0.0
    %161 = vmatprep.subr.mxu0 0.0
    %162 = vmatpush1.msra.mxu0 0.0
    %163 = vmatprep.subr.mxu0 0.0
    %164 = vmatpush1.msra.mxu0 0.0
    %165 = vmatprep.subr.mxu0 0.0
    %166 = vmatpush1.msra.mxu0 0.0
    %167 = vmatprep.subr.mxu0 0.0
    %168 = vmatpush1.msra.mxu0 0.0
    %169 = vmatprep.subr.mxu0 0.0
    %170 = vmatpush1.msra.mxu0 0.0
    %171 = vmatprep.subr.mxu0 0.0
    %172 = vmatpush1.msra.mxu0 0.0
    %173 = vmatprep.subr.mxu0 0.0
    %174 = vmatpush1.msra.mxu0 0.0
    %175 = vmatprep.subr.mxu0 0.0
    %v176 = vand.u32 %v43, 4294901760
    %v177 = vsub.f32 %v43, %v176
    %v178 = vand.u32 %v177, 4294901760
    %v179 = vsub.f32 %v177, %v178
    %v180 = vand.u32 %v179, 4294901760
    %181 = vmatpush1.msra.mxu0 %v180
    %182 = vmatprep.subr.mxu0 0.0
    %v183 = vand.u32 %v42, 4294901760
    %v184 = vsub.f32 %v42, %v183
    %v185 = vand.u32 %v184, 4294901760
    %v186 = vsub.f32 %v184, %v185
    %v187 = vand.u32 %v186, 4294901760
    %188 = vmatpush1.msra.mxu0 %v187
    %189 = vmatprep.subr.mxu0 0.0
    %v190 = vand.u32 %v41, 4294901760
    %v191 = vsub.f32 %v41, %v190
    %v192 = vand.u32 %v191, 4294901760
    %v193 = vsub.f32 %v191, %v192
    %v194 = vand.u32 %v193, 4294901760
    %195 = vmatpush1.msra.mxu0 %v194
    %196 = vmatprep.subr.mxu0 0.0
    %v197 = vand.u32 %v40, 4294901760
    %v198 = vsub.f32 %v40, %v197
    %v199 = vand.u32 %v198, 4294901760
    %v200 = vsub.f32 %v198, %v199
    %v201 = vand.u32 %v200, 4294901760
    %202 = vmatpush1.msra.mxu0 %v201
    %203 = vmatprep.subr.mxu0 0.0
    %204 = vmatpush2.msra.mxu0 0.0
    %205 = vmatprep.subr.mxu0 0.0
    %206 = vmatpush2.msra.mxu0 0.0
    %207 = vmatprep.subr.mxu0 0.0
    %208 = vmatpush2.msra.mxu0 0.0
    %209 = vmatprep.subr.mxu0 0.0
    %210 = vmatpush2.msra.mxu0 0.0
    %211 = vmatprep.subr.mxu0 0.0
    %212 = vmatpush2.msra.mxu0 0.0
    %213 = vmatprep.subr.mxu0 0.0
    %214 = vmatpush2.msra.mxu0 0.0
    %215 = vmatprep.subr.mxu0 0.0
    %216 = vmatpush2.msra.mxu0 0.0
    %217 = vmatprep.subr.mxu0 0.0
    %218 = vmatpush2.msra.mxu0 0.0
    %219 = vmatprep.subr.mxu0 0.0
    %220 = vmatpush2.msra.mxu0 0.0
    %221 = vmatprep.subr.mxu0 0.0
    %222 = vmatpush2.msra.mxu0 0.0
    %223 = vmatprep.subr.mxu0 0.0
    %224 = vmatpush2.msra.mxu0 0.0
    %225 = vmatprep.subr.mxu0 0.0
    %226 = vmatpush2.msra.mxu0 0.0
    %227 = vmatprep.subr.mxu0 0.0
    %228 = vmatpush2.msra.mxu0 0.0
    %229 = vmatprep.subr.mxu0 0.0
    %230 = vmatpush2.msra.mxu0 0.0
    %231 = vmatprep.subr.mxu0 0.0
    %232 = vmatpush2.msra.mxu0 0.0
    %233 = vmatprep.subr.mxu0 0.0
    %234 = vmatpush2.msra.mxu0 0.0
    %235 = vmatprep.mubr.f32.mxu0 0.0
    %v236 = vand.u32 %v70, 4294901760
    %237 = vmatmul.mubr.f32.gmra.mxu0 %v236
    %v238 = vpop.f32.mrf.mxu0
    %v239 = vadd.f32 %v148, %v238
    %v240 = vpop.f32.mrf.mxu0
    %241 = vdwg.mxu0
    %242 = vmatprep.subr.mxu0 0.0
    %243 = vmatpush1.msra.mxu0 0.0
    %244 = vmatprep.subr.mxu0 0.0
    %245 = vmatpush1.msra.mxu0 0.0
    %246 = vmatprep.subr.mxu0 0.0
    %247 = vmatpush1.msra.mxu0 0.0
    %248 = vmatprep.subr.mxu0 0.0
    %249 = vmatpush1.msra.mxu0 0.0
    %250 = vmatprep.subr.mxu0 0.0
    %251 = vmatpush1.msra.mxu0 0.0
    %252 = vmatprep.subr.mxu0 0.0
    %253 = vmatpush1.msra.mxu0 0.0
    %254 = vmatprep.subr.mxu0 0.0
    %255 = vmatpush1.msra.mxu0 0.0
    %256 = vmatprep.subr.mxu0 0.0
    %257 = vmatpush1.msra.mxu0 0.0
    %258 = vmatprep.subr.mxu0 0.0
    %259 = vmatpush1.msra.mxu0 0.0
    %260 = vmatprep.subr.mxu0 0.0
    %261 = vmatpush1.msra.mxu0 0.0
    %262 = vmatprep.subr.mxu0 0.0
    %263 = vmatpush1.msra.mxu0 0.0
    %264 = vmatprep.subr.mxu0 0.0
    %265 = vmatpush1.msra.mxu0 0.0
    %266 = vmatprep.subr.mxu0 0.0
    %v267 = vand.u32 %v43, 4294901760
    %v268 = vsub.f32 %v43, %v267
    %269 = vmatpush1.msra.mxu0 %v268
    %270 = vmatprep.subr.mxu0 0.0
    %v271 = vand.u32 %v42, 4294901760
    %v272 = vsub.f32 %v42, %v271
    %273 = vmatpush1.msra.mxu0 %v272
    %274 = vmatprep.subr.mxu0 0.0
    %v275 = vand.u32 %v41, 4294901760
    %v276 = vsub.f32 %v41, %v275
    %277 = vmatpush1.msra.mxu0 %v276
    %278 = vmatprep.subr.mxu0 0.0
    %v279 = vand.u32 %v40, 4294901760
    %v280 = vsub.f32 %v40, %v279
    %281 = vmatpush1.msra.mxu0 %v280
    %282 = vmatprep.subr.mxu0 0.0
    %283 = vmatpush2.msra.mxu0 0.0
    %284 = vmatprep.subr.mxu0 0.0
    %285 = vmatpush2.msra.mxu0 0.0
    %286 = vmatprep.subr.mxu0 0.0
    %287 = vmatpush2.msra.mxu0 0.0
    %288 = vmatprep.subr.mxu0 0.0
    %289 = vmatpush2.msra.mxu0 0.0
    %290 = vmatprep.subr.mxu0 0.0
    %291 = vmatpush2.msra.mxu0 0.0
    %292 = vmatprep.subr.mxu0 0.0
    %293 = vmatpush2.msra.mxu0 0.0
    %294 = vmatprep.subr.mxu0 0.0
    %295 = vmatpush2.msra.mxu0 0.0
    %296 = vmatprep.subr.mxu0 0.0
    %297 = vmatpush2.msra.mxu0 0.0
    %298 = vmatprep.subr.mxu0 0.0
    %299 = vmatpush2.msra.mxu0 0.0
    %300 = vmatprep.subr.mxu0 0.0
    %301 = vmatpush2.msra.mxu0 0.0
    %302 = vmatprep.subr.mxu0 0.0
    %303 = vmatpush2.msra.mxu0 0.0
    %304 = vmatprep.subr.mxu0 0.0
    %305 = vmatpush2.msra.mxu0 0.0
    %306 = vmatprep.subr.mxu0 0.0
    %307 = vmatpush2.msra.mxu0 0.0
    %308 = vmatprep.subr.mxu0 0.0
    %309 = vmatpush2.msra.mxu0 0.0
    %310 = vmatprep.subr.mxu0 0.0
    %311 = vmatpush2.msra.mxu0 0.0
    %312 = vmatprep.subr.mxu0 0.0
    %313 = vmatpush2.msra.mxu0 0.0
    %314 = vmatprep.mubr.f32.mxu0 0.0
    %v315 = vand.u32 %v70, 4294901760
    %v316 = vsub.f32 %v70, %v315
    %317 = vmatmul.mubr.f32.gmra.mxu0 %v316
    %v318 = vpop.f32.mrf.mxu0
    %v319 = vadd.f32 %v239, %v318
    %v320 = vpop.f32.mrf.mxu0
    %321 = vdwg.mxu0
    %322 = vmatprep.subr.mxu0 0.0
    %323 = vmatpush1.msra.mxu0 0.0
    %324 = vmatprep.subr.mxu0 0.0
    %325 = vmatpush1.msra.mxu0 0.0
    %326 = vmatprep.subr.mxu0 0.0
    %327 = vmatpush1.msra.mxu0 0.0
    %328 = vmatprep.subr.mxu0 0.0
    %329 = vmatpush1.msra.mxu0 0.0
    %330 = vmatprep.subr.mxu0 0.0
    %331 = vmatpush1.msra.mxu0 0.0
    %332 = vmatprep.subr.mxu0 0.0
    %333 = vmatpush1.msra.mxu0 0.0
    %334 = vmatprep.subr.mxu0 0.0
    %335 = vmatpush1.msra.mxu0 0.0
    %336 = vmatprep.subr.mxu0 0.0
    %337 = vmatpush1.msra.mxu0 0.0
    %338 = vmatprep.subr.mxu0 0.0
    %339 = vmatpush1.msra.mxu0 0.0
    %340 = vmatprep.subr.mxu0 0.0
    %341 = vmatpush1.msra.mxu0 0.0
    %342 = vmatprep.subr.mxu0 0.0
    %343 = vmatpush1.msra.mxu0 0.0
    %344 = vmatprep.subr.mxu0 0.0
    %345 = vmatpush1.msra.mxu0 0.0
    %346 = vmatprep.subr.mxu0 0.0
    %v347 = vand.u32 %v43, 4294901760
    %348 = vmatpush1.msra.mxu0 %v347
    %349 = vmatprep.subr.mxu0 0.0
    %v350 = vand.u32 %v42, 4294901760
    %351 = vmatpush1.msra.mxu0 %v350
    %352 = vmatprep.subr.mxu0 0.0
    %v353 = vand.u32 %v41, 4294901760
    %354 = vmatpush1.msra.mxu0 %v353
    %355 = vmatprep.subr.mxu0 0.0
    %v356 = vand.u32 %v40, 4294901760
    %357 = vmatpush1.msra.mxu0 %v356
    %358 = vmatprep.subr.mxu0 0.0
    %359 = vmatpush2.msra.mxu0 0.0
    %360 = vmatprep.subr.mxu0 0.0
    %361 = vmatpush2.msra.mxu0 0.0
    %362 = vmatprep.subr.mxu0 0.0
    %363 = vmatpush2.msra.mxu0 0.0
    %364 = vmatprep.subr.mxu0 0.0
    %365 = vmatpush2.msra.mxu0 0.0
    %366 = vmatprep.subr.mxu0 0.0
    %367 = vmatpush2.msra.mxu0 0.0
    %368 = vmatprep.subr.mxu0 0.0
    %369 = vmatpush2.msra.mxu0 0.0
    %370 = vmatprep.subr.mxu0 0.0
    %371 = vmatpush2.msra.mxu0 0.0
    %372 = vmatprep.subr.mxu0 0.0
    %373 = vmatpush2.msra.mxu0 0.0
    %374 = vmatprep.subr.mxu0 0.0
    %375 = vmatpush2.msra.mxu0 0.0
    %376 = vmatprep.subr.mxu0 0.0
    %377 = vmatpush2.msra.mxu0 0.0
    %378 = vmatprep.subr.mxu0 0.0
    %379 = vmatpush2.msra.mxu0 0.0
    %380 = vmatprep.subr.mxu0 0.0
    %381 = vmatpush2.msra.mxu0 0.0
    %382 = vmatprep.subr.mxu0 0.0
    %383 = vmatpush2.msra.mxu0 0.0
    %384 = vmatprep.subr.mxu0 0.0
    %385 = vmatpush2.msra.mxu0 0.0
    %386 = vmatprep.subr.mxu0 0.0
    %387 = vmatpush2.msra.mxu0 0.0
    %388 = vmatprep.subr.mxu0 0.0
    %389 = vmatpush2.msra.mxu0 0.0
    %390 = vmatprep.mubr.f32.mxu0 0.0
    %v391 = vand.u32 %v70, 4294901760
    %v392 = vsub.f32 %v70, %v391
    %v393 = vand.u32 %v392, 4294901760
    %394 = vmatmul.mubr.f32.gmra.mxu0 %v393
    %v395 = vpop.f32.mrf.mxu0
    %v396 = vadd.f32 %v319, %v395
    %v397 = vpop.f32.mrf.mxu0
    %398 = vdwg.mxu0
    %399 = vmatprep.subr.mxu0 0.0
    %400 = vmatpush1.msra.mxu0 0.0
    %401 = vmatprep.subr.mxu0 0.0
    %402 = vmatpush1.msra.mxu0 0.0
    %403 = vmatprep.subr.mxu0 0.0
    %404 = vmatpush1.msra.mxu0 0.0
    %405 = vmatprep.subr.mxu0 0.0
    %406 = vmatpush1.msra.mxu0 0.0
    %407 = vmatprep.subr.mxu0 0.0
    %408 = vmatpush1.msra.mxu0 0.0
    %409 = vmatprep.subr.mxu0 0.0
    %410 = vmatpush1.msra.mxu0 0.0
    %411 = vmatprep.subr.mxu0 0.0
    %412 = vmatpush1.msra.mxu0 0.0
    %413 = vmatprep.subr.mxu0 0.0
    %414 = vmatpush1.msra.mxu0 0.0
    %415 = vmatprep.subr.mxu0 0.0
    %416 = vmatpush1.msra.mxu0 0.0
    %417 = vmatprep.subr.mxu0 0.0
    %418 = vmatpush1.msra.mxu0 0.0
    %419 = vmatprep.subr.mxu0 0.0
    %420 = vmatpush1.msra.mxu0 0.0
    %421 = vmatprep.subr.mxu0 0.0
    %422 = vmatpush1.msra.mxu0 0.0
    %423 = vmatprep.subr.mxu0 0.0
    %v424 = vand.u32 %v43, 4294901760
    %v425 = vsub.f32 %v43, %v424
    %v426 = vand.u32 %v425, 4294901760
    %427 = vmatpush1.msra.mxu0 %v426
    %428 = vmatprep.subr.mxu0 0.0
    %v429 = vand.u32 %v42, 4294901760
    %v430 = vsub.f32 %v42, %v429
    %v431 = vand.u32 %v430, 4294901760
    %432 = vmatpush1.msra.mxu0 %v431
    %433 = vmatprep.subr.mxu0 0.0
    %v434 = vand.u32 %v41, 4294901760
    %v435 = vsub.f32 %v41, %v434
    %v436 = vand.u32 %v435, 4294901760
    %437 = vmatpush1.msra.mxu0 %v436
    %438 = vmatprep.subr.mxu0 0.0
    %v439 = vand.u32 %v40, 4294901760
    %v440 = vsub.f32 %v40, %v439
    %v441 = vand.u32 %v440, 4294901760
    %442 = vmatpush1.msra.mxu0 %v441
    %443 = vmatprep.subr.mxu0 0.0
    %444 = vmatpush2.msra.mxu0 0.0
    %445 = vmatprep.subr.mxu0 0.0
    %446 = vmatpush2.msra.mxu0 0.0
    %447 = vmatprep.subr.mxu0 0.0
    %448 = vmatpush2.msra.mxu0 0.0
    %449 = vmatprep.subr.mxu0 0.0
    %450 = vmatpush2.msra.mxu0 0.0
    %451 = vmatprep.subr.mxu0 0.0
    %452 = vmatpush2.msra.mxu0 0.0
    %453 = vmatprep.subr.mxu0 0.0
    %454 = vmatpush2.msra.mxu0 0.0
    %455 = vmatprep.subr.mxu0 0.0
    %456 = vmatpush2.msra.mxu0 0.0
    %457 = vmatprep.subr.mxu0 0.0
    %458 = vmatpush2.msra.mxu0 0.0
    %459 = vmatprep.subr.mxu0 0.0
    %460 = vmatpush2.msra.mxu0 0.0
    %461 = vmatprep.subr.mxu0 0.0
    %462 = vmatpush2.msra.mxu0 0.0
    %463 = vmatprep.subr.mxu0 0.0
    %464 = vmatpush2.msra.mxu0 0.0
    %465 = vmatprep.subr.mxu0 0.0
    %466 = vmatpush2.msra.mxu0 0.0
    %467 = vmatprep.subr.mxu0 0.0
    %468 = vmatpush2.msra.mxu0 0.0
    %469 = vmatprep.subr.mxu0 0.0
    %470 = vmatpush2.msra.mxu0 0.0
    %471 = vmatprep.subr.mxu0 0.0
    %472 = vmatpush2.msra.mxu0 0.0
    %473 = vmatprep.subr.mxu0 0.0
    %474 = vmatpush2.msra.mxu0 0.0
    %475 = vmatprep.mubr.f32.mxu0 0.0
    %v476 = vand.u32 %v70, 4294901760
    %477 = vmatmul.mubr.f32.gmra.mxu0 %v476
    %v478 = vpop.f32.mrf.mxu0
    %v479 = vadd.f32 %v396, %v478
    %v480 = vpop.f32.mrf.mxu0
    %481 = vdwg.mxu0
    %482 = vmatprep.subr.mxu0 0.0
    %483 = vmatpush1.msra.mxu0 0.0
    %484 = vmatprep.subr.mxu0 0.0
    %485 = vmatpush1.msra.mxu0 0.0
    %486 = vmatprep.subr.mxu0 0.0
    %487 = vmatpush1.msra.mxu0 0.0
    %488 = vmatprep.subr.mxu0 0.0
    %489 = vmatpush1.msra.mxu0 0.0
    %490 = vmatprep.subr.mxu0 0.0
    %491 = vmatpush1.msra.mxu0 0.0
    %492 = vmatprep.subr.mxu0 0.0
    %493 = vmatpush1.msra.mxu0 0.0
    %494 = vmatprep.subr.mxu0 0.0
    %495 = vmatpush1.msra.mxu0 0.0
    %496 = vmatprep.subr.mxu0 0.0
    %497 = vmatpush1.msra.mxu0 0.0
    %498 = vmatprep.subr.mxu0 0.0
    %499 = vmatpush1.msra.mxu0 0.0
    %500 = vmatprep.subr.mxu0 0.0
    %501 = vmatpush1.msra.mxu0 0.0
    %502 = vmatprep.subr.mxu0 0.0
    %503 = vmatpush1.msra.mxu0 0.0
    %504 = vmatprep.subr.mxu0 0.0
    %505 = vmatpush1.msra.mxu0 0.0
    %506 = vmatprep.subr.mxu0 0.0
    %v507 = vand.u32 %v43, 4294901760
    %508 = vmatpush1.msra.mxu0 %v507
    %509 = vmatprep.subr.mxu0 0.0
    %v510 = vand.u32 %v42, 4294901760
    %511 = vmatpush1.msra.mxu0 %v510
    %512 = vmatprep.subr.mxu0 0.0
    %v513 = vand.u32 %v41, 4294901760
    %514 = vmatpush1.msra.mxu0 %v513
    %515 = vmatprep.subr.mxu0 0.0
    %v516 = vand.u32 %v40, 4294901760
    %517 = vmatpush1.msra.mxu0 %v516
    %518 = vmatprep.subr.mxu0 0.0
    %519 = vmatpush2.msra.mxu0 0.0
    %520 = vmatprep.subr.mxu0 0.0
    %521 = vmatpush2.msra.mxu0 0.0
    %522 = vmatprep.subr.mxu0 0.0
    %523 = vmatpush2.msra.mxu0 0.0
    %524 = vmatprep.subr.mxu0 0.0
    %525 = vmatpush2.msra.mxu0 0.0
    %526 = vmatprep.subr.mxu0 0.0
    %527 = vmatpush2.msra.mxu0 0.0
    %528 = vmatprep.subr.mxu0 0.0
    %529 = vmatpush2.msra.mxu0 0.0
    %530 = vmatprep.subr.mxu0 0.0
    %531 = vmatpush2.msra.mxu0 0.0
    %532 = vmatprep.subr.mxu0 0.0
    %533 = vmatpush2.msra.mxu0 0.0
    %534 = vmatprep.subr.mxu0 0.0
    %535 = vmatpush2.msra.mxu0 0.0
    %536 = vmatprep.subr.mxu0 0.0
    %537 = vmatpush2.msra.mxu0 0.0
    %538 = vmatprep.subr.mxu0 0.0
    %539 = vmatpush2.msra.mxu0 0.0
    %540 = vmatprep.subr.mxu0 0.0
    %541 = vmatpush2.msra.mxu0 0.0
    %542 = vmatprep.subr.mxu0 0.0
    %543 = vmatpush2.msra.mxu0 0.0
    %544 = vmatprep.subr.mxu0 0.0
    %545 = vmatpush2.msra.mxu0 0.0
    %546 = vmatprep.subr.mxu0 0.0
    %547 = vmatpush2.msra.mxu0 0.0
    %548 = vmatprep.subr.mxu0 0.0
    %549 = vmatpush2.msra.mxu0 0.0
    %550 = vmatprep.mubr.f32.mxu0 0.0
    %v551 = vand.u32 %v70, 4294901760
    %552 = vmatmul.mubr.f32.gmra.mxu0 %v551
    %v553 = vpop.f32.mrf.mxu0
    %v554 = vadd.f32 %v479, %v553
    %v555 = vpop.f32.mrf.mxu0
    %556 = vdwg.mxu0
    %v557 = vmax.f32 %v554, -1.0
    %v558 = vmin.f32 %v557, 1.0
    %v559 = vlaneseq
    %v560 = vshrl.u32 %v559, 7
    %v561 = vsub.s32 0, %v560
    %v562 = vrot.slane %v61, %v561
    %563 = vmatprep.subr.mxu0 0.0
    %564 = vmatpush1.msra.mxu0 0.0
    %565 = vmatprep.subr.mxu0 0.0
    %566 = vmatpush1.msra.mxu0 0.0
    %567 = vmatprep.subr.mxu0 0.0
    %568 = vmatpush1.msra.mxu0 0.0
    %569 = vmatprep.subr.mxu0 0.0
    %570 = vmatpush1.msra.mxu0 0.0
    %571 = vmatprep.subr.mxu0 0.0
    %572 = vmatpush1.msra.mxu0 0.0
    %573 = vmatprep.subr.mxu0 0.0
    %574 = vmatpush1.msra.mxu0 0.0
    %575 = vmatprep.subr.mxu0 0.0
    %576 = vmatpush1.msra.mxu0 0.0
    %577 = vmatprep.subr.mxu0 0.0
    %578 = vmatpush1.msra.mxu0 0.0
    %579 = vmatprep.subr.mxu0 0.0
    %580 = vmatpush1.msra.mxu0 0.0
    %581 = vmatprep.subr.mxu0 0.0
    %582 = vmatpush1.msra.mxu0 0.0
    %583 = vmatprep.subr.mxu0 0.0
    %584 = vmatpush1.msra.mxu0 0.0
    %585 = vmatprep.subr.mxu0 0.0
    %586 = vmatpush1.msra.mxu0 0.0
    %587 = vmatprep.subr.mxu0 0.0
    %v588 = vand.u32 %v47, 4294901760
    %589 = vmatpush1.msra.mxu0 %v588
    %590 = vmatprep.subr.mxu0 0.0
    %v591 = vand.u32 %v46, 4294901760
    %592 = vmatpush1.msra.mxu0 %v591
    %593 = vmatprep.subr.mxu0 0.0
    %v594 = vand.u32 %v45, 4294901760
    %595 = vmatpush1.msra.mxu0 %v594
    %596 = vmatprep.subr.mxu0 0.0
    %v597 = vand.u32 %v44, 4294901760
    %598 = vmatpush1.msra.mxu0 %v597
    %599 = vmatprep.subr.mxu0 0.0
    %600 = vmatpush2.msra.mxu0 0.0
    %601 = vmatprep.subr.mxu0 0.0
    %602 = vmatpush2.msra.mxu0 0.0
    %603 = vmatprep.subr.mxu0 0.0
    %604 = vmatpush2.msra.mxu0 0.0
    %605 = vmatprep.subr.mxu0 0.0
    %606 = vmatpush2.msra.mxu0 0.0
    %607 = vmatprep.subr.mxu0 0.0
    %608 = vmatpush2.msra.mxu0 0.0
    %609 = vmatprep.subr.mxu0 0.0
    %610 = vmatpush2.msra.mxu0 0.0
    %611 = vmatprep.subr.mxu0 0.0
    %612 = vmatpush2.msra.mxu0 0.0
    %613 = vmatprep.subr.mxu0 0.0
    %614 = vmatpush2.msra.mxu0 0.0
    %615 = vmatprep.subr.mxu0 0.0
    %616 = vmatpush2.msra.mxu0 0.0
    %617 = vmatprep.subr.mxu0 0.0
    %618 = vmatpush2.msra.mxu0 0.0
    %619 = vmatprep.subr.mxu0 0.0
    %620 = vmatpush2.msra.mxu0 0.0
    %621 = vmatprep.subr.mxu0 0.0
    %622 = vmatpush2.msra.mxu0 0.0
    %623 = vmatprep.subr.mxu0 0.0
    %624 = vmatpush2.msra.mxu0 0.0
    %625 = vmatprep.subr.mxu0 0.0
    %626 = vmatpush2.msra.mxu0 0.0
    %627 = vmatprep.subr.mxu0 0.0
    %628 = vmatpush2.msra.mxu0 0.0
    %629 = vmatprep.subr.mxu0 0.0
    %630 = vmatpush2.msra.mxu0 0.0
    %631 = vmatprep.mubr.f32.mxu0 0.0
    %v632 = vand.u32 %v70, 4294901760
    %v633 = vsub.f32 %v70, %v632
    %v634 = vand.u32 %v633, 4294901760
    %v635 = vsub.f32 %v633, %v634
    %v636 = vand.u32 %v635, 4294901760
    %637 = vmatmul.mubr.f32.gmra.mxu0 %v636
    %v638 = vpop.f32.mrf.mxu0
    %v639 = vadd.f32 %v562, %v638
    %v640 = vpop.f32.mrf.mxu0
    %641 = vdwg.mxu0
    %642 = vmatprep.subr.mxu0 0.0
    %643 = vmatpush1.msra.mxu0 0.0
    %644 = vmatprep.subr.mxu0 0.0
    %645 = vmatpush1.msra.mxu0 0.0
    %646 = vmatprep.subr.mxu0 0.0
    %647 = vmatpush1.msra.mxu0 0.0
    %648 = vmatprep.subr.mxu0 0.0
    %649 = vmatpush1.msra.mxu0 0.0
    %650 = vmatprep.subr.mxu0 0.0
    %651 = vmatpush1.msra.mxu0 0.0
    %652 = vmatprep.subr.mxu0 0.0
    %653 = vmatpush1.msra.mxu0 0.0
    %654 = vmatprep.subr.mxu0 0.0
    %655 = vmatpush1.msra.mxu0 0.0
    %656 = vmatprep.subr.mxu0 0.0
    %657 = vmatpush1.msra.mxu0 0.0
    %658 = vmatprep.subr.mxu0 0.0
    %659 = vmatpush1.msra.mxu0 0.0
    %660 = vmatprep.subr.mxu0 0.0
    %661 = vmatpush1.msra.mxu0 0.0
    %662 = vmatprep.subr.mxu0 0.0
    %663 = vmatpush1.msra.mxu0 0.0
    %664 = vmatprep.subr.mxu0 0.0
    %665 = vmatpush1.msra.mxu0 0.0
    %666 = vmatprep.subr.mxu0 0.0
    %v667 = vand.u32 %v47, 4294901760
    %v668 = vsub.f32 %v47, %v667
    %v669 = vand.u32 %v668, 4294901760
    %v670 = vsub.f32 %v668, %v669
    %v671 = vand.u32 %v670, 4294901760
    %672 = vmatpush1.msra.mxu0 %v671
    %673 = vmatprep.subr.mxu0 0.0
    %v674 = vand.u32 %v46, 4294901760
    %v675 = vsub.f32 %v46, %v674
    %v676 = vand.u32 %v675, 4294901760
    %v677 = vsub.f32 %v675, %v676
    %v678 = vand.u32 %v677, 4294901760
    %679 = vmatpush1.msra.mxu0 %v678
    %680 = vmatprep.subr.mxu0 0.0
    %v681 = vand.u32 %v45, 4294901760
    %v682 = vsub.f32 %v45, %v681
    %v683 = vand.u32 %v682, 4294901760
    %v684 = vsub.f32 %v682, %v683
    %v685 = vand.u32 %v684, 4294901760
    %686 = vmatpush1.msra.mxu0 %v685
    %687 = vmatprep.subr.mxu0 0.0
    %v688 = vand.u32 %v44, 4294901760
    %v689 = vsub.f32 %v44, %v688
    %v690 = vand.u32 %v689, 4294901760
    %v691 = vsub.f32 %v689, %v690
    %v692 = vand.u32 %v691, 4294901760
    %693 = vmatpush1.msra.mxu0 %v692
    %694 = vmatprep.subr.mxu0 0.0
    %695 = vmatpush2.msra.mxu0 0.0
    %696 = vmatprep.subr.mxu0 0.0
    %697 = vmatpush2.msra.mxu0 0.0
    %698 = vmatprep.subr.mxu0 0.0
    %699 = vmatpush2.msra.mxu0 0.0
    %700 = vmatprep.subr.mxu0 0.0
    %701 = vmatpush2.msra.mxu0 0.0
    %702 = vmatprep.subr.mxu0 0.0
    %703 = vmatpush2.msra.mxu0 0.0
    %704 = vmatprep.subr.mxu0 0.0
    %705 = vmatpush2.msra.mxu0 0.0
    %706 = vmatprep.subr.mxu0 0.0
    %707 = vmatpush2.msra.mxu0 0.0
    %708 = vmatprep.subr.mxu0 0.0
    %709 = vmatpush2.msra.mxu0 0.0
    %710 = vmatprep.subr.mxu0 0.0
    %711 = vmatpush2.msra.mxu0 0.0
    %712 = vmatprep.subr.mxu0 0.0
    %713 = vmatpush2.msra.mxu0 0.0
    %714 = vmatprep.subr.mxu0 0.0
    %715 = vmatpush2.msra.mxu0 0.0
    %716 = vmatprep.subr.mxu0 0.0
    %717 = vmatpush2.msra.mxu0 0.0
    %718 = vmatprep.subr.mxu0 0.0
    %719 = vmatpush2.msra.mxu0 0.0
    %720 = vmatprep.subr.mxu0 0.0
    %721 = vmatpush2.msra.mxu0 0.0
    %722 = vmatprep.subr.mxu0 0.0
    %723 = vmatpush2.msra.mxu0 0.0
    %724 = vmatprep.subr.mxu0 0.0
    %725 = vmatpush2.msra.mxu0 0.0
    %726 = vmatprep.mubr.f32.mxu0 0.0
    %v727 = vand.u32 %v70, 4294901760
    %728 = vmatmul.mubr.f32.gmra.mxu0 %v727
    %v729 = vpop.f32.mrf.mxu0
    %v730 = vadd.f32 %v639, %v729
    %v731 = vpop.f32.mrf.mxu0
    %732 = vdwg.mxu0
    %733 = vmatprep.subr.mxu0 0.0
    %734 = vmatpush1.msra.mxu0 0.0
    %735 = vmatprep.subr.mxu0 0.0
    %736 = vmatpush1.msra.mxu0 0.0
    %737 = vmatprep.subr.mxu0 0.0
    %738 = vmatpush1.msra.mxu0 0.0
    %739 = vmatprep.subr.mxu0 0.0
    %740 = vmatpush1.msra.mxu0 0.0
    %741 = vmatprep.subr.mxu0 0.0
    %742 = vmatpush1.msra.mxu0 0.0
    %743 = vmatprep.subr.mxu0 0.0
    %744 = vmatpush1.msra.mxu0 0.0
    %745 = vmatprep.subr.mxu0 0.0
    %746 = vmatpush1.msra.mxu0 0.0
    %747 = vmatprep.subr.mxu0 0.0
    %748 = vmatpush1.msra.mxu0 0.0
    %749 = vmatprep.subr.mxu0 0.0
    %750 = vmatpush1.msra.mxu0 0.0
    %751 = vmatprep.subr.mxu0 0.0
    %752 = vmatpush1.msra.mxu0 0.0
    %753 = vmatprep.subr.mxu0 0.0
    %754 = vmatpush1.msra.mxu0 0.0
    %755 = vmatprep.subr.mxu0 0.0
    %756 = vmatpush1.msra.mxu0 0.0
    %757 = vmatprep.subr.mxu0 0.0
    %v758 = vand.u32 %v47, 4294901760
    %v759 = vsub.f32 %v47, %v758
    %760 = vmatpush1.msra.mxu0 %v759
    %761 = vmatprep.subr.mxu0 0.0
    %v762 = vand.u32 %v46, 4294901760
    %v763 = vsub.f32 %v46, %v762
    %764 = vmatpush1.msra.mxu0 %v763
    %765 = vmatprep.subr.mxu0 0.0
    %v766 = vand.u32 %v45, 4294901760
    %v767 = vsub.f32 %v45, %v766
    %768 = vmatpush1.msra.mxu0 %v767
    %769 = vmatprep.subr.mxu0 0.0
    %v770 = vand.u32 %v44, 4294901760
    %v771 = vsub.f32 %v44, %v770
    %772 = vmatpush1.msra.mxu0 %v771
    %773 = vmatprep.subr.mxu0 0.0
    %774 = vmatpush2.msra.mxu0 0.0
    %775 = vmatprep.subr.mxu0 0.0
    %776 = vmatpush2.msra.mxu0 0.0
    %777 = vmatprep.subr.mxu0 0.0
    %778 = vmatpush2.msra.mxu0 0.0
    %779 = vmatprep.subr.mxu0 0.0
    %780 = vmatpush2.msra.mxu0 0.0
    %781 = vmatprep.subr.mxu0 0.0
    %782 = vmatpush2.msra.mxu0 0.0
    %783 = vmatprep.subr.mxu0 0.0
    %784 = vmatpush2.msra.mxu0 0.0
    %785 = vmatprep.subr.mxu0 0.0
    %786 = vmatpush2.msra.mxu0 0.0
    %787 = vmatprep.subr.mxu0 0.0
    %788 = vmatpush2.msra.mxu0 0.0
    %789 = vmatprep.subr.mxu0 0.0
    %790 = vmatpush2.msra.mxu0 0.0
    %791 = vmatprep.subr.mxu0 0.0
    %792 = vmatpush2.msra.mxu0 0.0
    %793 = vmatprep.subr.mxu0 0.0
    %794 = vmatpush2.msra.mxu0 0.0
    %795 = vmatprep.subr.mxu0 0.0
    %796 = vmatpush2.msra.mxu0 0.0
    %797 = vmatprep.subr.mxu0 0.0
    %798 = vmatpush2.msra.mxu0 0.0
    %799 = vmatprep.subr.mxu0 0.0
    %800 = vmatpush2.msra.mxu0 0.0
    %801 = vmatprep.subr.mxu0 0.0
    %802 = vmatpush2.msra.mxu0 0.0
    %803 = vmatprep.subr.mxu0 0.0
    %804 = vmatpush2.msra.mxu0 0.0
    %805 = vmatprep.mubr.f32.mxu0 0.0
    %v806 = vand.u32 %v70, 4294901760
    %v807 = vsub.f32 %v70, %v806
    %808 = vmatmul.mubr.f32.gmra.mxu0 %v807
    %v809 = vpop.f32.mrf.mxu0
    %v810 = vadd.f32 %v730, %v809
    %v811 = vpop.f32.mrf.mxu0
    %812 = vdwg.mxu0
    %813 = vmatprep.subr.mxu0 0.0
    %814 = vmatpush1.msra.mxu0 0.0
    %815 = vmatprep.subr.mxu0 0.0
    %816 = vmatpush1.msra.mxu0 0.0
    %817 = vmatprep.subr.mxu0 0.0
    %818 = vmatpush1.msra.mxu0 0.0
    %819 = vmatprep.subr.mxu0 0.0
    %820 = vmatpush1.msra.mxu0 0.0
    %821 = vmatprep.subr.mxu0 0.0
    %822 = vmatpush1.msra.mxu0 0.0
    %823 = vmatprep.subr.mxu0 0.0
    %824 = vmatpush1.msra.mxu0 0.0
    %825 = vmatprep.subr.mxu0 0.0
    %826 = vmatpush1.msra.mxu0 0.0
    %827 = vmatprep.subr.mxu0 0.0
    %828 = vmatpush1.msra.mxu0 0.0
    %829 = vmatprep.subr.mxu0 0.0
    %830 = vmatpush1.msra.mxu0 0.0
    %831 = vmatprep.subr.mxu0 0.0
    %832 = vmatpush1.msra.mxu0 0.0
    %833 = vmatprep.subr.mxu0 0.0
    %834 = vmatpush1.msra.mxu0 0.0
    %835 = vmatprep.subr.mxu0 0.0
    %836 = vmatpush1.msra.mxu0 0.0
    %837 = vmatprep.subr.mxu0 0.0
    %v838 = vand.u32 %v47, 4294901760
    %839 = vmatpush1.msra.mxu0 %v838
    %840 = vmatprep.subr.mxu0 0.0
    %v841 = vand.u32 %v46, 4294901760
    %842 = vmatpush1.msra.mxu0 %v841
    %843 = vmatprep.subr.mxu0 0.0
    %v844 = vand.u32 %v45, 4294901760
    %845 = vmatpush1.msra.mxu0 %v844
    %846 = vmatprep.subr.mxu0 0.0
    %v847 = vand.u32 %v44, 4294901760
    %848 = vmatpush1.msra.mxu0 %v847
    %849 = vmatprep.subr.mxu0 0.0
    %850 = vmatpush2.msra.mxu0 0.0
    %851 = vmatprep.subr.mxu0 0.0
    %852 = vmatpush2.msra.mxu0 0.0
    %853 = vmatprep.subr.mxu0 0.0
    %854 = vmatpush2.msra.mxu0 0.0
    %855 = vmatprep.subr.mxu0 0.0
    %856 = vmatpush2.msra.mxu0 0.0
    %857 = vmatprep.subr.mxu0 0.0
    %858 = vmatpush2.msra.mxu0 0.0
    %859 = vmatprep.subr.mxu0 0.0
    %860 = vmatpush2.msra.mxu0 0.0
    %861 = vmatprep.subr.mxu0 0.0
    %862 = vmatpush2.msra.mxu0 0.0
    %863 = vmatprep.subr.mxu0 0.0
    %864 = vmatpush2.msra.mxu0 0.0
    %865 = vmatprep.subr.mxu0 0.0
    %866 = vmatpush2.msra.mxu0 0.0
    %867 = vmatprep.subr.mxu0 0.0
    %868 = vmatpush2.msra.mxu0 0.0
    %869 = vmatprep.subr.mxu0 0.0
    %870 = vmatpush2.msra.mxu0 0.0
    %871 = vmatprep.subr.mxu0 0.0
    %872 = vmatpush2.msra.mxu0 0.0
    %873 = vmatprep.subr.mxu0 0.0
    %874 = vmatpush2.msra.mxu0 0.0
    %875 = vmatprep.subr.mxu0 0.0
    %876 = vmatpush2.msra.mxu0 0.0
    %877 = vmatprep.subr.mxu0 0.0
    %878 = vmatpush2.msra.mxu0 0.0
    %879 = vmatprep.subr.mxu0 0.0
    %880 = vmatpush2.msra.mxu0 0.0
    %881 = vmatprep.mubr.f32.mxu0 0.0
    %v882 = vand.u32 %v70, 4294901760
    %v883 = vsub.f32 %v70, %v882
    %v884 = vand.u32 %v883, 4294901760
    %885 = vmatmul.mubr.f32.gmra.mxu0 %v884
    %v886 = vpop.f32.mrf.mxu0
    %v887 = vadd.f32 %v810, %v886
    %v888 = vpop.f32.mrf.mxu0
    %889 = vdwg.mxu0
    %890 = vmatprep.subr.mxu0 0.0
    %891 = vmatpush1.msra.mxu0 0.0
    %892 = vmatprep.subr.mxu0 0.0
    %893 = vmatpush1.msra.mxu0 0.0
    %894 = vmatprep.subr.mxu0 0.0
    %895 = vmatpush1.msra.mxu0 0.0
    %896 = vmatprep.subr.mxu0 0.0
    %897 = vmatpush1.msra.mxu0 0.0
    %898 = vmatprep.subr.mxu0 0.0
    %899 = vmatpush1.msra.mxu0 0.0
    %900 = vmatprep.subr.mxu0 0.0
    %901 = vmatpush1.msra.mxu0 0.0
    %902 = vmatprep.subr.mxu0 0.0
    %903 = vmatpush1.msra.mxu0 0.0
    %904 = vmatprep.subr.mxu0 0.0
    %905 = vmatpush1.msra.mxu0 0.0
    %906 = vmatprep.subr.mxu0 0.0
    %907 = vmatpush1.msra.mxu0 0.0
    %908 = vmatprep.subr.mxu0 0.0
    %909 = vmatpush1.msra.mxu0 0.0
    %910 = vmatprep.subr.mxu0 0.0
    %911 = vmatpush1.msra.mxu0 0.0
    %912 = vmatprep.subr.mxu0 0.0
    %913 = vmatpush1.msra.mxu0 0.0
    %914 = vmatprep.subr.mxu0 0.0
    %v915 = vand.u32 %v47, 4294901760
    %v916 = vsub.f32 %v47, %v915
    %v917 = vand.u32 %v916, 4294901760
    %918 = vmatpush1.msra.mxu0 %v917
    %919 = vmatprep.subr.mxu0 0.0
    %v920 = vand.u32 %v46, 4294901760
    %v921 = vsub.f32 %v46, %v920
    %v922 = vand.u32 %v921, 4294901760
    %923 = vmatpush1.msra.mxu0 %v922
    %924 = vmatprep.subr.mxu0 0.0
    %v925 = vand.u32 %v45, 4294901760
    %v926 = vsub.f32 %v45, %v925
    %v927 = vand.u32 %v926, 4294901760
    %928 = vmatpush1.msra.mxu0 %v927
    %929 = vmatprep.subr.mxu0 0.0
    %v930 = vand.u32 %v44, 4294901760
    %v931 = vsub.f32 %v44, %v930
    %v932 = vand.u32 %v931, 4294901760
    %933 = vmatpush1.msra.mxu0 %v932
    %934 = vmatprep.subr.mxu0 0.0
    %935 = vmatpush2.msra.mxu0 0.0
    %936 = vmatprep.subr.mxu0 0.0
    %937 = vmatpush2.msra.mxu0 0.0
    %938 = vmatprep.subr.mxu0 0.0
    %939 = vmatpush2.msra.mxu0 0.0
    %940 = vmatprep.subr.mxu0 0.0
    %941 = vmatpush2.msra.mxu0 0.0
    %942 = vmatprep.subr.mxu0 0.0
    %943 = vmatpush2.msra.mxu0 0.0
    %944 = vmatprep.subr.mxu0 0.0
    %945 = vmatpush2.msra.mxu0 0.0
    %946 = vmatprep.subr.mxu0 0.0
    %947 = vmatpush2.msra.mxu0 0.0
    %948 = vmatprep.subr.mxu0 0.0
    %949 = vmatpush2.msra.mxu0 0.0
    %950 = vmatprep.subr.mxu0 0.0
    %951 = vmatpush2.msra.mxu0 0.0
    %952 = vmatprep.subr.mxu0 0.0
    %953 = vmatpush2.msra.mxu0 0.0
    %954 = vmatprep.subr.mxu0 0.0
    %955 = vmatpush2.msra.mxu0 0.0
    %956 = vmatprep.subr.mxu0 0.0
    %957 = vmatpush2.msra.mxu0 0.0
    %958 = vmatprep.subr.mxu0 0.0
    %959 = vmatpush2.msra.mxu0 0.0
    %960 = vmatprep.subr.mxu0 0.0
    %961 = vmatpush2.msra.mxu0 0.0
    %962 = vmatprep.subr.mxu0 0.0
    %963 = vmatpush2.msra.mxu0 0.0
    %964 = vmatprep.subr.mxu0 0.0
    %965 = vmatpush2.msra.mxu0 0.0
    %966 = vmatprep.mubr.f32.mxu0 0.0
    %v967 = vand.u32 %v70, 4294901760
    %968 = vmatmul.mubr.f32.gmra.mxu0 %v967
    %v969 = vpop.f32.mrf.mxu0
    %v970 = vadd.f32 %v887, %v969
    %v971 = vpop.f32.mrf.mxu0
    %972 = vdwg.mxu0
    %973 = vmatprep.subr.mxu0 0.0
    %974 = vmatpush1.msra.mxu0 0.0
    %975 = vmatprep.subr.mxu0 0.0
    %976 = vmatpush1.msra.mxu0 0.0
    %977 = vmatprep.subr.mxu0 0.0
    %978 = vmatpush1.msra.mxu0 0.0
    %979 = vmatprep.subr.mxu0 0.0
    %980 = vmatpush1.msra.mxu0 0.0
    %981 = vmatprep.subr.mxu0 0.0
    %982 = vmatpush1.msra.mxu0 0.0
    %983 = vmatprep.subr.mxu0 0.0
    %984 = vmatpush1.msra.mxu0 0.0
    %985 = vmatprep.subr.mxu0 0.0
    %986 = vmatpush1.msra.mxu0 0.0
    %987 = vmatprep.subr.mxu0 0.0
    %988 = vmatpush1.msra.mxu0 0.0
    %989 = vmatprep.subr.mxu0 0.0
    %990 = vmatpush1.msra.mxu0 0.0
    %991 = vmatprep.subr.mxu0 0.0
    %992 = vmatpush1.msra.mxu0 0.0
    %993 = vmatprep.subr.mxu0 0.0
    %994 = vmatpush1.msra.mxu0 0.0
    %995 = vmatprep.subr.mxu0 0.0
    %996 = vmatpush1.msra.mxu0 0.0
    %997 = vmatprep.subr.mxu0 0.0
    %v998 = vand.u32 %v47, 4294901760
    %999 = vmatpush1.msra.mxu0 %v998
    %1000 = vmatprep.subr.mxu0 0.0
    %v1001 = vand.u32 %v46, 4294901760
    %1002 = vmatpush1.msra.mxu0 %v1001
    %1003 = vmatprep.subr.mxu0 0.0
    %v1004 = vand.u32 %v45, 4294901760
    %1005 = vmatpush1.msra.mxu0 %v1004
    %1006 = vmatprep.subr.mxu0 0.0
    %v1007 = vand.u32 %v44, 4294901760
    %1008 = vmatpush1.msra.mxu0 %v1007
    %1009 = vmatprep.subr.mxu0 0.0
    %1010 = vmatpush2.msra.mxu0 0.0
    %1011 = vmatprep.subr.mxu0 0.0
    %1012 = vmatpush2.msra.mxu0 0.0
    %1013 = vmatprep.subr.mxu0 0.0
    %1014 = vmatpush2.msra.mxu0 0.0
    %1015 = vmatprep.subr.mxu0 0.0
    %1016 = vmatpush2.msra.mxu0 0.0
    %1017 = vmatprep.subr.mxu0 0.0
    %1018 = vmatpush2.msra.mxu0 0.0
    %1019 = vmatprep.subr.mxu0 0.0
    %1020 = vmatpush2.msra.mxu0 0.0
    %1021 = vmatprep.subr.mxu0 0.0
    %1022 = vmatpush2.msra.mxu0 0.0
    %1023 = vmatprep.subr.mxu0 0.0
    %1024 = vmatpush2.msra.mxu0 0.0
    %1025 = vmatprep.subr.mxu0 0.0
    %1026 = vmatpush2.msra.mxu0 0.0
    %1027 = vmatprep.subr.mxu0 0.0
    %1028 = vmatpush2.msra.mxu0 0.0
    %1029 = vmatprep.subr.mxu0 0.0
    %1030 = vmatpush2.msra.mxu0 0.0
    %1031 = vmatprep.subr.mxu0 0.0
    %1032 = vmatpush2.msra.mxu0 0.0
    %1033 = vmatprep.subr.mxu0 0.0
    %1034 = vmatpush2.msra.mxu0 0.0
    %1035 = vmatprep.subr.mxu0 0.0
    %1036 = vmatpush2.msra.mxu0 0.0
    %1037 = vmatprep.subr.mxu0 0.0
    %1038 = vmatpush2.msra.mxu0 0.0
    %1039 = vmatprep.subr.mxu0 0.0
    %1040 = vmatpush2.msra.mxu0 0.0
    %1041 = vmatprep.mubr.f32.mxu0 0.0
    %v1042 = vand.u32 %v70, 4294901760
    %1043 = vmatmul.mubr.f32.gmra.mxu0 %v1042
    %v1044 = vpop.f32.mrf.mxu0
    %v1045 = vadd.f32 %v970, %v1044
    %v1046 = vpop.f32.mrf.mxu0
    %1047 = vdwg.mxu0
    %v1048 = vmax.f32 %v1045, -1.0
    %v1049 = vmin.f32 %v1048, 1.0
    %v1050 = vld [vmem:[%s5] sm:$0xff]
    %v1051 = vmul.f32 %v558, %v1050
    %v1052 = vld [vmem:[%s5 + $0x8] sm:$0xff]
    %v1053 = vmul.f32 %v1049, %v1052
    %v1054 = vlaneseq
    %v1055 = vshrl.u32 %v1054, 7
    %v1056 = vsub.s32 0, %v1055
    %v1057 = vrot.slane %v62, %v1056
    %v1059 = vsel %vm68, %v1051, 0
    %1061 = vmatprep.subr.mxu0 0.0
    %1062 = vmatpush1.msra.mxu0 0.0
    %1063 = vmatprep.subr.mxu0 0.0
    %1064 = vmatpush1.msra.mxu0 0.0
    %1065 = vmatprep.subr.mxu0 0.0
    %1066 = vmatpush1.msra.mxu0 0.0
    %1067 = vmatprep.subr.mxu0 0.0
    %1068 = vmatpush1.msra.mxu0 0.0
    %1069 = vmatprep.subr.mxu0 0.0
    %1070 = vmatpush1.msra.mxu0 0.0
    %1071 = vmatprep.subr.mxu0 0.0
    %1072 = vmatpush1.msra.mxu0 0.0
    %1073 = vmatprep.subr.mxu0 0.0
    %1074 = vmatpush1.msra.mxu0 0.0
    %1075 = vmatprep.subr.mxu0 0.0
    %1076 = vmatpush1.msra.mxu0 0.0
    %1077 = vmatprep.subr.mxu0 0.0
    %1078 = vmatpush1.msra.mxu0 0.0
    %1079 = vmatprep.subr.mxu0 0.0
    %1080 = vmatpush1.msra.mxu0 0.0
    %1081 = vmatprep.subr.mxu0 0.0
    %1082 = vmatpush1.msra.mxu0 0.0
    %1083 = vmatprep.subr.mxu0 0.0
    %1084 = vmatpush1.msra.mxu0 0.0
    %1085 = vmatprep.subr.mxu0 0.0
    %v1086 = vand.u32 %v51, 4294901760
    %1087 = vmatpush1.msra.mxu0 %v1086
    %1088 = vmatprep.subr.mxu0 0.0
    %v1089 = vand.u32 %v50, 4294901760
    %1090 = vmatpush1.msra.mxu0 %v1089
    %1091 = vmatprep.subr.mxu0 0.0
    %v1092 = vand.u32 %v49, 4294901760
    %1093 = vmatpush1.msra.mxu0 %v1092
    %1094 = vmatprep.subr.mxu0 0.0
    %v1095 = vand.u32 %v48, 4294901760
    %1096 = vmatpush1.msra.mxu0 %v1095
    %1097 = vmatprep.subr.mxu0 0.0
    %1098 = vmatpush2.msra.mxu0 0.0
    %1099 = vmatprep.subr.mxu0 0.0
    %1100 = vmatpush2.msra.mxu0 0.0
    %1101 = vmatprep.subr.mxu0 0.0
    %1102 = vmatpush2.msra.mxu0 0.0
    %1103 = vmatprep.subr.mxu0 0.0
    %1104 = vmatpush2.msra.mxu0 0.0
    %1105 = vmatprep.subr.mxu0 0.0
    %1106 = vmatpush2.msra.mxu0 0.0
    %1107 = vmatprep.subr.mxu0 0.0
    %1108 = vmatpush2.msra.mxu0 0.0
    %1109 = vmatprep.subr.mxu0 0.0
    %1110 = vmatpush2.msra.mxu0 0.0
    %1111 = vmatprep.subr.mxu0 0.0
    %1112 = vmatpush2.msra.mxu0 0.0
    %1113 = vmatprep.subr.mxu0 0.0
    %1114 = vmatpush2.msra.mxu0 0.0
    %1115 = vmatprep.subr.mxu0 0.0
    %1116 = vmatpush2.msra.mxu0 0.0
    %1117 = vmatprep.subr.mxu0 0.0
    %1118 = vmatpush2.msra.mxu0 0.0
    %1119 = vmatprep.subr.mxu0 0.0
    %1120 = vmatpush2.msra.mxu0 0.0
    %1121 = vmatprep.subr.mxu0 0.0
    %1122 = vmatpush2.msra.mxu0 0.0
    %1123 = vmatprep.subr.mxu0 0.0
    %1124 = vmatpush2.msra.mxu0 0.0
    %1125 = vmatprep.subr.mxu0 0.0
    %1126 = vmatpush2.msra.mxu0 0.0
    %1127 = vmatprep.subr.mxu0 0.0
    %1128 = vmatpush2.msra.mxu0 0.0
    %1129 = vmatprep.mubr.f32.mxu0 0.0
    %v1130 = vand.u32 %v1059, 4294901760
    %v1131 = vsub.f32 %v1059, %v1130
    %v1132 = vand.u32 %v1131, 4294901760
    %v1133 = vsub.f32 %v1131, %v1132
    %v1134 = vand.u32 %v1133, 4294901760
    %1135 = vmatmul.mubr.f32.gmra.mxu0 %v1134
    %v1136 = vpop.f32.mrf.mxu0
    %v1137 = vadd.f32 %v1057, %v1136
    %v1138 = vpop.f32.mrf.mxu0
    %1139 = vdwg.mxu0
    %1140 = vmatprep.subr.mxu0 0.0
    %1141 = vmatpush1.msra.mxu0 0.0
    %1142 = vmatprep.subr.mxu0 0.0
    %1143 = vmatpush1.msra.mxu0 0.0
    %1144 = vmatprep.subr.mxu0 0.0
    %1145 = vmatpush1.msra.mxu0 0.0
    %1146 = vmatprep.subr.mxu0 0.0
    %1147 = vmatpush1.msra.mxu0 0.0
    %1148 = vmatprep.subr.mxu0 0.0
    %1149 = vmatpush1.msra.mxu0 0.0
    %1150 = vmatprep.subr.mxu0 0.0
    %1151 = vmatpush1.msra.mxu0 0.0
    %1152 = vmatprep.subr.mxu0 0.0
    %1153 = vmatpush1.msra.mxu0 0.0
    %1154 = vmatprep.subr.mxu0 0.0
    %1155 = vmatpush1.msra.mxu0 0.0
    %1156 = vmatprep.subr.mxu0 0.0
    %1157 = vmatpush1.msra.mxu0 0.0
    %1158 = vmatprep.subr.mxu0 0.0
    %1159 = vmatpush1.msra.mxu0 0.0
    %1160 = vmatprep.subr.mxu0 0.0
    %1161 = vmatpush1.msra.mxu0 0.0
    %1162 = vmatprep.subr.mxu0 0.0
    %1163 = vmatpush1.msra.mxu0 0.0
    %1164 = vmatprep.subr.mxu0 0.0
    %v1165 = vand.u32 %v51, 4294901760
    %v1166 = vsub.f32 %v51, %v1165
    %v1167 = vand.u32 %v1166, 4294901760
    %v1168 = vsub.f32 %v1166, %v1167
    %v1169 = vand.u32 %v1168, 4294901760
    %1170 = vmatpush1.msra.mxu0 %v1169
    %1171 = vmatprep.subr.mxu0 0.0
    %v1172 = vand.u32 %v50, 4294901760
    %v1173 = vsub.f32 %v50, %v1172
    %v1174 = vand.u32 %v1173, 4294901760
    %v1175 = vsub.f32 %v1173, %v1174
    %v1176 = vand.u32 %v1175, 4294901760
    %1177 = vmatpush1.msra.mxu0 %v1176
    %1178 = vmatprep.subr.mxu0 0.0
    %v1179 = vand.u32 %v49, 4294901760
    %v1180 = vsub.f32 %v49, %v1179
    %v1181 = vand.u32 %v1180, 4294901760
    %v1182 = vsub.f32 %v1180, %v1181
    %v1183 = vand.u32 %v1182, 4294901760
    %1184 = vmatpush1.msra.mxu0 %v1183
    %1185 = vmatprep.subr.mxu0 0.0
    %v1186 = vand.u32 %v48, 4294901760
    %v1187 = vsub.f32 %v48, %v1186
    %v1188 = vand.u32 %v1187, 4294901760
    %v1189 = vsub.f32 %v1187, %v1188
    %v1190 = vand.u32 %v1189, 4294901760
    %1191 = vmatpush1.msra.mxu0 %v1190
    %1192 = vmatprep.subr.mxu0 0.0
    %1193 = vmatpush2.msra.mxu0 0.0
    %1194 = vmatprep.subr.mxu0 0.0
    %1195 = vmatpush2.msra.mxu0 0.0
    %1196 = vmatprep.subr.mxu0 0.0
    %1197 = vmatpush2.msra.mxu0 0.0
    %1198 = vmatprep.subr.mxu0 0.0
    %1199 = vmatpush2.msra.mxu0 0.0
    %1200 = vmatprep.subr.mxu0 0.0
    %1201 = vmatpush2.msra.mxu0 0.0
    %1202 = vmatprep.subr.mxu0 0.0
    %1203 = vmatpush2.msra.mxu0 0.0
    %1204 = vmatprep.subr.mxu0 0.0
    %1205 = vmatpush2.msra.mxu0 0.0
    %1206 = vmatprep.subr.mxu0 0.0
    %1207 = vmatpush2.msra.mxu0 0.0
    %1208 = vmatprep.subr.mxu0 0.0
    %1209 = vmatpush2.msra.mxu0 0.0
    %1210 = vmatprep.subr.mxu0 0.0
    %1211 = vmatpush2.msra.mxu0 0.0
    %1212 = vmatprep.subr.mxu0 0.0
    %1213 = vmatpush2.msra.mxu0 0.0
    %1214 = vmatprep.subr.mxu0 0.0
    %1215 = vmatpush2.msra.mxu0 0.0
    %1216 = vmatprep.subr.mxu0 0.0
    %1217 = vmatpush2.msra.mxu0 0.0
    %1218 = vmatprep.subr.mxu0 0.0
    %1219 = vmatpush2.msra.mxu0 0.0
    %1220 = vmatprep.subr.mxu0 0.0
    %1221 = vmatpush2.msra.mxu0 0.0
    %1222 = vmatprep.subr.mxu0 0.0
    %1223 = vmatpush2.msra.mxu0 0.0
    %1224 = vmatprep.mubr.f32.mxu0 0.0
    %v1225 = vand.u32 %v1059, 4294901760
    %1226 = vmatmul.mubr.f32.gmra.mxu0 %v1225
    %v1227 = vpop.f32.mrf.mxu0
    %v1228 = vadd.f32 %v1137, %v1227
    %v1229 = vpop.f32.mrf.mxu0
    %1230 = vdwg.mxu0
    %1231 = vmatprep.subr.mxu0 0.0
    %1232 = vmatpush1.msra.mxu0 0.0
    %1233 = vmatprep.subr.mxu0 0.0
    %1234 = vmatpush1.msra.mxu0 0.0
    %1235 = vmatprep.subr.mxu0 0.0
    %1236 = vmatpush1.msra.mxu0 0.0
    %1237 = vmatprep.subr.mxu0 0.0
    %1238 = vmatpush1.msra.mxu0 0.0
    %1239 = vmatprep.subr.mxu0 0.0
    %1240 = vmatpush1.msra.mxu0 0.0
    %1241 = vmatprep.subr.mxu0 0.0
    %1242 = vmatpush1.msra.mxu0 0.0
    %1243 = vmatprep.subr.mxu0 0.0
    %1244 = vmatpush1.msra.mxu0 0.0
    %1245 = vmatprep.subr.mxu0 0.0
    %1246 = vmatpush1.msra.mxu0 0.0
    %1247 = vmatprep.subr.mxu0 0.0
    %1248 = vmatpush1.msra.mxu0 0.0
    %1249 = vmatprep.subr.mxu0 0.0
    %1250 = vmatpush1.msra.mxu0 0.0
    %1251 = vmatprep.subr.mxu0 0.0
    %1252 = vmatpush1.msra.mxu0 0.0
    %1253 = vmatprep.subr.mxu0 0.0
    %1254 = vmatpush1.msra.mxu0 0.0
    %1255 = vmatprep.subr.mxu0 0.0
    %v1256 = vand.u32 %v51, 4294901760
    %v1257 = vsub.f32 %v51, %v1256
    %1258 = vmatpush1.msra.mxu0 %v1257
    %1259 = vmatprep.subr.mxu0 0.0
    %v1260 = vand.u32 %v50, 4294901760
    %v1261 = vsub.f32 %v50, %v1260
    %1262 = vmatpush1.msra.mxu0 %v1261
    %1263 = vmatprep.subr.mxu0 0.0
    %v1264 = vand.u32 %v49, 4294901760
    %v1265 = vsub.f32 %v49, %v1264
    %1266 = vmatpush1.msra.mxu0 %v1265
    %1267 = vmatprep.subr.mxu0 0.0
    %v1268 = vand.u32 %v48, 4294901760
    %v1269 = vsub.f32 %v48, %v1268
    %1270 = vmatpush1.msra.mxu0 %v1269
    %1271 = vmatprep.subr.mxu0 0.0
    %1272 = vmatpush2.msra.mxu0 0.0
    %1273 = vmatprep.subr.mxu0 0.0
    %1274 = vmatpush2.msra.mxu0 0.0
    %1275 = vmatprep.subr.mxu0 0.0
    %1276 = vmatpush2.msra.mxu0 0.0
    %1277 = vmatprep.subr.mxu0 0.0
    %1278 = vmatpush2.msra.mxu0 0.0
    %1279 = vmatprep.subr.mxu0 0.0
    %1280 = vmatpush2.msra.mxu0 0.0
    %1281 = vmatprep.subr.mxu0 0.0
    %1282 = vmatpush2.msra.mxu0 0.0
    %1283 = vmatprep.subr.mxu0 0.0
    %1284 = vmatpush2.msra.mxu0 0.0
    %1285 = vmatprep.subr.mxu0 0.0
    %1286 = vmatpush2.msra.mxu0 0.0
    %1287 = vmatprep.subr.mxu0 0.0
    %1288 = vmatpush2.msra.mxu0 0.0
    %1289 = vmatprep.subr.mxu0 0.0
    %1290 = vmatpush2.msra.mxu0 0.0
    %1291 = vmatprep.subr.mxu0 0.0
    %1292 = vmatpush2.msra.mxu0 0.0
    %1293 = vmatprep.subr.mxu0 0.0
    %1294 = vmatpush2.msra.mxu0 0.0
    %1295 = vmatprep.subr.mxu0 0.0
    %1296 = vmatpush2.msra.mxu0 0.0
    %1297 = vmatprep.subr.mxu0 0.0
    %1298 = vmatpush2.msra.mxu0 0.0
    %1299 = vmatprep.subr.mxu0 0.0
    %1300 = vmatpush2.msra.mxu0 0.0
    %1301 = vmatprep.subr.mxu0 0.0
    %1302 = vmatpush2.msra.mxu0 0.0
    %1303 = vmatprep.mubr.f32.mxu0 0.0
    %v1304 = vand.u32 %v1059, 4294901760
    %v1305 = vsub.f32 %v1059, %v1304
    %1306 = vmatmul.mubr.f32.gmra.mxu0 %v1305
    %v1307 = vpop.f32.mrf.mxu0
    %v1308 = vadd.f32 %v1228, %v1307
    %v1309 = vpop.f32.mrf.mxu0
    %1310 = vdwg.mxu0
    %1311 = vmatprep.subr.mxu0 0.0
    %1312 = vmatpush1.msra.mxu0 0.0
    %1313 = vmatprep.subr.mxu0 0.0
    %1314 = vmatpush1.msra.mxu0 0.0
    %1315 = vmatprep.subr.mxu0 0.0
    %1316 = vmatpush1.msra.mxu0 0.0
    %1317 = vmatprep.subr.mxu0 0.0
    %1318 = vmatpush1.msra.mxu0 0.0
    %1319 = vmatprep.subr.mxu0 0.0
    %1320 = vmatpush1.msra.mxu0 0.0
    %1321 = vmatprep.subr.mxu0 0.0
    %1322 = vmatpush1.msra.mxu0 0.0
    %1323 = vmatprep.subr.mxu0 0.0
    %1324 = vmatpush1.msra.mxu0 0.0
    %1325 = vmatprep.subr.mxu0 0.0
    %1326 = vmatpush1.msra.mxu0 0.0
    %1327 = vmatprep.subr.mxu0 0.0
    %1328 = vmatpush1.msra.mxu0 0.0
    %1329 = vmatprep.subr.mxu0 0.0
    %1330 = vmatpush1.msra.mxu0 0.0
    %1331 = vmatprep.subr.mxu0 0.0
    %1332 = vmatpush1.msra.mxu0 0.0
    %1333 = vmatprep.subr.mxu0 0.0
    %1334 = vmatpush1.msra.mxu0 0.0
    %1335 = vmatprep.subr.mxu0 0.0
    %v1336 = vand.u32 %v51, 4294901760
    %1337 = vmatpush1.msra.mxu0 %v1336
    %1338 = vmatprep.subr.mxu0 0.0
    %v1339 = vand.u32 %v50, 4294901760
    %1340 = vmatpush1.msra.mxu0 %v1339
    %1341 = vmatprep.subr.mxu0 0.0
    %v1342 = vand.u32 %v49, 4294901760
    %1343 = vmatpush1.msra.mxu0 %v1342
    %1344 = vmatprep.subr.mxu0 0.0
    %v1345 = vand.u32 %v48, 4294901760
    %1346 = vmatpush1.msra.mxu0 %v1345
    %1347 = vmatprep.subr.mxu0 0.0
    %1348 = vmatpush2.msra.mxu0 0.0
    %1349 = vmatprep.subr.mxu0 0.0
    %1350 = vmatpush2.msra.mxu0 0.0
    %1351 = vmatprep.subr.mxu0 0.0
    %1352 = vmatpush2.msra.mxu0 0.0
    %1353 = vmatprep.subr.mxu0 0.0
    %1354 = vmatpush2.msra.mxu0 0.0
    %1355 = vmatprep.subr.mxu0 0.0
    %1356 = vmatpush2.msra.mxu0 0.0
    %1357 = vmatprep.subr.mxu0 0.0
    %1358 = vmatpush2.msra.mxu0 0.0
    %1359 = vmatprep.subr.mxu0 0.0
    %1360 = vmatpush2.msra.mxu0 0.0
    %1361 = vmatprep.subr.mxu0 0.0
    %1362 = vmatpush2.msra.mxu0 0.0
    %1363 = vmatprep.subr.mxu0 0.0
    %1364 = vmatpush2.msra.mxu0 0.0
    %1365 = vmatprep.subr.mxu0 0.0
    %1366 = vmatpush2.msra.mxu0 0.0
    %1367 = vmatprep.subr.mxu0 0.0
    %1368 = vmatpush2.msra.mxu0 0.0
    %1369 = vmatprep.subr.mxu0 0.0
    %1370 = vmatpush2.msra.mxu0 0.0
    %1371 = vmatprep.subr.mxu0 0.0
    %1372 = vmatpush2.msra.mxu0 0.0
    %1373 = vmatprep.subr.mxu0 0.0
    %1374 = vmatpush2.msra.mxu0 0.0
    %1375 = vmatprep.subr.mxu0 0.0
    %1376 = vmatpush2.msra.mxu0 0.0
    %1377 = vmatprep.subr.mxu0 0.0
    %1378 = vmatpush2.msra.mxu0 0.0
    %1379 = vmatprep.mubr.f32.mxu0 0.0
    %v1380 = vand.u32 %v1059, 4294901760
    %v1381 = vsub.f32 %v1059, %v1380
    %v1382 = vand.u32 %v1381, 4294901760
    %1383 = vmatmul.mubr.f32.gmra.mxu0 %v1382
    %v1384 = vpop.f32.mrf.mxu0
    %v1385 = vadd.f32 %v1308, %v1384
    %v1386 = vpop.f32.mrf.mxu0
    %1387 = vdwg.mxu0
    %1388 = vmatprep.subr.mxu0 0.0
    %1389 = vmatpush1.msra.mxu0 0.0
    %1390 = vmatprep.subr.mxu0 0.0
    %1391 = vmatpush1.msra.mxu0 0.0
    %1392 = vmatprep.subr.mxu0 0.0
    %1393 = vmatpush1.msra.mxu0 0.0
    %1394 = vmatprep.subr.mxu0 0.0
    %1395 = vmatpush1.msra.mxu0 0.0
    %1396 = vmatprep.subr.mxu0 0.0
    %1397 = vmatpush1.msra.mxu0 0.0
    %1398 = vmatprep.subr.mxu0 0.0
    %1399 = vmatpush1.msra.mxu0 0.0
    %1400 = vmatprep.subr.mxu0 0.0
    %1401 = vmatpush1.msra.mxu0 0.0
    %1402 = vmatprep.subr.mxu0 0.0
    %1403 = vmatpush1.msra.mxu0 0.0
    %1404 = vmatprep.subr.mxu0 0.0
    %1405 = vmatpush1.msra.mxu0 0.0
    %1406 = vmatprep.subr.mxu0 0.0
    %1407 = vmatpush1.msra.mxu0 0.0
    %1408 = vmatprep.subr.mxu0 0.0
    %1409 = vmatpush1.msra.mxu0 0.0
    %1410 = vmatprep.subr.mxu0 0.0
    %1411 = vmatpush1.msra.mxu0 0.0
    %1412 = vmatprep.subr.mxu0 0.0
    %v1413 = vand.u32 %v51, 4294901760
    %v1414 = vsub.f32 %v51, %v1413
    %v1415 = vand.u32 %v1414, 4294901760
    %1416 = vmatpush1.msra.mxu0 %v1415
    %1417 = vmatprep.subr.mxu0 0.0
    %v1418 = vand.u32 %v50, 4294901760
    %v1419 = vsub.f32 %v50, %v1418
    %v1420 = vand.u32 %v1419, 4294901760
    %1421 = vmatpush1.msra.mxu0 %v1420
    %1422 = vmatprep.subr.mxu0 0.0
    %v1423 = vand.u32 %v49, 4294901760
    %v1424 = vsub.f32 %v49, %v1423
    %v1425 = vand.u32 %v1424, 4294901760
    %1426 = vmatpush1.msra.mxu0 %v1425
    %1427 = vmatprep.subr.mxu0 0.0
    %v1428 = vand.u32 %v48, 4294901760
    %v1429 = vsub.f32 %v48, %v1428
    %v1430 = vand.u32 %v1429, 4294901760
    %1431 = vmatpush1.msra.mxu0 %v1430
    %1432 = vmatprep.subr.mxu0 0.0
    %1433 = vmatpush2.msra.mxu0 0.0
    %1434 = vmatprep.subr.mxu0 0.0
    %1435 = vmatpush2.msra.mxu0 0.0
    %1436 = vmatprep.subr.mxu0 0.0
    %1437 = vmatpush2.msra.mxu0 0.0
    %1438 = vmatprep.subr.mxu0 0.0
    %1439 = vmatpush2.msra.mxu0 0.0
    %1440 = vmatprep.subr.mxu0 0.0
    %1441 = vmatpush2.msra.mxu0 0.0
    %1442 = vmatprep.subr.mxu0 0.0
    %1443 = vmatpush2.msra.mxu0 0.0
    %1444 = vmatprep.subr.mxu0 0.0
    %1445 = vmatpush2.msra.mxu0 0.0
    %1446 = vmatprep.subr.mxu0 0.0
    %1447 = vmatpush2.msra.mxu0 0.0
    %1448 = vmatprep.subr.mxu0 0.0
    %1449 = vmatpush2.msra.mxu0 0.0
    %1450 = vmatprep.subr.mxu0 0.0
    %1451 = vmatpush2.msra.mxu0 0.0
    %1452 = vmatprep.subr.mxu0 0.0
    %1453 = vmatpush2.msra.mxu0 0.0
    %1454 = vmatprep.subr.mxu0 0.0
    %1455 = vmatpush2.msra.mxu0 0.0
    %1456 = vmatprep.subr.mxu0 0.0
    %1457 = vmatpush2.msra.mxu0 0.0
    %1458 = vmatprep.subr.mxu0 0.0
    %1459 = vmatpush2.msra.mxu0 0.0
    %1460 = vmatprep.subr.mxu0 0.0
    %1461 = vmatpush2.msra.mxu0 0.0
    %1462 = vmatprep.subr.mxu0 0.0
    %1463 = vmatpush2.msra.mxu0 0.0
    %1464 = vmatprep.mubr.f32.mxu0 0.0
    %v1465 = vand.u32 %v1059, 4294901760
    %1466 = vmatmul.mubr.f32.gmra.mxu0 %v1465
    %v1467 = vpop.f32.mrf.mxu0
    %v1468 = vadd.f32 %v1385, %v1467
    %v1469 = vpop.f32.mrf.mxu0
    %1470 = vdwg.mxu0
    %1471 = vmatprep.subr.mxu0 0.0
    %1472 = vmatpush1.msra.mxu0 0.0
    %1473 = vmatprep.subr.mxu0 0.0
    %1474 = vmatpush1.msra.mxu0 0.0
    %1475 = vmatprep.subr.mxu0 0.0
    %1476 = vmatpush1.msra.mxu0 0.0
    %1477 = vmatprep.subr.mxu0 0.0
    %1478 = vmatpush1.msra.mxu0 0.0
    %1479 = vmatprep.subr.mxu0 0.0
    %1480 = vmatpush1.msra.mxu0 0.0
    %1481 = vmatprep.subr.mxu0 0.0
    %1482 = vmatpush1.msra.mxu0 0.0
    %1483 = vmatprep.subr.mxu0 0.0
    %1484 = vmatpush1.msra.mxu0 0.0
    %1485 = vmatprep.subr.mxu0 0.0
    %1486 = vmatpush1.msra.mxu0 0.0
    %1487 = vmatprep.subr.mxu0 0.0
    %1488 = vmatpush1.msra.mxu0 0.0
    %1489 = vmatprep.subr.mxu0 0.0
    %1490 = vmatpush1.msra.mxu0 0.0
    %1491 = vmatprep.subr.mxu0 0.0
    %1492 = vmatpush1.msra.mxu0 0.0
    %1493 = vmatprep.subr.mxu0 0.0
    %1494 = vmatpush1.msra.mxu0 0.0
    %1495 = vmatprep.subr.mxu0 0.0
    %v1496 = vand.u32 %v51, 4294901760
    %1497 = vmatpush1.msra.mxu0 %v1496
    %1498 = vmatprep.subr.mxu0 0.0
    %v1499 = vand.u32 %v50, 4294901760
    %1500 = vmatpush1.msra.mxu0 %v1499
    %1501 = vmatprep.subr.mxu0 0.0
    %v1502 = vand.u32 %v49, 4294901760
    %1503 = vmatpush1.msra.mxu0 %v1502
    %1504 = vmatprep.subr.mxu0 0.0
    %v1505 = vand.u32 %v48, 4294901760
    %1506 = vmatpush1.msra.mxu0 %v1505
    %1507 = vmatprep.subr.mxu0 0.0
    %1508 = vmatpush2.msra.mxu0 0.0
    %1509 = vmatprep.subr.mxu0 0.0
    %1510 = vmatpush2.msra.mxu0 0.0
    %1511 = vmatprep.subr.mxu0 0.0
    %1512 = vmatpush2.msra.mxu0 0.0
    %1513 = vmatprep.subr.mxu0 0.0
    %1514 = vmatpush2.msra.mxu0 0.0
    %1515 = vmatprep.subr.mxu0 0.0
    %1516 = vmatpush2.msra.mxu0 0.0
    %1517 = vmatprep.subr.mxu0 0.0
    %1518 = vmatpush2.msra.mxu0 0.0
    %1519 = vmatprep.subr.mxu0 0.0
    %1520 = vmatpush2.msra.mxu0 0.0
    %1521 = vmatprep.subr.mxu0 0.0
    %1522 = vmatpush2.msra.mxu0 0.0
    %1523 = vmatprep.subr.mxu0 0.0
    %1524 = vmatpush2.msra.mxu0 0.0
    %1525 = vmatprep.subr.mxu0 0.0
    %1526 = vmatpush2.msra.mxu0 0.0
    %1527 = vmatprep.subr.mxu0 0.0
    %1528 = vmatpush2.msra.mxu0 0.0
    %1529 = vmatprep.subr.mxu0 0.0
    %1530 = vmatpush2.msra.mxu0 0.0
    %1531 = vmatprep.subr.mxu0 0.0
    %1532 = vmatpush2.msra.mxu0 0.0
    %1533 = vmatprep.subr.mxu0 0.0
    %1534 = vmatpush2.msra.mxu0 0.0
    %1535 = vmatprep.subr.mxu0 0.0
    %1536 = vmatpush2.msra.mxu0 0.0
    %1537 = vmatprep.subr.mxu0 0.0
    %1538 = vmatpush2.msra.mxu0 0.0
    %1539 = vmatprep.mubr.f32.mxu0 0.0
    %v1540 = vand.u32 %v1059, 4294901760
    %1541 = vmatmul.mubr.f32.gmra.mxu0 %v1540
    %v1542 = vpop.f32.mrf.mxu0
    %v1543 = vadd.f32 %v1468, %v1542
    %v1544 = vpop.f32.mrf.mxu0
    %1545 = vdwg.mxu0
    %v1547 = vsel %vm68, %v1053, 0
    %1549 = vmatprep.subr.mxu0 0.0
    %1550 = vmatpush1.msra.mxu0 0.0
    %1551 = vmatprep.subr.mxu0 0.0
    %1552 = vmatpush1.msra.mxu0 0.0
    %1553 = vmatprep.subr.mxu0 0.0
    %1554 = vmatpush1.msra.mxu0 0.0
    %1555 = vmatprep.subr.mxu0 0.0
    %1556 = vmatpush1.msra.mxu0 0.0
    %1557 = vmatprep.subr.mxu0 0.0
    %1558 = vmatpush1.msra.mxu0 0.0
    %1559 = vmatprep.subr.mxu0 0.0
    %1560 = vmatpush1.msra.mxu0 0.0
    %1561 = vmatprep.subr.mxu0 0.0
    %1562 = vmatpush1.msra.mxu0 0.0
    %1563 = vmatprep.subr.mxu0 0.0
    %1564 = vmatpush1.msra.mxu0 0.0
    %1565 = vmatprep.subr.mxu0 0.0
    %1566 = vmatpush1.msra.mxu0 0.0
    %1567 = vmatprep.subr.mxu0 0.0
    %1568 = vmatpush1.msra.mxu0 0.0
    %1569 = vmatprep.subr.mxu0 0.0
    %1570 = vmatpush1.msra.mxu0 0.0
    %1571 = vmatprep.subr.mxu0 0.0
    %1572 = vmatpush1.msra.mxu0 0.0
    %1573 = vmatprep.subr.mxu0 0.0
    %v1574 = vand.u32 %v51, 4294901760
    %1575 = vmatpush1.msra.mxu0 %v1574
    %1576 = vmatprep.subr.mxu0 0.0
    %v1577 = vand.u32 %v50, 4294901760
    %1578 = vmatpush1.msra.mxu0 %v1577
    %1579 = vmatprep.subr.mxu0 0.0
    %v1580 = vand.u32 %v49, 4294901760
    %1581 = vmatpush1.msra.mxu0 %v1580
    %1582 = vmatprep.subr.mxu0 0.0
    %v1583 = vand.u32 %v48, 4294901760
    %1584 = vmatpush1.msra.mxu0 %v1583
    %1585 = vmatprep.subr.mxu0 0.0
    %1586 = vmatpush2.msra.mxu0 0.0
    %1587 = vmatprep.subr.mxu0 0.0
    %1588 = vmatpush2.msra.mxu0 0.0
    %1589 = vmatprep.subr.mxu0 0.0
    %1590 = vmatpush2.msra.mxu0 0.0
    %1591 = vmatprep.subr.mxu0 0.0
    %1592 = vmatpush2.msra.mxu0 0.0
    %1593 = vmatprep.subr.mxu0 0.0
    %1594 = vmatpush2.msra.mxu0 0.0
    %1595 = vmatprep.subr.mxu0 0.0
    %1596 = vmatpush2.msra.mxu0 0.0
    %1597 = vmatprep.subr.mxu0 0.0
    %1598 = vmatpush2.msra.mxu0 0.0
    %1599 = vmatprep.subr.mxu0 0.0
    %1600 = vmatpush2.msra.mxu0 0.0
    %1601 = vmatprep.subr.mxu0 0.0
    %1602 = vmatpush2.msra.mxu0 0.0
    %1603 = vmatprep.subr.mxu0 0.0
    %1604 = vmatpush2.msra.mxu0 0.0
    %1605 = vmatprep.subr.mxu0 0.0
    %1606 = vmatpush2.msra.mxu0 0.0
    %1607 = vmatprep.subr.mxu0 0.0
    %1608 = vmatpush2.msra.mxu0 0.0
    %1609 = vmatprep.subr.mxu0 0.0
    %1610 = vmatpush2.msra.mxu0 0.0
    %1611 = vmatprep.subr.mxu0 0.0
    %1612 = vmatpush2.msra.mxu0 0.0
    %1613 = vmatprep.subr.mxu0 0.0
    %1614 = vmatpush2.msra.mxu0 0.0
    %1615 = vmatprep.subr.mxu0 0.0
    %1616 = vmatpush2.msra.mxu0 0.0
    %1617 = vmatprep.mubr.f32.mxu0 0.0
    %v1618 = vand.u32 %v1547, 4294901760
    %v1619 = vsub.f32 %v1547, %v1618
    %v1620 = vand.u32 %v1619, 4294901760
    %v1621 = vsub.f32 %v1619, %v1620
    %v1622 = vand.u32 %v1621, 4294901760
    %1623 = vmatmul.mubr.f32.gmra.mxu0 %v1622
    %v1624 = vpop.f32.mrf.mxu0
    %v1625 = vadd.f32 %v1057, %v1624
    %v1626 = vpop.f32.mrf.mxu0
    %1627 = vdwg.mxu0
    %1628 = vmatprep.subr.mxu0 0.0
    %1629 = vmatpush1.msra.mxu0 0.0
    %1630 = vmatprep.subr.mxu0 0.0
    %1631 = vmatpush1.msra.mxu0 0.0
    %1632 = vmatprep.subr.mxu0 0.0
    %1633 = vmatpush1.msra.mxu0 0.0
    %1634 = vmatprep.subr.mxu0 0.0
    %1635 = vmatpush1.msra.mxu0 0.0
    %1636 = vmatprep.subr.mxu0 0.0
    %1637 = vmatpush1.msra.mxu0 0.0
    %1638 = vmatprep.subr.mxu0 0.0
    %1639 = vmatpush1.msra.mxu0 0.0
    %1640 = vmatprep.subr.mxu0 0.0
    %1641 = vmatpush1.msra.mxu0 0.0
    %1642 = vmatprep.subr.mxu0 0.0
    %1643 = vmatpush1.msra.mxu0 0.0
    %1644 = vmatprep.subr.mxu0 0.0
    %1645 = vmatpush1.msra.mxu0 0.0
    %1646 = vmatprep.subr.mxu0 0.0
    %1647 = vmatpush1.msra.mxu0 0.0
    %1648 = vmatprep.subr.mxu0 0.0
    %1649 = vmatpush1.msra.mxu0 0.0
    %1650 = vmatprep.subr.mxu0 0.0
    %1651 = vmatpush1.msra.mxu0 0.0
    %1652 = vmatprep.subr.mxu0 0.0
    %v1653 = vand.u32 %v51, 4294901760
    %v1654 = vsub.f32 %v51, %v1653
    %v1655 = vand.u32 %v1654, 4294901760
    %v1656 = vsub.f32 %v1654, %v1655
    %v1657 = vand.u32 %v1656, 4294901760
    %1658 = vmatpush1.msra.mxu0 %v1657
    %1659 = vmatprep.subr.mxu0 0.0
    %v1660 = vand.u32 %v50, 4294901760
    %v1661 = vsub.f32 %v50, %v1660
    %v1662 = vand.u32 %v1661, 4294901760
    %v1663 = vsub.f32 %v1661, %v1662
    %v1664 = vand.u32 %v1663, 4294901760
    %1665 = vmatpush1.msra.mxu0 %v1664
    %1666 = vmatprep.subr.mxu0 0.0
    %v1667 = vand.u32 %v49, 4294901760
    %v1668 = vsub.f32 %v49, %v1667
    %v1669 = vand.u32 %v1668, 4294901760
    %v1670 = vsub.f32 %v1668, %v1669
    %v1671 = vand.u32 %v1670, 4294901760
    %1672 = vmatpush1.msra.mxu0 %v1671
    %1673 = vmatprep.subr.mxu0 0.0
    %v1674 = vand.u32 %v48, 4294901760
    %v1675 = vsub.f32 %v48, %v1674
    %v1676 = vand.u32 %v1675, 4294901760
    %v1677 = vsub.f32 %v1675, %v1676
    %v1678 = vand.u32 %v1677, 4294901760
    %1679 = vmatpush1.msra.mxu0 %v1678
    %1680 = vmatprep.subr.mxu0 0.0
    %1681 = vmatpush2.msra.mxu0 0.0
    %1682 = vmatprep.subr.mxu0 0.0
    %1683 = vmatpush2.msra.mxu0 0.0
    %1684 = vmatprep.subr.mxu0 0.0
    %1685 = vmatpush2.msra.mxu0 0.0
    %1686 = vmatprep.subr.mxu0 0.0
    %1687 = vmatpush2.msra.mxu0 0.0
    %1688 = vmatprep.subr.mxu0 0.0
    %1689 = vmatpush2.msra.mxu0 0.0
    %1690 = vmatprep.subr.mxu0 0.0
    %1691 = vmatpush2.msra.mxu0 0.0
    %1692 = vmatprep.subr.mxu0 0.0
    %1693 = vmatpush2.msra.mxu0 0.0
    %1694 = vmatprep.subr.mxu0 0.0
    %1695 = vmatpush2.msra.mxu0 0.0
    %1696 = vmatprep.subr.mxu0 0.0
    %1697 = vmatpush2.msra.mxu0 0.0
    %1698 = vmatprep.subr.mxu0 0.0
    %1699 = vmatpush2.msra.mxu0 0.0
    %1700 = vmatprep.subr.mxu0 0.0
    %1701 = vmatpush2.msra.mxu0 0.0
    %1702 = vmatprep.subr.mxu0 0.0
    %1703 = vmatpush2.msra.mxu0 0.0
    %1704 = vmatprep.subr.mxu0 0.0
    %1705 = vmatpush2.msra.mxu0 0.0
    %1706 = vmatprep.subr.mxu0 0.0
    %1707 = vmatpush2.msra.mxu0 0.0
    %1708 = vmatprep.subr.mxu0 0.0
    %1709 = vmatpush2.msra.mxu0 0.0
    %1710 = vmatprep.subr.mxu0 0.0
    %1711 = vmatpush2.msra.mxu0 0.0
    %1712 = vmatprep.mubr.f32.mxu0 0.0
    %v1713 = vand.u32 %v1547, 4294901760
    %1714 = vmatmul.mubr.f32.gmra.mxu0 %v1713
    %v1715 = vpop.f32.mrf.mxu0
    %v1716 = vadd.f32 %v1625, %v1715
    %v1717 = vpop.f32.mrf.mxu0
    %1718 = vdwg.mxu0
    %1719 = vmatprep.subr.mxu0 0.0
    %1720 = vmatpush1.msra.mxu0 0.0
    %1721 = vmatprep.subr.mxu0 0.0
    %1722 = vmatpush1.msra.mxu0 0.0
    %1723 = vmatprep.subr.mxu0 0.0
    %1724 = vmatpush1.msra.mxu0 0.0
    %1725 = vmatprep.subr.mxu0 0.0
    %1726 = vmatpush1.msra.mxu0 0.0
    %1727 = vmatprep.subr.mxu0 0.0
    %1728 = vmatpush1.msra.mxu0 0.0
    %1729 = vmatprep.subr.mxu0 0.0
    %1730 = vmatpush1.msra.mxu0 0.0
    %1731 = vmatprep.subr.mxu0 0.0
    %1732 = vmatpush1.msra.mxu0 0.0
    %1733 = vmatprep.subr.mxu0 0.0
    %1734 = vmatpush1.msra.mxu0 0.0
    %1735 = vmatprep.subr.mxu0 0.0
    %1736 = vmatpush1.msra.mxu0 0.0
    %1737 = vmatprep.subr.mxu0 0.0
    %1738 = vmatpush1.msra.mxu0 0.0
    %1739 = vmatprep.subr.mxu0 0.0
    %1740 = vmatpush1.msra.mxu0 0.0
    %1741 = vmatprep.subr.mxu0 0.0
    %1742 = vmatpush1.msra.mxu0 0.0
    %1743 = vmatprep.subr.mxu0 0.0
    %v1744 = vand.u32 %v51, 4294901760
    %v1745 = vsub.f32 %v51, %v1744
    %1746 = vmatpush1.msra.mxu0 %v1745
    %1747 = vmatprep.subr.mxu0 0.0
    %v1748 = vand.u32 %v50, 4294901760
    %v1749 = vsub.f32 %v50, %v1748
    %1750 = vmatpush1.msra.mxu0 %v1749
    %1751 = vmatprep.subr.mxu0 0.0
    %v1752 = vand.u32 %v49, 4294901760
    %v1753 = vsub.f32 %v49, %v1752
    %1754 = vmatpush1.msra.mxu0 %v1753
    %1755 = vmatprep.subr.mxu0 0.0
    %v1756 = vand.u32 %v48, 4294901760
    %v1757 = vsub.f32 %v48, %v1756
    %1758 = vmatpush1.msra.mxu0 %v1757
    %1759 = vmatprep.subr.mxu0 0.0
    %1760 = vmatpush2.msra.mxu0 0.0
    %1761 = vmatprep.subr.mxu0 0.0
    %1762 = vmatpush2.msra.mxu0 0.0
    %1763 = vmatprep.subr.mxu0 0.0
    %1764 = vmatpush2.msra.mxu0 0.0
    %1765 = vmatprep.subr.mxu0 0.0
    %1766 = vmatpush2.msra.mxu0 0.0
    %1767 = vmatprep.subr.mxu0 0.0
    %1768 = vmatpush2.msra.mxu0 0.0
    %1769 = vmatprep.subr.mxu0 0.0
    %1770 = vmatpush2.msra.mxu0 0.0
    %1771 = vmatprep.subr.mxu0 0.0
    %1772 = vmatpush2.msra.mxu0 0.0
    %1773 = vmatprep.subr.mxu0 0.0
    %1774 = vmatpush2.msra.mxu0 0.0
    %1775 = vmatprep.subr.mxu0 0.0
    %1776 = vmatpush2.msra.mxu0 0.0
    %1777 = vmatprep.subr.mxu0 0.0
    %1778 = vmatpush2.msra.mxu0 0.0
    %1779 = vmatprep.subr.mxu0 0.0
    %1780 = vmatpush2.msra.mxu0 0.0
    %1781 = vmatprep.subr.mxu0 0.0
    %1782 = vmatpush2.msra.mxu0 0.0
    %1783 = vmatprep.subr.mxu0 0.0
    %1784 = vmatpush2.msra.mxu0 0.0
    %1785 = vmatprep.subr.mxu0 0.0
    %1786 = vmatpush2.msra.mxu0 0.0
    %1787 = vmatprep.subr.mxu0 0.0
    %1788 = vmatpush2.msra.mxu0 0.0
    %1789 = vmatprep.subr.mxu0 0.0
    %1790 = vmatpush2.msra.mxu0 0.0
    %1791 = vmatprep.mubr.f32.mxu0 0.0
    %v1792 = vand.u32 %v1547, 4294901760
    %v1793 = vsub.f32 %v1547, %v1792
    %1794 = vmatmul.mubr.f32.gmra.mxu0 %v1793
    %v1795 = vpop.f32.mrf.mxu0
    %v1796 = vadd.f32 %v1716, %v1795
    %v1797 = vpop.f32.mrf.mxu0
    %1798 = vdwg.mxu0
    %1799 = vmatprep.subr.mxu0 0.0
    %1800 = vmatpush1.msra.mxu0 0.0
    %1801 = vmatprep.subr.mxu0 0.0
    %1802 = vmatpush1.msra.mxu0 0.0
    %1803 = vmatprep.subr.mxu0 0.0
    %1804 = vmatpush1.msra.mxu0 0.0
    %1805 = vmatprep.subr.mxu0 0.0
    %1806 = vmatpush1.msra.mxu0 0.0
    %1807 = vmatprep.subr.mxu0 0.0
    %1808 = vmatpush1.msra.mxu0 0.0
    %1809 = vmatprep.subr.mxu0 0.0
    %1810 = vmatpush1.msra.mxu0 0.0
    %1811 = vmatprep.subr.mxu0 0.0
    %1812 = vmatpush1.msra.mxu0 0.0
    %1813 = vmatprep.subr.mxu0 0.0
    %1814 = vmatpush1.msra.mxu0 0.0
    %1815 = vmatprep.subr.mxu0 0.0
    %1816 = vmatpush1.msra.mxu0 0.0
    %1817 = vmatprep.subr.mxu0 0.0
    %1818 = vmatpush1.msra.mxu0 0.0
    %1819 = vmatprep.subr.mxu0 0.0
    %1820 = vmatpush1.msra.mxu0 0.0
    %1821 = vmatprep.subr.mxu0 0.0
    %1822 = vmatpush1.msra.mxu0 0.0
    %1823 = vmatprep.subr.mxu0 0.0
    %v1824 = vand.u32 %v51, 4294901760
    %1825 = vmatpush1.msra.mxu0 %v1824
    %1826 = vmatprep.subr.mxu0 0.0
    %v1827 = vand.u32 %v50, 4294901760
    %1828 = vmatpush1.msra.mxu0 %v1827
    %1829 = vmatprep.subr.mxu0 0.0
    %v1830 = vand.u32 %v49, 4294901760
    %1831 = vmatpush1.msra.mxu0 %v1830
    %1832 = vmatprep.subr.mxu0 0.0
    %v1833 = vand.u32 %v48, 4294901760
    %1834 = vmatpush1.msra.mxu0 %v1833
    %1835 = vmatprep.subr.mxu0 0.0
    %1836 = vmatpush2.msra.mxu0 0.0
    %1837 = vmatprep.subr.mxu0 0.0
    %1838 = vmatpush2.msra.mxu0 0.0
    %1839 = vmatprep.subr.mxu0 0.0
    %1840 = vmatpush2.msra.mxu0 0.0
    %1841 = vmatprep.subr.mxu0 0.0
    %1842 = vmatpush2.msra.mxu0 0.0
    %1843 = vmatprep.subr.mxu0 0.0
    %1844 = vmatpush2.msra.mxu0 0.0
    %1845 = vmatprep.subr.mxu0 0.0
    %1846 = vmatpush2.msra.mxu0 0.0
    %1847 = vmatprep.subr.mxu0 0.0
    %1848 = vmatpush2.msra.mxu0 0.0
    %1849 = vmatprep.subr.mxu0 0.0
    %1850 = vmatpush2.msra.mxu0 0.0
    %1851 = vmatprep.subr.mxu0 0.0
    %1852 = vmatpush2.msra.mxu0 0.0
    %1853 = vmatprep.subr.mxu0 0.0
    %1854 = vmatpush2.msra.mxu0 0.0
    %1855 = vmatprep.subr.mxu0 0.0
    %1856 = vmatpush2.msra.mxu0 0.0
    %1857 = vmatprep.subr.mxu0 0.0
    %1858 = vmatpush2.msra.mxu0 0.0
    %1859 = vmatprep.subr.mxu0 0.0
    %1860 = vmatpush2.msra.mxu0 0.0
    %1861 = vmatprep.subr.mxu0 0.0
    %1862 = vmatpush2.msra.mxu0 0.0
    %1863 = vmatprep.subr.mxu0 0.0
    %1864 = vmatpush2.msra.mxu0 0.0
    %1865 = vmatprep.subr.mxu0 0.0
    %1866 = vmatpush2.msra.mxu0 0.0
    %1867 = vmatprep.mubr.f32.mxu0 0.0
    %v1868 = vand.u32 %v1547, 4294901760
    %v1869 = vsub.f32 %v1547, %v1868
    %v1870 = vand.u32 %v1869, 4294901760
    %1871 = vmatmul.mubr.f32.gmra.mxu0 %v1870
    %v1872 = vpop.f32.mrf.mxu0
    %v1873 = vadd.f32 %v1796, %v1872
    %v1874 = vpop.f32.mrf.mxu0
    %1875 = vdwg.mxu0
    %1876 = vmatprep.subr.mxu0 0.0
    %1877 = vmatpush1.msra.mxu0 0.0
    %1878 = vmatprep.subr.mxu0 0.0
    %1879 = vmatpush1.msra.mxu0 0.0
    %1880 = vmatprep.subr.mxu0 0.0
    %1881 = vmatpush1.msra.mxu0 0.0
    %1882 = vmatprep.subr.mxu0 0.0
    %1883 = vmatpush1.msra.mxu0 0.0
    %1884 = vmatprep.subr.mxu0 0.0
    %1885 = vmatpush1.msra.mxu0 0.0
    %1886 = vmatprep.subr.mxu0 0.0
    %1887 = vmatpush1.msra.mxu0 0.0
    %1888 = vmatprep.subr.mxu0 0.0
    %1889 = vmatpush1.msra.mxu0 0.0
    %1890 = vmatprep.subr.mxu0 0.0
    %1891 = vmatpush1.msra.mxu0 0.0
    %1892 = vmatprep.subr.mxu0 0.0
    %1893 = vmatpush1.msra.mxu0 0.0
    %1894 = vmatprep.subr.mxu0 0.0
    %1895 = vmatpush1.msra.mxu0 0.0
    %1896 = vmatprep.subr.mxu0 0.0
    %1897 = vmatpush1.msra.mxu0 0.0
    %1898 = vmatprep.subr.mxu0 0.0
    %1899 = vmatpush1.msra.mxu0 0.0
    %1900 = vmatprep.subr.mxu0 0.0
    %v1901 = vand.u32 %v51, 4294901760
    %v1902 = vsub.f32 %v51, %v1901
    %v1903 = vand.u32 %v1902, 4294901760
    %1904 = vmatpush1.msra.mxu0 %v1903
    %1905 = vmatprep.subr.mxu0 0.0
    %v1906 = vand.u32 %v50, 4294901760
    %v1907 = vsub.f32 %v50, %v1906
    %v1908 = vand.u32 %v1907, 4294901760
    %1909 = vmatpush1.msra.mxu0 %v1908
    %1910 = vmatprep.subr.mxu0 0.0
    %v1911 = vand.u32 %v49, 4294901760
    %v1912 = vsub.f32 %v49, %v1911
    %v1913 = vand.u32 %v1912, 4294901760
    %1914 = vmatpush1.msra.mxu0 %v1913
    %1915 = vmatprep.subr.mxu0 0.0
    %v1916 = vand.u32 %v48, 4294901760
    %v1917 = vsub.f32 %v48, %v1916
    %v1918 = vand.u32 %v1917, 4294901760
    %1919 = vmatpush1.msra.mxu0 %v1918
    %1920 = vmatprep.subr.mxu0 0.0
    %1921 = vmatpush2.msra.mxu0 0.0
    %1922 = vmatprep.subr.mxu0 0.0
    %1923 = vmatpush2.msra.mxu0 0.0
    %1924 = vmatprep.subr.mxu0 0.0
    %1925 = vmatpush2.msra.mxu0 0.0
    %1926 = vmatprep.subr.mxu0 0.0
    %1927 = vmatpush2.msra.mxu0 0.0
    %1928 = vmatprep.subr.mxu0 0.0
    %1929 = vmatpush2.msra.mxu0 0.0
    %1930 = vmatprep.subr.mxu0 0.0
    %1931 = vmatpush2.msra.mxu0 0.0
    %1932 = vmatprep.subr.mxu0 0.0
    %1933 = vmatpush2.msra.mxu0 0.0
    %1934 = vmatprep.subr.mxu0 0.0
    %1935 = vmatpush2.msra.mxu0 0.0
    %1936 = vmatprep.subr.mxu0 0.0
    %1937 = vmatpush2.msra.mxu0 0.0
    %1938 = vmatprep.subr.mxu0 0.0
    %1939 = vmatpush2.msra.mxu0 0.0
    %1940 = vmatprep.subr.mxu0 0.0
    %1941 = vmatpush2.msra.mxu0 0.0
    %1942 = vmatprep.subr.mxu0 0.0
    %1943 = vmatpush2.msra.mxu0 0.0
    %1944 = vmatprep.subr.mxu0 0.0
    %1945 = vmatpush2.msra.mxu0 0.0
    %1946 = vmatprep.subr.mxu0 0.0
    %1947 = vmatpush2.msra.mxu0 0.0
    %1948 = vmatprep.subr.mxu0 0.0
    %1949 = vmatpush2.msra.mxu0 0.0
    %1950 = vmatprep.subr.mxu0 0.0
    %1951 = vmatpush2.msra.mxu0 0.0
    %1952 = vmatprep.mubr.f32.mxu0 0.0
    %v1953 = vand.u32 %v1547, 4294901760
    %1954 = vmatmul.mubr.f32.gmra.mxu0 %v1953
    %v1955 = vpop.f32.mrf.mxu0
    %v1956 = vadd.f32 %v1873, %v1955
    %v1957 = vpop.f32.mrf.mxu0
    %1958 = vdwg.mxu0
    %1959 = vmatprep.subr.mxu0 0.0
    %1960 = vmatpush1.msra.mxu0 0.0
    %1961 = vmatprep.subr.mxu0 0.0
    %1962 = vmatpush1.msra.mxu0 0.0
    %1963 = vmatprep.subr.mxu0 0.0
    %1964 = vmatpush1.msra.mxu0 0.0
    %1965 = vmatprep.subr.mxu0 0.0
    %1966 = vmatpush1.msra.mxu0 0.0
    %1967 = vmatprep.subr.mxu0 0.0
    %1968 = vmatpush1.msra.mxu0 0.0
    %1969 = vmatprep.subr.mxu0 0.0
    %1970 = vmatpush1.msra.mxu0 0.0
    %1971 = vmatprep.subr.mxu0 0.0
    %1972 = vmatpush1.msra.mxu0 0.0
    %1973 = vmatprep.subr.mxu0 0.0
    %1974 = vmatpush1.msra.mxu0 0.0
    %1975 = vmatprep.subr.mxu0 0.0
    %1976 = vmatpush1.msra.mxu0 0.0
    %1977 = vmatprep.subr.mxu0 0.0
    %1978 = vmatpush1.msra.mxu0 0.0
    %1979 = vmatprep.subr.mxu0 0.0
    %1980 = vmatpush1.msra.mxu0 0.0
    %1981 = vmatprep.subr.mxu0 0.0
    %1982 = vmatpush1.msra.mxu0 0.0
    %1983 = vmatprep.subr.mxu0 0.0
    %v1984 = vand.u32 %v51, 4294901760
    %1985 = vmatpush1.msra.mxu0 %v1984
    %1986 = vmatprep.subr.mxu0 0.0
    %v1987 = vand.u32 %v50, 4294901760
    %1988 = vmatpush1.msra.mxu0 %v1987
    %1989 = vmatprep.subr.mxu0 0.0
    %v1990 = vand.u32 %v49, 4294901760
    %1991 = vmatpush1.msra.mxu0 %v1990
    %1992 = vmatprep.subr.mxu0 0.0
    %v1993 = vand.u32 %v48, 4294901760
    %1994 = vmatpush1.msra.mxu0 %v1993
    %1995 = vmatprep.subr.mxu0 0.0
    %1996 = vmatpush2.msra.mxu0 0.0
    %1997 = vmatprep.subr.mxu0 0.0
    %1998 = vmatpush2.msra.mxu0 0.0
    %1999 = vmatprep.subr.mxu0 0.0
    %2000 = vmatpush2.msra.mxu0 0.0
    %2001 = vmatprep.subr.mxu0 0.0
    %2002 = vmatpush2.msra.mxu0 0.0
    %2003 = vmatprep.subr.mxu0 0.0
    %2004 = vmatpush2.msra.mxu0 0.0
    %2005 = vmatprep.subr.mxu0 0.0
    %2006 = vmatpush2.msra.mxu0 0.0
    %2007 = vmatprep.subr.mxu0 0.0
    %2008 = vmatpush2.msra.mxu0 0.0
    %2009 = vmatprep.subr.mxu0 0.0
    %2010 = vmatpush2.msra.mxu0 0.0
    %2011 = vmatprep.subr.mxu0 0.0
    %2012 = vmatpush2.msra.mxu0 0.0
    %2013 = vmatprep.subr.mxu0 0.0
    %2014 = vmatpush2.msra.mxu0 0.0
    %2015 = vmatprep.subr.mxu0 0.0
    %2016 = vmatpush2.msra.mxu0 0.0
    %2017 = vmatprep.subr.mxu0 0.0
    %2018 = vmatpush2.msra.mxu0 0.0
    %2019 = vmatprep.subr.mxu0 0.0
    %2020 = vmatpush2.msra.mxu0 0.0
    %2021 = vmatprep.subr.mxu0 0.0
    %2022 = vmatpush2.msra.mxu0 0.0
    %2023 = vmatprep.subr.mxu0 0.0
    %2024 = vmatpush2.msra.mxu0 0.0
    %2025 = vmatprep.subr.mxu0 0.0
    %2026 = vmatpush2.msra.mxu0 0.0
    %2027 = vmatprep.mubr.f32.mxu0 0.0
    %v2028 = vand.u32 %v1547, 4294901760
    %2029 = vmatmul.mubr.f32.gmra.mxu0 %v2028
    %v2030 = vpop.f32.mrf.mxu0
    %v2031 = vadd.f32 %v1956, %v2030
    %v2032 = vpop.f32.mrf.mxu0
    %2033 = vdwg.mxu0
    %v2034 = vtanh.pop %v1543
    %v2036 = vsel %vm68, %v2034, 0
    %2038 = vmatprep.subr.mxu0 0.0
    %2039 = vmatpush1.msra.mxu0 0.0
    %2040 = vmatprep.subr.mxu0 0.0
    %2041 = vmatpush1.msra.mxu0 0.0
    %2042 = vmatprep.subr.mxu0 0.0
    %2043 = vmatpush1.msra.mxu0 0.0
    %2044 = vmatprep.subr.mxu0 0.0
    %2045 = vmatpush1.msra.mxu0 0.0
    %2046 = vmatprep.subr.mxu0 0.0
    %2047 = vmatpush1.msra.mxu0 0.0
    %2048 = vmatprep.subr.mxu0 0.0
    %2049 = vmatpush1.msra.mxu0 0.0
    %2050 = vmatprep.subr.mxu0 0.0
    %2051 = vmatpush1.msra.mxu0 0.0
    %2052 = vmatprep.subr.mxu0 0.0
    %2053 = vmatpush1.msra.mxu0 0.0
    %2054 = vmatprep.subr.mxu0 0.0
    %2055 = vmatpush1.msra.mxu0 0.0
    %2056 = vmatprep.subr.mxu0 0.0
    %2057 = vmatpush1.msra.mxu0 0.0
    %2058 = vmatprep.subr.mxu0 0.0
    %2059 = vmatpush1.msra.mxu0 0.0
    %2060 = vmatprep.subr.mxu0 0.0
    %2061 = vmatpush1.msra.mxu0 0.0
    %2062 = vmatprep.subr.mxu0 0.0
    %v2063 = vand.u32 %v55, 4294901760
    %2064 = vmatpush1.msra.mxu0 %v2063
    %2065 = vmatprep.subr.mxu0 0.0
    %v2066 = vand.u32 %v54, 4294901760
    %2067 = vmatpush1.msra.mxu0 %v2066
    %2068 = vmatprep.subr.mxu0 0.0
    %v2069 = vand.u32 %v53, 4294901760
    %2070 = vmatpush1.msra.mxu0 %v2069
    %2071 = vmatprep.subr.mxu0 0.0
    %v2072 = vand.u32 %v52, 4294901760
    %2073 = vmatpush1.msra.mxu0 %v2072
    %2074 = vmatprep.subr.mxu0 0.0
    %2075 = vmatpush2.msra.mxu0 0.0
    %2076 = vmatprep.subr.mxu0 0.0
    %2077 = vmatpush2.msra.mxu0 0.0
    %2078 = vmatprep.subr.mxu0 0.0
    %2079 = vmatpush2.msra.mxu0 0.0
    %2080 = vmatprep.subr.mxu0 0.0
    %2081 = vmatpush2.msra.mxu0 0.0
    %2082 = vmatprep.subr.mxu0 0.0
    %2083 = vmatpush2.msra.mxu0 0.0
    %2084 = vmatprep.subr.mxu0 0.0
    %2085 = vmatpush2.msra.mxu0 0.0
    %2086 = vmatprep.subr.mxu0 0.0
    %2087 = vmatpush2.msra.mxu0 0.0
    %2088 = vmatprep.subr.mxu0 0.0
    %2089 = vmatpush2.msra.mxu0 0.0
    %2090 = vmatprep.subr.mxu0 0.0
    %2091 = vmatpush2.msra.mxu0 0.0
    %2092 = vmatprep.subr.mxu0 0.0
    %2093 = vmatpush2.msra.mxu0 0.0
    %2094 = vmatprep.subr.mxu0 0.0
    %2095 = vmatpush2.msra.mxu0 0.0
    %2096 = vmatprep.subr.mxu0 0.0
    %2097 = vmatpush2.msra.mxu0 0.0
    %2098 = vmatprep.subr.mxu0 0.0
    %2099 = vmatpush2.msra.mxu0 0.0
    %2100 = vmatprep.subr.mxu0 0.0
    %2101 = vmatpush2.msra.mxu0 0.0
    %2102 = vmatprep.subr.mxu0 0.0
    %2103 = vmatpush2.msra.mxu0 0.0
    %2104 = vmatprep.subr.mxu0 0.0
    %2105 = vmatpush2.msra.mxu0 0.0
    %2106 = vmatprep.mubr.f32.mxu0 0.0
    %v2107 = vand.u32 %v2036, 4294901760
    %v2108 = vsub.f32 %v2036, %v2107
    %v2109 = vand.u32 %v2108, 4294901760
    %v2110 = vsub.f32 %v2108, %v2109
    %v2111 = vand.u32 %v2110, 4294901760
    %2112 = vmatmul.mubr.f32.gmra.mxu0 %v2111
    %v2113 = vpop.f32.mrf.mxu0
    %v2114 = vadd.f32 0.0, %v2113
    %v2115 = vpop.f32.mrf.mxu0
    %2116 = vdwg.mxu0
    %2117 = vmatprep.subr.mxu0 0.0
    %2118 = vmatpush1.msra.mxu0 0.0
    %2119 = vmatprep.subr.mxu0 0.0
    %2120 = vmatpush1.msra.mxu0 0.0
    %2121 = vmatprep.subr.mxu0 0.0
    %2122 = vmatpush1.msra.mxu0 0.0
    %2123 = vmatprep.subr.mxu0 0.0
    %2124 = vmatpush1.msra.mxu0 0.0
    %2125 = vmatprep.subr.mxu0 0.0
    %2126 = vmatpush1.msra.mxu0 0.0
    %2127 = vmatprep.subr.mxu0 0.0
    %2128 = vmatpush1.msra.mxu0 0.0
    %2129 = vmatprep.subr.mxu0 0.0
    %2130 = vmatpush1.msra.mxu0 0.0
    %2131 = vmatprep.subr.mxu0 0.0
    %2132 = vmatpush1.msra.mxu0 0.0
    %2133 = vmatprep.subr.mxu0 0.0
    %2134 = vmatpush1.msra.mxu0 0.0
    %2135 = vmatprep.subr.mxu0 0.0
    %2136 = vmatpush1.msra.mxu0 0.0
    %2137 = vmatprep.subr.mxu0 0.0
    %2138 = vmatpush1.msra.mxu0 0.0
    %2139 = vmatprep.subr.mxu0 0.0
    %2140 = vmatpush1.msra.mxu0 0.0
    %2141 = vmatprep.subr.mxu0 0.0
    %v2142 = vand.u32 %v55, 4294901760
    %v2143 = vsub.f32 %v55, %v2142
    %v2144 = vand.u32 %v2143, 4294901760
    %v2145 = vsub.f32 %v2143, %v2144
    %v2146 = vand.u32 %v2145, 4294901760
    %2147 = vmatpush1.msra.mxu0 %v2146
    %2148 = vmatprep.subr.mxu0 0.0
    %v2149 = vand.u32 %v54, 4294901760
    %v2150 = vsub.f32 %v54, %v2149
    %v2151 = vand.u32 %v2150, 4294901760
    %v2152 = vsub.f32 %v2150, %v2151
    %v2153 = vand.u32 %v2152, 4294901760
    %2154 = vmatpush1.msra.mxu0 %v2153
    %2155 = vmatprep.subr.mxu0 0.0
    %v2156 = vand.u32 %v53, 4294901760
    %v2157 = vsub.f32 %v53, %v2156
    %v2158 = vand.u32 %v2157, 4294901760
    %v2159 = vsub.f32 %v2157, %v2158
    %v2160 = vand.u32 %v2159, 4294901760
    %2161 = vmatpush1.msra.mxu0 %v2160
    %2162 = vmatprep.subr.mxu0 0.0
    %v2163 = vand.u32 %v52, 4294901760
    %v2164 = vsub.f32 %v52, %v2163
    %v2165 = vand.u32 %v2164, 4294901760
    %v2166 = vsub.f32 %v2164, %v2165
    %v2167 = vand.u32 %v2166, 4294901760
    %2168 = vmatpush1.msra.mxu0 %v2167
    %2169 = vmatprep.subr.mxu0 0.0
    %2170 = vmatpush2.msra.mxu0 0.0
    %2171 = vmatprep.subr.mxu0 0.0
    %2172 = vmatpush2.msra.mxu0 0.0
    %2173 = vmatprep.subr.mxu0 0.0
    %2174 = vmatpush2.msra.mxu0 0.0
    %2175 = vmatprep.subr.mxu0 0.0
    %2176 = vmatpush2.msra.mxu0 0.0
    %2177 = vmatprep.subr.mxu0 0.0
    %2178 = vmatpush2.msra.mxu0 0.0
    %2179 = vmatprep.subr.mxu0 0.0
    %2180 = vmatpush2.msra.mxu0 0.0
    %2181 = vmatprep.subr.mxu0 0.0
    %2182 = vmatpush2.msra.mxu0 0.0
    %2183 = vmatprep.subr.mxu0 0.0
    %2184 = vmatpush2.msra.mxu0 0.0
    %2185 = vmatprep.subr.mxu0 0.0
    %2186 = vmatpush2.msra.mxu0 0.0
    %2187 = vmatprep.subr.mxu0 0.0
    %2188 = vmatpush2.msra.mxu0 0.0
    %2189 = vmatprep.subr.mxu0 0.0
    %2190 = vmatpush2.msra.mxu0 0.0
    %2191 = vmatprep.subr.mxu0 0.0
    %2192 = vmatpush2.msra.mxu0 0.0
    %2193 = vmatprep.subr.mxu0 0.0
    %2194 = vmatpush2.msra.mxu0 0.0
    %2195 = vmatprep.subr.mxu0 0.0
    %2196 = vmatpush2.msra.mxu0 0.0
    %2197 = vmatprep.subr.mxu0 0.0
    %2198 = vmatpush2.msra.mxu0 0.0
    %2199 = vmatprep.subr.mxu0 0.0
    %2200 = vmatpush2.msra.mxu0 0.0
    %2201 = vmatprep.mubr.f32.mxu0 0.0
    %v2202 = vand.u32 %v2036, 4294901760
    %2203 = vmatmul.mubr.f32.gmra.mxu0 %v2202
    %v2204 = vpop.f32.mrf.mxu0
    %v2205 = vadd.f32 %v2114, %v2204
    %v2206 = vpop.f32.mrf.mxu0
    %2207 = vdwg.mxu0
    %2208 = vmatprep.subr.mxu0 0.0
    %2209 = vmatpush1.msra.mxu0 0.0
    %2210 = vmatprep.subr.mxu0 0.0
    %2211 = vmatpush1.msra.mxu0 0.0
    %2212 = vmatprep.subr.mxu0 0.0
    %2213 = vmatpush1.msra.mxu0 0.0
    %2214 = vmatprep.subr.mxu0 0.0
    %2215 = vmatpush1.msra.mxu0 0.0
    %2216 = vmatprep.subr.mxu0 0.0
    %2217 = vmatpush1.msra.mxu0 0.0
    %2218 = vmatprep.subr.mxu0 0.0
    %2219 = vmatpush1.msra.mxu0 0.0
    %2220 = vmatprep.subr.mxu0 0.0
    %2221 = vmatpush1.msra.mxu0 0.0
    %2222 = vmatprep.subr.mxu0 0.0
    %2223 = vmatpush1.msra.mxu0 0.0
    %2224 = vmatprep.subr.mxu0 0.0
    %2225 = vmatpush1.msra.mxu0 0.0
    %2226 = vmatprep.subr.mxu0 0.0
    %2227 = vmatpush1.msra.mxu0 0.0
    %2228 = vmatprep.subr.mxu0 0.0
    %2229 = vmatpush1.msra.mxu0 0.0
    %2230 = vmatprep.subr.mxu0 0.0
    %2231 = vmatpush1.msra.mxu0 0.0
    %2232 = vmatprep.subr.mxu0 0.0
    %v2233 = vand.u32 %v55, 4294901760
    %v2234 = vsub.f32 %v55, %v2233
    %2235 = vmatpush1.msra.mxu0 %v2234
    %2236 = vmatprep.subr.mxu0 0.0
    %v2237 = vand.u32 %v54, 4294901760
    %v2238 = vsub.f32 %v54, %v2237
    %2239 = vmatpush1.msra.mxu0 %v2238
    %2240 = vmatprep.subr.mxu0 0.0
    %v2241 = vand.u32 %v53, 4294901760
    %v2242 = vsub.f32 %v53, %v2241
    %2243 = vmatpush1.msra.mxu0 %v2242
    %2244 = vmatprep.subr.mxu0 0.0
    %v2245 = vand.u32 %v52, 4294901760
    %v2246 = vsub.f32 %v52, %v2245
    %2247 = vmatpush1.msra.mxu0 %v2246
    %2248 = vmatprep.subr.mxu0 0.0
    %2249 = vmatpush2.msra.mxu0 0.0
    %2250 = vmatprep.subr.mxu0 0.0
    %2251 = vmatpush2.msra.mxu0 0.0
    %2252 = vmatprep.subr.mxu0 0.0
    %2253 = vmatpush2.msra.mxu0 0.0
    %2254 = vmatprep.subr.mxu0 0.0
    %2255 = vmatpush2.msra.mxu0 0.0
    %2256 = vmatprep.subr.mxu0 0.0
    %2257 = vmatpush2.msra.mxu0 0.0
    %2258 = vmatprep.subr.mxu0 0.0
    %2259 = vmatpush2.msra.mxu0 0.0
    %2260 = vmatprep.subr.mxu0 0.0
    %2261 = vmatpush2.msra.mxu0 0.0
    %2262 = vmatprep.subr.mxu0 0.0
    %2263 = vmatpush2.msra.mxu0 0.0
    %2264 = vmatprep.subr.mxu0 0.0
    %2265 = vmatpush2.msra.mxu0 0.0
    %2266 = vmatprep.subr.mxu0 0.0
    %2267 = vmatpush2.msra.mxu0 0.0
    %2268 = vmatprep.subr.mxu0 0.0
    %2269 = vmatpush2.msra.mxu0 0.0
    %2270 = vmatprep.subr.mxu0 0.0
    %2271 = vmatpush2.msra.mxu0 0.0
    %2272 = vmatprep.subr.mxu0 0.0
    %2273 = vmatpush2.msra.mxu0 0.0
    %2274 = vmatprep.subr.mxu0 0.0
    %2275 = vmatpush2.msra.mxu0 0.0
    %2276 = vmatprep.subr.mxu0 0.0
    %2277 = vmatpush2.msra.mxu0 0.0
    %2278 = vmatprep.subr.mxu0 0.0
    %2279 = vmatpush2.msra.mxu0 0.0
    %2280 = vmatprep.mubr.f32.mxu0 0.0
    %v2281 = vand.u32 %v2036, 4294901760
    %v2282 = vsub.f32 %v2036, %v2281
    %2283 = vmatmul.mubr.f32.gmra.mxu0 %v2282
    %v2284 = vpop.f32.mrf.mxu0
    %v2285 = vadd.f32 %v2205, %v2284
    %v2286 = vpop.f32.mrf.mxu0
    %2287 = vdwg.mxu0
    %2288 = vmatprep.subr.mxu0 0.0
    %2289 = vmatpush1.msra.mxu0 0.0
    %2290 = vmatprep.subr.mxu0 0.0
    %2291 = vmatpush1.msra.mxu0 0.0
    %2292 = vmatprep.subr.mxu0 0.0
    %2293 = vmatpush1.msra.mxu0 0.0
    %2294 = vmatprep.subr.mxu0 0.0
    %2295 = vmatpush1.msra.mxu0 0.0
    %2296 = vmatprep.subr.mxu0 0.0
    %2297 = vmatpush1.msra.mxu0 0.0
    %2298 = vmatprep.subr.mxu0 0.0
    %2299 = vmatpush1.msra.mxu0 0.0
    %2300 = vmatprep.subr.mxu0 0.0
    %2301 = vmatpush1.msra.mxu0 0.0
    %2302 = vmatprep.subr.mxu0 0.0
    %2303 = vmatpush1.msra.mxu0 0.0
    %2304 = vmatprep.subr.mxu0 0.0
    %2305 = vmatpush1.msra.mxu0 0.0
    %2306 = vmatprep.subr.mxu0 0.0
    %2307 = vmatpush1.msra.mxu0 0.0
    %2308 = vmatprep.subr.mxu0 0.0
    %2309 = vmatpush1.msra.mxu0 0.0
    %2310 = vmatprep.subr.mxu0 0.0
    %2311 = vmatpush1.msra.mxu0 0.0
    %2312 = vmatprep.subr.mxu0 0.0
    %v2313 = vand.u32 %v55, 4294901760
    %2314 = vmatpush1.msra.mxu0 %v2313
    %2315 = vmatprep.subr.mxu0 0.0
    %v2316 = vand.u32 %v54, 4294901760
    %2317 = vmatpush1.msra.mxu0 %v2316
    %2318 = vmatprep.subr.mxu0 0.0
    %v2319 = vand.u32 %v53, 4294901760
    %2320 = vmatpush1.msra.mxu0 %v2319
    %2321 = vmatprep.subr.mxu0 0.0
    %v2322 = vand.u32 %v52, 4294901760
    %2323 = vmatpush1.msra.mxu0 %v2322
    %2324 = vmatprep.subr.mxu0 0.0
    %2325 = vmatpush2.msra.mxu0 0.0
    %2326 = vmatprep.subr.mxu0 0.0
    %2327 = vmatpush2.msra.mxu0 0.0
    %2328 = vmatprep.subr.mxu0 0.0
    %2329 = vmatpush2.msra.mxu0 0.0
    %2330 = vmatprep.subr.mxu0 0.0
    %2331 = vmatpush2.msra.mxu0 0.0
    %2332 = vmatprep.subr.mxu0 0.0
    %2333 = vmatpush2.msra.mxu0 0.0
    %2334 = vmatprep.subr.mxu0 0.0
    %2335 = vmatpush2.msra.mxu0 0.0
    %2336 = vmatprep.subr.mxu0 0.0
    %2337 = vmatpush2.msra.mxu0 0.0
    %2338 = vmatprep.subr.mxu0 0.0
    %2339 = vmatpush2.msra.mxu0 0.0
    %2340 = vmatprep.subr.mxu0 0.0
    %2341 = vmatpush2.msra.mxu0 0.0
    %2342 = vmatprep.subr.mxu0 0.0
    %2343 = vmatpush2.msra.mxu0 0.0
    %2344 = vmatprep.subr.mxu0 0.0
    %2345 = vmatpush2.msra.mxu0 0.0
    %2346 = vmatprep.subr.mxu0 0.0
    %2347 = vmatpush2.msra.mxu0 0.0
    %2348 = vmatprep.subr.mxu0 0.0
    %2349 = vmatpush2.msra.mxu0 0.0
    %2350 = vmatprep.subr.mxu0 0.0
    %2351 = vmatpush2.msra.mxu0 0.0
    %2352 = vmatprep.subr.mxu0 0.0
    %2353 = vmatpush2.msra.mxu0 0.0
    %2354 = vmatprep.subr.mxu0 0.0
    %2355 = vmatpush2.msra.mxu0 0.0
    %2356 = vmatprep.mubr.f32.mxu0 0.0
    %v2357 = vand.u32 %v2036, 4294901760
    %v2358 = vsub.f32 %v2036, %v2357
    %v2359 = vand.u32 %v2358, 4294901760
    %2360 = vmatmul.mubr.f32.gmra.mxu0 %v2359
    %v2361 = vpop.f32.mrf.mxu0
    %v2362 = vadd.f32 %v2285, %v2361
    %v2363 = vpop.f32.mrf.mxu0
    %2364 = vdwg.mxu0
    %2365 = vmatprep.subr.mxu0 0.0
    %2366 = vmatpush1.msra.mxu0 0.0
    %2367 = vmatprep.subr.mxu0 0.0
    %2368 = vmatpush1.msra.mxu0 0.0
    %2369 = vmatprep.subr.mxu0 0.0
    %2370 = vmatpush1.msra.mxu0 0.0
    %2371 = vmatprep.subr.mxu0 0.0
    %2372 = vmatpush1.msra.mxu0 0.0
    %2373 = vmatprep.subr.mxu0 0.0
    %2374 = vmatpush1.msra.mxu0 0.0
    %2375 = vmatprep.subr.mxu0 0.0
    %2376 = vmatpush1.msra.mxu0 0.0
    %2377 = vmatprep.subr.mxu0 0.0
    %2378 = vmatpush1.msra.mxu0 0.0
    %2379 = vmatprep.subr.mxu0 0.0
    %2380 = vmatpush1.msra.mxu0 0.0
    %2381 = vmatprep.subr.mxu0 0.0
    %2382 = vmatpush1.msra.mxu0 0.0
    %2383 = vmatprep.subr.mxu0 0.0
    %2384 = vmatpush1.msra.mxu0 0.0
    %2385 = vmatprep.subr.mxu0 0.0
    %2386 = vmatpush1.msra.mxu0 0.0
    %2387 = vmatprep.subr.mxu0 0.0
    %2388 = vmatpush1.msra.mxu0 0.0
    %2389 = vmatprep.subr.mxu0 0.0
    %v2390 = vand.u32 %v55, 4294901760
    %v2391 = vsub.f32 %v55, %v2390
    %v2392 = vand.u32 %v2391, 4294901760
    %2393 = vmatpush1.msra.mxu0 %v2392
    %2394 = vmatprep.subr.mxu0 0.0
    %v2395 = vand.u32 %v54, 4294901760
    %v2396 = vsub.f32 %v54, %v2395
    %v2397 = vand.u32 %v2396, 4294901760
    %2398 = vmatpush1.msra.mxu0 %v2397
    %2399 = vmatprep.subr.mxu0 0.0
    %v2400 = vand.u32 %v53, 4294901760
    %v2401 = vsub.f32 %v53, %v2400
    %v2402 = vand.u32 %v2401, 4294901760
    %2403 = vmatpush1.msra.mxu0 %v2402
    %2404 = vmatprep.subr.mxu0 0.0
    %v2405 = vand.u32 %v52, 4294901760
    %v2406 = vsub.f32 %v52, %v2405
    %v2407 = vand.u32 %v2406, 4294901760
    %2408 = vmatpush1.msra.mxu0 %v2407
    %2409 = vmatprep.subr.mxu0 0.0
    %2410 = vmatpush2.msra.mxu0 0.0
    %2411 = vmatprep.subr.mxu0 0.0
    %2412 = vmatpush2.msra.mxu0 0.0
    %2413 = vmatprep.subr.mxu0 0.0
    %2414 = vmatpush2.msra.mxu0 0.0
    %2415 = vmatprep.subr.mxu0 0.0
    %2416 = vmatpush2.msra.mxu0 0.0
    %2417 = vmatprep.subr.mxu0 0.0
    %2418 = vmatpush2.msra.mxu0 0.0
    %2419 = vmatprep.subr.mxu0 0.0
    %2420 = vmatpush2.msra.mxu0 0.0
    %2421 = vmatprep.subr.mxu0 0.0
    %2422 = vmatpush2.msra.mxu0 0.0
    %2423 = vmatprep.subr.mxu0 0.0
    %2424 = vmatpush2.msra.mxu0 0.0
    %2425 = vmatprep.subr.mxu0 0.0
    %2426 = vmatpush2.msra.mxu0 0.0
    %2427 = vmatprep.subr.mxu0 0.0
    %2428 = vmatpush2.msra.mxu0 0.0
    %2429 = vmatprep.subr.mxu0 0.0
    %2430 = vmatpush2.msra.mxu0 0.0
    %2431 = vmatprep.subr.mxu0 0.0
    %2432 = vmatpush2.msra.mxu0 0.0
    %2433 = vmatprep.subr.mxu0 0.0
    %2434 = vmatpush2.msra.mxu0 0.0
    %2435 = vmatprep.subr.mxu0 0.0
    %2436 = vmatpush2.msra.mxu0 0.0
    %2437 = vmatprep.subr.mxu0 0.0
    %2438 = vmatpush2.msra.mxu0 0.0
    %2439 = vmatprep.subr.mxu0 0.0
    %2440 = vmatpush2.msra.mxu0 0.0
    %2441 = vmatprep.mubr.f32.mxu0 0.0
    %v2442 = vand.u32 %v2036, 4294901760
    %2443 = vmatmul.mubr.f32.gmra.mxu0 %v2442
    %v2444 = vpop.f32.mrf.mxu0
    %v2445 = vadd.f32 %v2362, %v2444
    %v2446 = vpop.f32.mrf.mxu0
    %2447 = vdwg.mxu0
    %2448 = vmatprep.subr.mxu0 0.0
    %2449 = vmatpush1.msra.mxu0 0.0
    %2450 = vmatprep.subr.mxu0 0.0
    %2451 = vmatpush1.msra.mxu0 0.0
    %2452 = vmatprep.subr.mxu0 0.0
    %2453 = vmatpush1.msra.mxu0 0.0
    %2454 = vmatprep.subr.mxu0 0.0
    %2455 = vmatpush1.msra.mxu0 0.0
    %2456 = vmatprep.subr.mxu0 0.0
    %2457 = vmatpush1.msra.mxu0 0.0
    %2458 = vmatprep.subr.mxu0 0.0
    %2459 = vmatpush1.msra.mxu0 0.0
    %2460 = vmatprep.subr.mxu0 0.0
    %2461 = vmatpush1.msra.mxu0 0.0
    %2462 = vmatprep.subr.mxu0 0.0
    %2463 = vmatpush1.msra.mxu0 0.0
    %2464 = vmatprep.subr.mxu0 0.0
    %2465 = vmatpush1.msra.mxu0 0.0
    %2466 = vmatprep.subr.mxu0 0.0
    %2467 = vmatpush1.msra.mxu0 0.0
    %2468 = vmatprep.subr.mxu0 0.0
    %2469 = vmatpush1.msra.mxu0 0.0
    %2470 = vmatprep.subr.mxu0 0.0
    %2471 = vmatpush1.msra.mxu0 0.0
    %2472 = vmatprep.subr.mxu0 0.0
    %v2473 = vand.u32 %v55, 4294901760
    %2474 = vmatpush1.msra.mxu0 %v2473
    %2475 = vmatprep.subr.mxu0 0.0
    %v2476 = vand.u32 %v54, 4294901760
    %2477 = vmatpush1.msra.mxu0 %v2476
    %2478 = vmatprep.subr.mxu0 0.0
    %v2479 = vand.u32 %v53, 4294901760
    %2480 = vmatpush1.msra.mxu0 %v2479
    %2481 = vmatprep.subr.mxu0 0.0
    %v2482 = vand.u32 %v52, 4294901760
    %2483 = vmatpush1.msra.mxu0 %v2482
    %2484 = vmatprep.subr.mxu0 0.0
    %2485 = vmatpush2.msra.mxu0 0.0
    %2486 = vmatprep.subr.mxu0 0.0
    %2487 = vmatpush2.msra.mxu0 0.0
    %2488 = vmatprep.subr.mxu0 0.0
    %2489 = vmatpush2.msra.mxu0 0.0
    %2490 = vmatprep.subr.mxu0 0.0
    %2491 = vmatpush2.msra.mxu0 0.0
    %2492 = vmatprep.subr.mxu0 0.0
    %2493 = vmatpush2.msra.mxu0 0.0
    %2494 = vmatprep.subr.mxu0 0.0
    %2495 = vmatpush2.msra.mxu0 0.0
    %2496 = vmatprep.subr.mxu0 0.0
    %2497 = vmatpush2.msra.mxu0 0.0
    %2498 = vmatprep.subr.mxu0 0.0
    %2499 = vmatpush2.msra.mxu0 0.0
    %2500 = vmatprep.subr.mxu0 0.0
    %2501 = vmatpush2.msra.mxu0 0.0
    %2502 = vmatprep.subr.mxu0 0.0
    %2503 = vmatpush2.msra.mxu0 0.0
    %2504 = vmatprep.subr.mxu0 0.0
    %2505 = vmatpush2.msra.mxu0 0.0
    %2506 = vmatprep.subr.mxu0 0.0
    %2507 = vmatpush2.msra.mxu0 0.0
    %2508 = vmatprep.subr.mxu0 0.0
    %2509 = vmatpush2.msra.mxu0 0.0
    %2510 = vmatprep.subr.mxu0 0.0
    %2511 = vmatpush2.msra.mxu0 0.0
    %2512 = vmatprep.subr.mxu0 0.0
    %2513 = vmatpush2.msra.mxu0 0.0
    %2514 = vmatprep.subr.mxu0 0.0
    %2515 = vmatpush2.msra.mxu0 0.0
    %2516 = vmatprep.mubr.f32.mxu0 0.0
    %v2517 = vand.u32 %v2036, 4294901760
    %2518 = vmatmul.mubr.f32.gmra.mxu0 %v2517
    %v2519 = vpop.f32.mrf.mxu0
    %v2520 = vadd.f32 %v2445, %v2519
    %v2521 = vpop.f32.mrf.mxu0
    %2522 = vdwg.mxu0
    %v2524 = vrot.slane %v2520, 4
    %v2526 = vadd.f32 %v1543, %v2524
    %v2527 = vtanh.pop %v2526
    %v2528 = vtanh.pop %v2031
    %v2530 = vsel %vm68, %v2528, 0
    %2532 = vmatprep.subr.mxu0 0.0
    %2533 = vmatpush1.msra.mxu0 0.0
    %2534 = vmatprep.subr.mxu0 0.0
    %2535 = vmatpush1.msra.mxu0 0.0
    %2536 = vmatprep.subr.mxu0 0.0
    %2537 = vmatpush1.msra.mxu0 0.0
    %2538 = vmatprep.subr.mxu0 0.0
    %2539 = vmatpush1.msra.mxu0 0.0
    %2540 = vmatprep.subr.mxu0 0.0
    %2541 = vmatpush1.msra.mxu0 0.0
    %2542 = vmatprep.subr.mxu0 0.0
    %2543 = vmatpush1.msra.mxu0 0.0
    %2544 = vmatprep.subr.mxu0 0.0
    %2545 = vmatpush1.msra.mxu0 0.0
    %2546 = vmatprep.subr.mxu0 0.0
    %2547 = vmatpush1.msra.mxu0 0.0
    %2548 = vmatprep.subr.mxu0 0.0
    %2549 = vmatpush1.msra.mxu0 0.0
    %2550 = vmatprep.subr.mxu0 0.0
    %2551 = vmatpush1.msra.mxu0 0.0
    %2552 = vmatprep.subr.mxu0 0.0
    %2553 = vmatpush1.msra.mxu0 0.0
    %2554 = vmatprep.subr.mxu0 0.0
    %2555 = vmatpush1.msra.mxu0 0.0
    %2556 = vmatprep.subr.mxu0 0.0
    %v2557 = vand.u32 %v55, 4294901760
    %2558 = vmatpush1.msra.mxu0 %v2557
    %2559 = vmatprep.subr.mxu0 0.0
    %v2560 = vand.u32 %v54, 4294901760
    %2561 = vmatpush1.msra.mxu0 %v2560
    %2562 = vmatprep.subr.mxu0 0.0
    %v2563 = vand.u32 %v53, 4294901760
    %2564 = vmatpush1.msra.mxu0 %v2563
    %2565 = vmatprep.subr.mxu0 0.0
    %v2566 = vand.u32 %v52, 4294901760
    %2567 = vmatpush1.msra.mxu0 %v2566
    %2568 = vmatprep.subr.mxu0 0.0
    %2569 = vmatpush2.msra.mxu0 0.0
    %2570 = vmatprep.subr.mxu0 0.0
    %2571 = vmatpush2.msra.mxu0 0.0
    %2572 = vmatprep.subr.mxu0 0.0
    %2573 = vmatpush2.msra.mxu0 0.0
    %2574 = vmatprep.subr.mxu0 0.0
    %2575 = vmatpush2.msra.mxu0 0.0
    %2576 = vmatprep.subr.mxu0 0.0
    %2577 = vmatpush2.msra.mxu0 0.0
    %2578 = vmatprep.subr.mxu0 0.0
    %2579 = vmatpush2.msra.mxu0 0.0
    %2580 = vmatprep.subr.mxu0 0.0
    %2581 = vmatpush2.msra.mxu0 0.0
    %2582 = vmatprep.subr.mxu0 0.0
    %2583 = vmatpush2.msra.mxu0 0.0
    %2584 = vmatprep.subr.mxu0 0.0
    %2585 = vmatpush2.msra.mxu0 0.0
    %2586 = vmatprep.subr.mxu0 0.0
    %2587 = vmatpush2.msra.mxu0 0.0
    %2588 = vmatprep.subr.mxu0 0.0
    %2589 = vmatpush2.msra.mxu0 0.0
    %2590 = vmatprep.subr.mxu0 0.0
    %2591 = vmatpush2.msra.mxu0 0.0
    %2592 = vmatprep.subr.mxu0 0.0
    %2593 = vmatpush2.msra.mxu0 0.0
    %2594 = vmatprep.subr.mxu0 0.0
    %2595 = vmatpush2.msra.mxu0 0.0
    %2596 = vmatprep.subr.mxu0 0.0
    %2597 = vmatpush2.msra.mxu0 0.0
    %2598 = vmatprep.subr.mxu0 0.0
    %2599 = vmatpush2.msra.mxu0 0.0
    %2600 = vmatprep.mubr.f32.mxu0 0.0
    %v2601 = vand.u32 %v2530, 4294901760
    %v2602 = vsub.f32 %v2530, %v2601
    %v2603 = vand.u32 %v2602, 4294901760
    %v2604 = vsub.f32 %v2602, %v2603
    %v2605 = vand.u32 %v2604, 4294901760
    %2606 = vmatmul.mubr.f32.gmra.mxu0 %v2605
    %v2607 = vpop.f32.mrf.mxu0
    %v2608 = vadd.f32 0.0, %v2607
    %v2609 = vpop.f32.mrf.mxu0
    %2610 = vdwg.mxu0
    %2611 = vmatprep.subr.mxu0 0.0
    %2612 = vmatpush1.msra.mxu0 0.0
    %2613 = vmatprep.subr.mxu0 0.0
    %2614 = vmatpush1.msra.mxu0 0.0
    %2615 = vmatprep.subr.mxu0 0.0
    %2616 = vmatpush1.msra.mxu0 0.0
    %2617 = vmatprep.subr.mxu0 0.0
    %2618 = vmatpush1.msra.mxu0 0.0
    %2619 = vmatprep.subr.mxu0 0.0
    %2620 = vmatpush1.msra.mxu0 0.0
    %2621 = vmatprep.subr.mxu0 0.0
    %2622 = vmatpush1.msra.mxu0 0.0
    %2623 = vmatprep.subr.mxu0 0.0
    %2624 = vmatpush1.msra.mxu0 0.0
    %2625 = vmatprep.subr.mxu0 0.0
    %2626 = vmatpush1.msra.mxu0 0.0
    %2627 = vmatprep.subr.mxu0 0.0
    %2628 = vmatpush1.msra.mxu0 0.0
    %2629 = vmatprep.subr.mxu0 0.0
    %2630 = vmatpush1.msra.mxu0 0.0
    %2631 = vmatprep.subr.mxu0 0.0
    %2632 = vmatpush1.msra.mxu0 0.0
    %2633 = vmatprep.subr.mxu0 0.0
    %2634 = vmatpush1.msra.mxu0 0.0
    %2635 = vmatprep.subr.mxu0 0.0
    %v2636 = vand.u32 %v55, 4294901760
    %v2637 = vsub.f32 %v55, %v2636
    %v2638 = vand.u32 %v2637, 4294901760
    %v2639 = vsub.f32 %v2637, %v2638
    %v2640 = vand.u32 %v2639, 4294901760
    %2641 = vmatpush1.msra.mxu0 %v2640
    %2642 = vmatprep.subr.mxu0 0.0
    %v2643 = vand.u32 %v54, 4294901760
    %v2644 = vsub.f32 %v54, %v2643
    %v2645 = vand.u32 %v2644, 4294901760
    %v2646 = vsub.f32 %v2644, %v2645
    %v2647 = vand.u32 %v2646, 4294901760
    %2648 = vmatpush1.msra.mxu0 %v2647
    %2649 = vmatprep.subr.mxu0 0.0
    %v2650 = vand.u32 %v53, 4294901760
    %v2651 = vsub.f32 %v53, %v2650
    %v2652 = vand.u32 %v2651, 4294901760
    %v2653 = vsub.f32 %v2651, %v2652
    %v2654 = vand.u32 %v2653, 4294901760
    %2655 = vmatpush1.msra.mxu0 %v2654
    %2656 = vmatprep.subr.mxu0 0.0
    %v2657 = vand.u32 %v52, 4294901760
    %v2658 = vsub.f32 %v52, %v2657
    %v2659 = vand.u32 %v2658, 4294901760
    %v2660 = vsub.f32 %v2658, %v2659
    %v2661 = vand.u32 %v2660, 4294901760
    %2662 = vmatpush1.msra.mxu0 %v2661
    %2663 = vmatprep.subr.mxu0 0.0
    %2664 = vmatpush2.msra.mxu0 0.0
    %2665 = vmatprep.subr.mxu0 0.0
    %2666 = vmatpush2.msra.mxu0 0.0
    %2667 = vmatprep.subr.mxu0 0.0
    %2668 = vmatpush2.msra.mxu0 0.0
    %2669 = vmatprep.subr.mxu0 0.0
    %2670 = vmatpush2.msra.mxu0 0.0
    %2671 = vmatprep.subr.mxu0 0.0
    %2672 = vmatpush2.msra.mxu0 0.0
    %2673 = vmatprep.subr.mxu0 0.0
    %2674 = vmatpush2.msra.mxu0 0.0
    %2675 = vmatprep.subr.mxu0 0.0
    %2676 = vmatpush2.msra.mxu0 0.0
    %2677 = vmatprep.subr.mxu0 0.0
    %2678 = vmatpush2.msra.mxu0 0.0
    %2679 = vmatprep.subr.mxu0 0.0
    %2680 = vmatpush2.msra.mxu0 0.0
    %2681 = vmatprep.subr.mxu0 0.0
    %2682 = vmatpush2.msra.mxu0 0.0
    %2683 = vmatprep.subr.mxu0 0.0
    %2684 = vmatpush2.msra.mxu0 0.0
    %2685 = vmatprep.subr.mxu0 0.0
    %2686 = vmatpush2.msra.mxu0 0.0
    %2687 = vmatprep.subr.mxu0 0.0
    %2688 = vmatpush2.msra.mxu0 0.0
    %2689 = vmatprep.subr.mxu0 0.0
    %2690 = vmatpush2.msra.mxu0 0.0
    %2691 = vmatprep.subr.mxu0 0.0
    %2692 = vmatpush2.msra.mxu0 0.0
    %2693 = vmatprep.subr.mxu0 0.0
    %2694 = vmatpush2.msra.mxu0 0.0
    %2695 = vmatprep.mubr.f32.mxu0 0.0
    %v2696 = vand.u32 %v2530, 4294901760
    %2697 = vmatmul.mubr.f32.gmra.mxu0 %v2696
    %v2698 = vpop.f32.mrf.mxu0
    %v2699 = vadd.f32 %v2608, %v2698
    %v2700 = vpop.f32.mrf.mxu0
    %2701 = vdwg.mxu0
    %2702 = vmatprep.subr.mxu0 0.0
    %2703 = vmatpush1.msra.mxu0 0.0
    %2704 = vmatprep.subr.mxu0 0.0
    %2705 = vmatpush1.msra.mxu0 0.0
    %2706 = vmatprep.subr.mxu0 0.0
    %2707 = vmatpush1.msra.mxu0 0.0
    %2708 = vmatprep.subr.mxu0 0.0
    %2709 = vmatpush1.msra.mxu0 0.0
    %2710 = vmatprep.subr.mxu0 0.0
    %2711 = vmatpush1.msra.mxu0 0.0
    %2712 = vmatprep.subr.mxu0 0.0
    %2713 = vmatpush1.msra.mxu0 0.0
    %2714 = vmatprep.subr.mxu0 0.0
    %2715 = vmatpush1.msra.mxu0 0.0
    %2716 = vmatprep.subr.mxu0 0.0
    %2717 = vmatpush1.msra.mxu0 0.0
    %2718 = vmatprep.subr.mxu0 0.0
    %2719 = vmatpush1.msra.mxu0 0.0
    %2720 = vmatprep.subr.mxu0 0.0
    %2721 = vmatpush1.msra.mxu0 0.0
    %2722 = vmatprep.subr.mxu0 0.0
    %2723 = vmatpush1.msra.mxu0 0.0
    %2724 = vmatprep.subr.mxu0 0.0
    %2725 = vmatpush1.msra.mxu0 0.0
    %2726 = vmatprep.subr.mxu0 0.0
    %v2727 = vand.u32 %v55, 4294901760
    %v2728 = vsub.f32 %v55, %v2727
    %2729 = vmatpush1.msra.mxu0 %v2728
    %2730 = vmatprep.subr.mxu0 0.0
    %v2731 = vand.u32 %v54, 4294901760
    %v2732 = vsub.f32 %v54, %v2731
    %2733 = vmatpush1.msra.mxu0 %v2732
    %2734 = vmatprep.subr.mxu0 0.0
    %v2735 = vand.u32 %v53, 4294901760
    %v2736 = vsub.f32 %v53, %v2735
    %2737 = vmatpush1.msra.mxu0 %v2736
    %2738 = vmatprep.subr.mxu0 0.0
    %v2739 = vand.u32 %v52, 4294901760
    %v2740 = vsub.f32 %v52, %v2739
    %2741 = vmatpush1.msra.mxu0 %v2740
    %2742 = vmatprep.subr.mxu0 0.0
    %2743 = vmatpush2.msra.mxu0 0.0
    %2744 = vmatprep.subr.mxu0 0.0
    %2745 = vmatpush2.msra.mxu0 0.0
    %2746 = vmatprep.subr.mxu0 0.0
    %2747 = vmatpush2.msra.mxu0 0.0
    %2748 = vmatprep.subr.mxu0 0.0
    %2749 = vmatpush2.msra.mxu0 0.0
    %2750 = vmatprep.subr.mxu0 0.0
    %2751 = vmatpush2.msra.mxu0 0.0
    %2752 = vmatprep.subr.mxu0 0.0
    %2753 = vmatpush2.msra.mxu0 0.0
    %2754 = vmatprep.subr.mxu0 0.0
    %2755 = vmatpush2.msra.mxu0 0.0
    %2756 = vmatprep.subr.mxu0 0.0
    %2757 = vmatpush2.msra.mxu0 0.0
    %2758 = vmatprep.subr.mxu0 0.0
    %2759 = vmatpush2.msra.mxu0 0.0
    %2760 = vmatprep.subr.mxu0 0.0
    %2761 = vmatpush2.msra.mxu0 0.0
    %2762 = vmatprep.subr.mxu0 0.0
    %2763 = vmatpush2.msra.mxu0 0.0
    %2764 = vmatprep.subr.mxu0 0.0
    %2765 = vmatpush2.msra.mxu0 0.0
    %2766 = vmatprep.subr.mxu0 0.0
    %2767 = vmatpush2.msra.mxu0 0.0
    %2768 = vmatprep.subr.mxu0 0.0
    %2769 = vmatpush2.msra.mxu0 0.0
    %2770 = vmatprep.subr.mxu0 0.0
    %2771 = vmatpush2.msra.mxu0 0.0
    %2772 = vmatprep.subr.mxu0 0.0
    %2773 = vmatpush2.msra.mxu0 0.0
    %2774 = vmatprep.mubr.f32.mxu0 0.0
    %v2775 = vand.u32 %v2530, 4294901760
    %v2776 = vsub.f32 %v2530, %v2775
    %2777 = vmatmul.mubr.f32.gmra.mxu0 %v2776
    %v2778 = vpop.f32.mrf.mxu0
    %v2779 = vadd.f32 %v2699, %v2778
    %v2780 = vpop.f32.mrf.mxu0
    %2781 = vdwg.mxu0
    %2782 = vmatprep.subr.mxu0 0.0
    %2783 = vmatpush1.msra.mxu0 0.0
    %2784 = vmatprep.subr.mxu0 0.0
    %2785 = vmatpush1.msra.mxu0 0.0
    %2786 = vmatprep.subr.mxu0 0.0
    %2787 = vmatpush1.msra.mxu0 0.0
    %2788 = vmatprep.subr.mxu0 0.0
    %2789 = vmatpush1.msra.mxu0 0.0
    %2790 = vmatprep.subr.mxu0 0.0
    %2791 = vmatpush1.msra.mxu0 0.0
    %2792 = vmatprep.subr.mxu0 0.0
    %2793 = vmatpush1.msra.mxu0 0.0
    %2794 = vmatprep.subr.mxu0 0.0
    %2795 = vmatpush1.msra.mxu0 0.0
    %2796 = vmatprep.subr.mxu0 0.0
    %2797 = vmatpush1.msra.mxu0 0.0
    %2798 = vmatprep.subr.mxu0 0.0
    %2799 = vmatpush1.msra.mxu0 0.0
    %2800 = vmatprep.subr.mxu0 0.0
    %2801 = vmatpush1.msra.mxu0 0.0
    %2802 = vmatprep.subr.mxu0 0.0
    %2803 = vmatpush1.msra.mxu0 0.0
    %2804 = vmatprep.subr.mxu0 0.0
    %2805 = vmatpush1.msra.mxu0 0.0
    %2806 = vmatprep.subr.mxu0 0.0
    %v2807 = vand.u32 %v55, 4294901760
    %2808 = vmatpush1.msra.mxu0 %v2807
    %2809 = vmatprep.subr.mxu0 0.0
    %v2810 = vand.u32 %v54, 4294901760
    %2811 = vmatpush1.msra.mxu0 %v2810
    %2812 = vmatprep.subr.mxu0 0.0
    %v2813 = vand.u32 %v53, 4294901760
    %2814 = vmatpush1.msra.mxu0 %v2813
    %2815 = vmatprep.subr.mxu0 0.0
    %v2816 = vand.u32 %v52, 4294901760
    %2817 = vmatpush1.msra.mxu0 %v2816
    %2818 = vmatprep.subr.mxu0 0.0
    %2819 = vmatpush2.msra.mxu0 0.0
    %2820 = vmatprep.subr.mxu0 0.0
    %2821 = vmatpush2.msra.mxu0 0.0
    %2822 = vmatprep.subr.mxu0 0.0
    %2823 = vmatpush2.msra.mxu0 0.0
    %2824 = vmatprep.subr.mxu0 0.0
    %2825 = vmatpush2.msra.mxu0 0.0
    %2826 = vmatprep.subr.mxu0 0.0
    %2827 = vmatpush2.msra.mxu0 0.0
    %2828 = vmatprep.subr.mxu0 0.0
    %2829 = vmatpush2.msra.mxu0 0.0
    %2830 = vmatprep.subr.mxu0 0.0
    %2831 = vmatpush2.msra.mxu0 0.0
    %2832 = vmatprep.subr.mxu0 0.0
    %2833 = vmatpush2.msra.mxu0 0.0
    %2834 = vmatprep.subr.mxu0 0.0
    %2835 = vmatpush2.msra.mxu0 0.0
    %2836 = vmatprep.subr.mxu0 0.0
    %2837 = vmatpush2.msra.mxu0 0.0
    %2838 = vmatprep.subr.mxu0 0.0
    %2839 = vmatpush2.msra.mxu0 0.0
    %2840 = vmatprep.subr.mxu0 0.0
    %2841 = vmatpush2.msra.mxu0 0.0
    %2842 = vmatprep.subr.mxu0 0.0
    %2843 = vmatpush2.msra.mxu0 0.0
    %2844 = vmatprep.subr.mxu0 0.0
    %2845 = vmatpush2.msra.mxu0 0.0
    %2846 = vmatprep.subr.mxu0 0.0
    %2847 = vmatpush2.msra.mxu0 0.0
    %2848 = vmatprep.subr.mxu0 0.0
    %2849 = vmatpush2.msra.mxu0 0.0
    %2850 = vmatprep.mubr.f32.mxu0 0.0
    %v2851 = vand.u32 %v2530, 4294901760
    %v2852 = vsub.f32 %v2530, %v2851
    %v2853 = vand.u32 %v2852, 4294901760
    %2854 = vmatmul.mubr.f32.gmra.mxu0 %v2853
    %v2855 = vpop.f32.mrf.mxu0
    %v2856 = vadd.f32 %v2779, %v2855
    %v2857 = vpop.f32.mrf.mxu0
    %2858 = vdwg.mxu0
    %2859 = vmatprep.subr.mxu0 0.0
    %2860 = vmatpush1.msra.mxu0 0.0
    %2861 = vmatprep.subr.mxu0 0.0
    %2862 = vmatpush1.msra.mxu0 0.0
    %2863 = vmatprep.subr.mxu0 0.0
    %2864 = vmatpush1.msra.mxu0 0.0
    %2865 = vmatprep.subr.mxu0 0.0
    %2866 = vmatpush1.msra.mxu0 0.0
    %2867 = vmatprep.subr.mxu0 0.0
    %2868 = vmatpush1.msra.mxu0 0.0
    %2869 = vmatprep.subr.mxu0 0.0
    %2870 = vmatpush1.msra.mxu0 0.0
    %2871 = vmatprep.subr.mxu0 0.0
    %2872 = vmatpush1.msra.mxu0 0.0
    %2873 = vmatprep.subr.mxu0 0.0
    %2874 = vmatpush1.msra.mxu0 0.0
    %2875 = vmatprep.subr.mxu0 0.0
    %2876 = vmatpush1.msra.mxu0 0.0
    %2877 = vmatprep.subr.mxu0 0.0
    %2878 = vmatpush1.msra.mxu0 0.0
    %2879 = vmatprep.subr.mxu0 0.0
    %2880 = vmatpush1.msra.mxu0 0.0
    %2881 = vmatprep.subr.mxu0 0.0
    %2882 = vmatpush1.msra.mxu0 0.0
    %2883 = vmatprep.subr.mxu0 0.0
    %v2884 = vand.u32 %v55, 4294901760
    %v2885 = vsub.f32 %v55, %v2884
    %v2886 = vand.u32 %v2885, 4294901760
    %2887 = vmatpush1.msra.mxu0 %v2886
    %2888 = vmatprep.subr.mxu0 0.0
    %v2889 = vand.u32 %v54, 4294901760
    %v2890 = vsub.f32 %v54, %v2889
    %v2891 = vand.u32 %v2890, 4294901760
    %2892 = vmatpush1.msra.mxu0 %v2891
    %2893 = vmatprep.subr.mxu0 0.0
    %v2894 = vand.u32 %v53, 4294901760
    %v2895 = vsub.f32 %v53, %v2894
    %v2896 = vand.u32 %v2895, 4294901760
    %2897 = vmatpush1.msra.mxu0 %v2896
    %2898 = vmatprep.subr.mxu0 0.0
    %v2899 = vand.u32 %v52, 4294901760
    %v2900 = vsub.f32 %v52, %v2899
    %v2901 = vand.u32 %v2900, 4294901760
    %2902 = vmatpush1.msra.mxu0 %v2901
    %2903 = vmatprep.subr.mxu0 0.0
    %2904 = vmatpush2.msra.mxu0 0.0
    %2905 = vmatprep.subr.mxu0 0.0
    %2906 = vmatpush2.msra.mxu0 0.0
    %2907 = vmatprep.subr.mxu0 0.0
    %2908 = vmatpush2.msra.mxu0 0.0
    %2909 = vmatprep.subr.mxu0 0.0
    %2910 = vmatpush2.msra.mxu0 0.0
    %2911 = vmatprep.subr.mxu0 0.0
    %2912 = vmatpush2.msra.mxu0 0.0
    %2913 = vmatprep.subr.mxu0 0.0
    %2914 = vmatpush2.msra.mxu0 0.0
    %2915 = vmatprep.subr.mxu0 0.0
    %2916 = vmatpush2.msra.mxu0 0.0
    %2917 = vmatprep.subr.mxu0 0.0
    %2918 = vmatpush2.msra.mxu0 0.0
    %2919 = vmatprep.subr.mxu0 0.0
    %2920 = vmatpush2.msra.mxu0 0.0
    %2921 = vmatprep.subr.mxu0 0.0
    %2922 = vmatpush2.msra.mxu0 0.0
    %2923 = vmatprep.subr.mxu0 0.0
    %2924 = vmatpush2.msra.mxu0 0.0
    %2925 = vmatprep.subr.mxu0 0.0
    %2926 = vmatpush2.msra.mxu0 0.0
    %2927 = vmatprep.subr.mxu0 0.0
    %2928 = vmatpush2.msra.mxu0 0.0
    %2929 = vmatprep.subr.mxu0 0.0
    %2930 = vmatpush2.msra.mxu0 0.0
    %2931 = vmatprep.subr.mxu0 0.0
    %2932 = vmatpush2.msra.mxu0 0.0
    %2933 = vmatprep.subr.mxu0 0.0
    %2934 = vmatpush2.msra.mxu0 0.0
    %2935 = vmatprep.mubr.f32.mxu0 0.0
    %v2936 = vand.u32 %v2530, 4294901760
    %2937 = vmatmul.mubr.f32.gmra.mxu0 %v2936
    %v2938 = vpop.f32.mrf.mxu0
    %v2939 = vadd.f32 %v2856, %v2938
    %v2940 = vpop.f32.mrf.mxu0
    %2941 = vdwg.mxu0
    %2942 = vmatprep.subr.mxu0 0.0
    %2943 = vmatpush1.msra.mxu0 0.0
    %2944 = vmatprep.subr.mxu0 0.0
    %2945 = vmatpush1.msra.mxu0 0.0
    %2946 = vmatprep.subr.mxu0 0.0
    %2947 = vmatpush1.msra.mxu0 0.0
    %2948 = vmatprep.subr.mxu0 0.0
    %2949 = vmatpush1.msra.mxu0 0.0
    %2950 = vmatprep.subr.mxu0 0.0
    %2951 = vmatpush1.msra.mxu0 0.0
    %2952 = vmatprep.subr.mxu0 0.0
    %2953 = vmatpush1.msra.mxu0 0.0
    %2954 = vmatprep.subr.mxu0 0.0
    %2955 = vmatpush1.msra.mxu0 0.0
    %2956 = vmatprep.subr.mxu0 0.0
    %2957 = vmatpush1.msra.mxu0 0.0
    %2958 = vmatprep.subr.mxu0 0.0
    %2959 = vmatpush1.msra.mxu0 0.0
    %2960 = vmatprep.subr.mxu0 0.0
    %2961 = vmatpush1.msra.mxu0 0.0
    %2962 = vmatprep.subr.mxu0 0.0
    %2963 = vmatpush1.msra.mxu0 0.0
    %2964 = vmatprep.subr.mxu0 0.0
    %2965 = vmatpush1.msra.mxu0 0.0
    %2966 = vmatprep.subr.mxu0 0.0
    %v2967 = vand.u32 %v55, 4294901760
    %2968 = vmatpush1.msra.mxu0 %v2967
    %2969 = vmatprep.subr.mxu0 0.0
    %v2970 = vand.u32 %v54, 4294901760
    %2971 = vmatpush1.msra.mxu0 %v2970
    %2972 = vmatprep.subr.mxu0 0.0
    %v2973 = vand.u32 %v53, 4294901760
    %2974 = vmatpush1.msra.mxu0 %v2973
    %2975 = vmatprep.subr.mxu0 0.0
    %v2976 = vand.u32 %v52, 4294901760
    %2977 = vmatpush1.msra.mxu0 %v2976
    %2978 = vmatprep.subr.mxu0 0.0
    %2979 = vmatpush2.msra.mxu0 0.0
    %2980 = vmatprep.subr.mxu0 0.0
    %2981 = vmatpush2.msra.mxu0 0.0
    %2982 = vmatprep.subr.mxu0 0.0
    %2983 = vmatpush2.msra.mxu0 0.0
    %2984 = vmatprep.subr.mxu0 0.0
    %2985 = vmatpush2.msra.mxu0 0.0
    %2986 = vmatprep.subr.mxu0 0.0
    %2987 = vmatpush2.msra.mxu0 0.0
    %2988 = vmatprep.subr.mxu0 0.0
    %2989 = vmatpush2.msra.mxu0 0.0
    %2990 = vmatprep.subr.mxu0 0.0
    %2991 = vmatpush2.msra.mxu0 0.0
    %2992 = vmatprep.subr.mxu0 0.0
    %2993 = vmatpush2.msra.mxu0 0.0
    %2994 = vmatprep.subr.mxu0 0.0
    %2995 = vmatpush2.msra.mxu0 0.0
    %2996 = vmatprep.subr.mxu0 0.0
    %2997 = vmatpush2.msra.mxu0 0.0
    %2998 = vmatprep.subr.mxu0 0.0
    %2999 = vmatpush2.msra.mxu0 0.0
    %3000 = vmatprep.subr.mxu0 0.0
    %3001 = vmatpush2.msra.mxu0 0.0
    %3002 = vmatprep.subr.mxu0 0.0
    %3003 = vmatpush2.msra.mxu0 0.0
    %3004 = vmatprep.subr.mxu0 0.0
    %3005 = vmatpush2.msra.mxu0 0.0
    %3006 = vmatprep.subr.mxu0 0.0
    %3007 = vmatpush2.msra.mxu0 0.0
    %3008 = vmatprep.subr.mxu0 0.0
    %3009 = vmatpush2.msra.mxu0 0.0
    %3010 = vmatprep.mubr.f32.mxu0 0.0
    %v3011 = vand.u32 %v2530, 4294901760
    %3012 = vmatmul.mubr.f32.gmra.mxu0 %v3011
    %v3013 = vpop.f32.mrf.mxu0
    %v3014 = vadd.f32 %v2939, %v3013
    %v3015 = vpop.f32.mrf.mxu0
    %3016 = vdwg.mxu0
    %v3018 = vrot.slane %v3014, 4
    %v3020 = vadd.f32 %v2031, %v3018
    %v3021 = vtanh.pop %v3020
    %v3022 = vld [vmem:[%s5 + $0x10] sm:$0xf]
    %v3023 = vmul.f32 %v2034, %v3022
    %v3024 = vld [vmem:[%s5 + $0x14] sm:$0xf]
    %v3026 = vrot.slane %v3024, 4
    %v3028 = vmul.f32 %v2527, %v3026
    %v3029 = vld [vmem:[%s5 + $0x18] sm:$0xf]
    %v3030 = vmul.f32 %v2528, %v3029
    %v3031 = vld [vmem:[%s5 + $0x1c] sm:$0xf]
    %v3033 = vrot.slane %v3031, 4
    %v3035 = vmul.f32 %v3021, %v3033
    %v3036 = vstv %s36
    %v3037 = vmul.f32 %v3023, %v3036
    %v3038 = vstv %s37
    %v3039 = vmul.f32 %v3028, %v3038
    %v3041 = vrot.slane %v3039, 4
    %v3043 = vadd.f32 %v3037, %v3041
    %v3044 = vstv %s38
    %v3045 = vadd.f32 %v3043, %v3044
    %v3046 = vmul.f32 %v3030, %v3036
    %v3047 = vmul.f32 %v3035, %v3038
    %v3049 = vrot.slane %v3047, 4
    %v3051 = vadd.f32 %v3046, %v3049
    %v3052 = vadd.f32 %v3051, %v3044
    %v3053 = vlaneseq
    %v3054 = vshrl.u32 %v3053, 7
    %v3055 = vsub.s32 0, %v3054
    %v3056 = vrot.slane %v63, %v3055
    %v3058 = vsel %vm68, %v3045, 0
    %3060 = vmatprep.subr.mxu0 0.0
    %3061 = vmatpush1.msra.mxu0 0.0
    %3062 = vmatprep.subr.mxu0 0.0
    %3063 = vmatpush1.msra.mxu0 0.0
    %3064 = vmatprep.subr.mxu0 0.0
    %3065 = vmatpush1.msra.mxu0 0.0
    %3066 = vmatprep.subr.mxu0 0.0
    %3067 = vmatpush1.msra.mxu0 0.0
    %3068 = vmatprep.subr.mxu0 0.0
    %3069 = vmatpush1.msra.mxu0 0.0
    %3070 = vmatprep.subr.mxu0 0.0
    %3071 = vmatpush1.msra.mxu0 0.0
    %3072 = vmatprep.subr.mxu0 0.0
    %3073 = vmatpush1.msra.mxu0 0.0
    %3074 = vmatprep.subr.mxu0 0.0
    %3075 = vmatpush1.msra.mxu0 0.0
    %3076 = vmatprep.subr.mxu0 0.0
    %3077 = vmatpush1.msra.mxu0 0.0
    %3078 = vmatprep.subr.mxu0 0.0
    %3079 = vmatpush1.msra.mxu0 0.0
    %3080 = vmatprep.subr.mxu0 0.0
    %3081 = vmatpush1.msra.mxu0 0.0
    %3082 = vmatprep.subr.mxu0 0.0
    %3083 = vmatpush1.msra.mxu0 0.0
    %3084 = vmatprep.subr.mxu0 0.0
    %v3085 = vand.u32 %v59, 4294901760
    %3086 = vmatpush1.msra.mxu0 %v3085
    %3087 = vmatprep.subr.mxu0 0.0
    %v3088 = vand.u32 %v58, 4294901760
    %3089 = vmatpush1.msra.mxu0 %v3088
    %3090 = vmatprep.subr.mxu0 0.0
    %v3091 = vand.u32 %v57, 4294901760
    %3092 = vmatpush1.msra.mxu0 %v3091
    %3093 = vmatprep.subr.mxu0 0.0
    %v3094 = vand.u32 %v56, 4294901760
    %3095 = vmatpush1.msra.mxu0 %v3094
    %3096 = vmatprep.subr.mxu0 0.0
    %3097 = vmatpush2.msra.mxu0 0.0
    %3098 = vmatprep.subr.mxu0 0.0
    %3099 = vmatpush2.msra.mxu0 0.0
    %3100 = vmatprep.subr.mxu0 0.0
    %3101 = vmatpush2.msra.mxu0 0.0
    %3102 = vmatprep.subr.mxu0 0.0
    %3103 = vmatpush2.msra.mxu0 0.0
    %3104 = vmatprep.subr.mxu0 0.0
    %3105 = vmatpush2.msra.mxu0 0.0
    %3106 = vmatprep.subr.mxu0 0.0
    %3107 = vmatpush2.msra.mxu0 0.0
    %3108 = vmatprep.subr.mxu0 0.0
    %3109 = vmatpush2.msra.mxu0 0.0
    %3110 = vmatprep.subr.mxu0 0.0
    %3111 = vmatpush2.msra.mxu0 0.0
    %3112 = vmatprep.subr.mxu0 0.0
    %3113 = vmatpush2.msra.mxu0 0.0
    %3114 = vmatprep.subr.mxu0 0.0
    %3115 = vmatpush2.msra.mxu0 0.0
    %3116 = vmatprep.subr.mxu0 0.0
    %3117 = vmatpush2.msra.mxu0 0.0
    %3118 = vmatprep.subr.mxu0 0.0
    %3119 = vmatpush2.msra.mxu0 0.0
    %3120 = vmatprep.subr.mxu0 0.0
    %3121 = vmatpush2.msra.mxu0 0.0
    %3122 = vmatprep.subr.mxu0 0.0
    %3123 = vmatpush2.msra.mxu0 0.0
    %3124 = vmatprep.subr.mxu0 0.0
    %3125 = vmatpush2.msra.mxu0 0.0
    %3126 = vmatprep.subr.mxu0 0.0
    %3127 = vmatpush2.msra.mxu0 0.0
    %3128 = vmatprep.mubr.f32.mxu0 0.0
    %v3129 = vand.u32 %v3058, 4294901760
    %v3130 = vsub.f32 %v3058, %v3129
    %v3131 = vand.u32 %v3130, 4294901760
    %v3132 = vsub.f32 %v3130, %v3131
    %v3133 = vand.u32 %v3132, 4294901760
    %3134 = vmatmul.mubr.f32.gmra.mxu0 %v3133
    %v3135 = vpop.f32.mrf.mxu0
    %v3136 = vadd.f32 %v3056, %v3135
    %v3137 = vpop.f32.mrf.mxu0
    %3138 = vdwg.mxu0
    %3139 = vmatprep.subr.mxu0 0.0
    %3140 = vmatpush1.msra.mxu0 0.0
    %3141 = vmatprep.subr.mxu0 0.0
    %3142 = vmatpush1.msra.mxu0 0.0
    %3143 = vmatprep.subr.mxu0 0.0
    %3144 = vmatpush1.msra.mxu0 0.0
    %3145 = vmatprep.subr.mxu0 0.0
    %3146 = vmatpush1.msra.mxu0 0.0
    %3147 = vmatprep.subr.mxu0 0.0
    %3148 = vmatpush1.msra.mxu0 0.0
    %3149 = vmatprep.subr.mxu0 0.0
    %3150 = vmatpush1.msra.mxu0 0.0
    %3151 = vmatprep.subr.mxu0 0.0
    %3152 = vmatpush1.msra.mxu0 0.0
    %3153 = vmatprep.subr.mxu0 0.0
    %3154 = vmatpush1.msra.mxu0 0.0
    %3155 = vmatprep.subr.mxu0 0.0
    %3156 = vmatpush1.msra.mxu0 0.0
    %3157 = vmatprep.subr.mxu0 0.0
    %3158 = vmatpush1.msra.mxu0 0.0
    %3159 = vmatprep.subr.mxu0 0.0
    %3160 = vmatpush1.msra.mxu0 0.0
    %3161 = vmatprep.subr.mxu0 0.0
    %3162 = vmatpush1.msra.mxu0 0.0
    %3163 = vmatprep.subr.mxu0 0.0
    %v3164 = vand.u32 %v59, 4294901760
    %v3165 = vsub.f32 %v59, %v3164
    %v3166 = vand.u32 %v3165, 4294901760
    %v3167 = vsub.f32 %v3165, %v3166
    %v3168 = vand.u32 %v3167, 4294901760
    %3169 = vmatpush1.msra.mxu0 %v3168
    %3170 = vmatprep.subr.mxu0 0.0
    %v3171 = vand.u32 %v58, 4294901760
    %v3172 = vsub.f32 %v58, %v3171
    %v3173 = vand.u32 %v3172, 4294901760
    %v3174 = vsub.f32 %v3172, %v3173
    %v3175 = vand.u32 %v3174, 4294901760
    %3176 = vmatpush1.msra.mxu0 %v3175
    %3177 = vmatprep.subr.mxu0 0.0
    %v3178 = vand.u32 %v57, 4294901760
    %v3179 = vsub.f32 %v57, %v3178
    %v3180 = vand.u32 %v3179, 4294901760
    %v3181 = vsub.f32 %v3179, %v3180
    %v3182 = vand.u32 %v3181, 4294901760
    %3183 = vmatpush1.msra.mxu0 %v3182
    %3184 = vmatprep.subr.mxu0 0.0
    %v3185 = vand.u32 %v56, 4294901760
    %v3186 = vsub.f32 %v56, %v3185
    %v3187 = vand.u32 %v3186, 4294901760
    %v3188 = vsub.f32 %v3186, %v3187
    %v3189 = vand.u32 %v3188, 4294901760
    %3190 = vmatpush1.msra.mxu0 %v3189
    %3191 = vmatprep.subr.mxu0 0.0
    %3192 = vmatpush2.msra.mxu0 0.0
    %3193 = vmatprep.subr.mxu0 0.0
    %3194 = vmatpush2.msra.mxu0 0.0
    %3195 = vmatprep.subr.mxu0 0.0
    %3196 = vmatpush2.msra.mxu0 0.0
    %3197 = vmatprep.subr.mxu0 0.0
    %3198 = vmatpush2.msra.mxu0 0.0
    %3199 = vmatprep.subr.mxu0 0.0
    %3200 = vmatpush2.msra.mxu0 0.0
    %3201 = vmatprep.subr.mxu0 0.0
    %3202 = vmatpush2.msra.mxu0 0.0
    %3203 = vmatprep.subr.mxu0 0.0
    %3204 = vmatpush2.msra.mxu0 0.0
    %3205 = vmatprep.subr.mxu0 0.0
    %3206 = vmatpush2.msra.mxu0 0.0
    %3207 = vmatprep.subr.mxu0 0.0
    %3208 = vmatpush2.msra.mxu0 0.0
    %3209 = vmatprep.subr.mxu0 0.0
    %3210 = vmatpush2.msra.mxu0 0.0
    %3211 = vmatprep.subr.mxu0 0.0
    %3212 = vmatpush2.msra.mxu0 0.0
    %3213 = vmatprep.subr.mxu0 0.0
    %3214 = vmatpush2.msra.mxu0 0.0
    %3215 = vmatprep.subr.mxu0 0.0
    %3216 = vmatpush2.msra.mxu0 0.0
    %3217 = vmatprep.subr.mxu0 0.0
    %3218 = vmatpush2.msra.mxu0 0.0
    %3219 = vmatprep.subr.mxu0 0.0
    %3220 = vmatpush2.msra.mxu0 0.0
    %3221 = vmatprep.subr.mxu0 0.0
    %3222 = vmatpush2.msra.mxu0 0.0
    %3223 = vmatprep.mubr.f32.mxu0 0.0
    %v3224 = vand.u32 %v3058, 4294901760
    %3225 = vmatmul.mubr.f32.gmra.mxu0 %v3224
    %v3226 = vpop.f32.mrf.mxu0
    %v3227 = vadd.f32 %v3136, %v3226
    %v3228 = vpop.f32.mrf.mxu0
    %3229 = vdwg.mxu0
    %3230 = vmatprep.subr.mxu0 0.0
    %3231 = vmatpush1.msra.mxu0 0.0
    %3232 = vmatprep.subr.mxu0 0.0
    %3233 = vmatpush1.msra.mxu0 0.0
    %3234 = vmatprep.subr.mxu0 0.0
    %3235 = vmatpush1.msra.mxu0 0.0
    %3236 = vmatprep.subr.mxu0 0.0
    %3237 = vmatpush1.msra.mxu0 0.0
    %3238 = vmatprep.subr.mxu0 0.0
    %3239 = vmatpush1.msra.mxu0 0.0
    %3240 = vmatprep.subr.mxu0 0.0
    %3241 = vmatpush1.msra.mxu0 0.0
    %3242 = vmatprep.subr.mxu0 0.0
    %3243 = vmatpush1.msra.mxu0 0.0
    %3244 = vmatprep.subr.mxu0 0.0
    %3245 = vmatpush1.msra.mxu0 0.0
    %3246 = vmatprep.subr.mxu0 0.0
    %3247 = vmatpush1.msra.mxu0 0.0
    %3248 = vmatprep.subr.mxu0 0.0
    %3249 = vmatpush1.msra.mxu0 0.0
    %3250 = vmatprep.subr.mxu0 0.0
    %3251 = vmatpush1.msra.mxu0 0.0
    %3252 = vmatprep.subr.mxu0 0.0
    %3253 = vmatpush1.msra.mxu0 0.0
    %3254 = vmatprep.subr.mxu0 0.0
    %v3255 = vand.u32 %v59, 4294901760
    %v3256 = vsub.f32 %v59, %v3255
    %3257 = vmatpush1.msra.mxu0 %v3256
    %3258 = vmatprep.subr.mxu0 0.0
    %v3259 = vand.u32 %v58, 4294901760
    %v3260 = vsub.f32 %v58, %v3259
    %3261 = vmatpush1.msra.mxu0 %v3260
    %3262 = vmatprep.subr.mxu0 0.0
    %v3263 = vand.u32 %v57, 4294901760
    %v3264 = vsub.f32 %v57, %v3263
    %3265 = vmatpush1.msra.mxu0 %v3264
    %3266 = vmatprep.subr.mxu0 0.0
    %v3267 = vand.u32 %v56, 4294901760
    %v3268 = vsub.f32 %v56, %v3267
    %3269 = vmatpush1.msra.mxu0 %v3268
    %3270 = vmatprep.subr.mxu0 0.0
    %3271 = vmatpush2.msra.mxu0 0.0
    %3272 = vmatprep.subr.mxu0 0.0
    %3273 = vmatpush2.msra.mxu0 0.0
    %3274 = vmatprep.subr.mxu0 0.0
    %3275 = vmatpush2.msra.mxu0 0.0
    %3276 = vmatprep.subr.mxu0 0.0
    %3277 = vmatpush2.msra.mxu0 0.0
    %3278 = vmatprep.subr.mxu0 0.0
    %3279 = vmatpush2.msra.mxu0 0.0
    %3280 = vmatprep.subr.mxu0 0.0
    %3281 = vmatpush2.msra.mxu0 0.0
    %3282 = vmatprep.subr.mxu0 0.0
    %3283 = vmatpush2.msra.mxu0 0.0
    %3284 = vmatprep.subr.mxu0 0.0
    %3285 = vmatpush2.msra.mxu0 0.0
    %3286 = vmatprep.subr.mxu0 0.0
    %3287 = vmatpush2.msra.mxu0 0.0
    %3288 = vmatprep.subr.mxu0 0.0
    %3289 = vmatpush2.msra.mxu0 0.0
    %3290 = vmatprep.subr.mxu0 0.0
    %3291 = vmatpush2.msra.mxu0 0.0
    %3292 = vmatprep.subr.mxu0 0.0
    %3293 = vmatpush2.msra.mxu0 0.0
    %3294 = vmatprep.subr.mxu0 0.0
    %3295 = vmatpush2.msra.mxu0 0.0
    %3296 = vmatprep.subr.mxu0 0.0
    %3297 = vmatpush2.msra.mxu0 0.0
    %3298 = vmatprep.subr.mxu0 0.0
    %3299 = vmatpush2.msra.mxu0 0.0
    %3300 = vmatprep.subr.mxu0 0.0
    %3301 = vmatpush2.msra.mxu0 0.0
    %3302 = vmatprep.mubr.f32.mxu0 0.0
    %v3303 = vand.u32 %v3058, 4294901760
    %v3304 = vsub.f32 %v3058, %v3303
    %3305 = vmatmul.mubr.f32.gmra.mxu0 %v3304
    %v3306 = vpop.f32.mrf.mxu0
    %v3307 = vadd.f32 %v3227, %v3306
    %v3308 = vpop.f32.mrf.mxu0
    %3309 = vdwg.mxu0
    %3310 = vmatprep.subr.mxu0 0.0
    %3311 = vmatpush1.msra.mxu0 0.0
    %3312 = vmatprep.subr.mxu0 0.0
    %3313 = vmatpush1.msra.mxu0 0.0
    %3314 = vmatprep.subr.mxu0 0.0
    %3315 = vmatpush1.msra.mxu0 0.0
    %3316 = vmatprep.subr.mxu0 0.0
    %3317 = vmatpush1.msra.mxu0 0.0
    %3318 = vmatprep.subr.mxu0 0.0
    %3319 = vmatpush1.msra.mxu0 0.0
    %3320 = vmatprep.subr.mxu0 0.0
    %3321 = vmatpush1.msra.mxu0 0.0
    %3322 = vmatprep.subr.mxu0 0.0
    %3323 = vmatpush1.msra.mxu0 0.0
    %3324 = vmatprep.subr.mxu0 0.0
    %3325 = vmatpush1.msra.mxu0 0.0
    %3326 = vmatprep.subr.mxu0 0.0
    %3327 = vmatpush1.msra.mxu0 0.0
    %3328 = vmatprep.subr.mxu0 0.0
    %3329 = vmatpush1.msra.mxu0 0.0
    %3330 = vmatprep.subr.mxu0 0.0
    %3331 = vmatpush1.msra.mxu0 0.0
    %3332 = vmatprep.subr.mxu0 0.0
    %3333 = vmatpush1.msra.mxu0 0.0
    %3334 = vmatprep.subr.mxu0 0.0
    %v3335 = vand.u32 %v59, 4294901760
    %3336 = vmatpush1.msra.mxu0 %v3335
    %3337 = vmatprep.subr.mxu0 0.0
    %v3338 = vand.u32 %v58, 4294901760
    %3339 = vmatpush1.msra.mxu0 %v3338
    %3340 = vmatprep.subr.mxu0 0.0
    %v3341 = vand.u32 %v57, 4294901760
    %3342 = vmatpush1.msra.mxu0 %v3341
    %3343 = vmatprep.subr.mxu0 0.0
    %v3344 = vand.u32 %v56, 4294901760
    %3345 = vmatpush1.msra.mxu0 %v3344
    %3346 = vmatprep.subr.mxu0 0.0
    %3347 = vmatpush2.msra.mxu0 0.0
    %3348 = vmatprep.subr.mxu0 0.0
    %3349 = vmatpush2.msra.mxu0 0.0
    %3350 = vmatprep.subr.mxu0 0.0
    %3351 = vmatpush2.msra.mxu0 0.0
    %3352 = vmatprep.subr.mxu0 0.0
    %3353 = vmatpush2.msra.mxu0 0.0
    %3354 = vmatprep.subr.mxu0 0.0
    %3355 = vmatpush2.msra.mxu0 0.0
    %3356 = vmatprep.subr.mxu0 0.0
    %3357 = vmatpush2.msra.mxu0 0.0
    %3358 = vmatprep.subr.mxu0 0.0
    %3359 = vmatpush2.msra.mxu0 0.0
    %3360 = vmatprep.subr.mxu0 0.0
    %3361 = vmatpush2.msra.mxu0 0.0
    %3362 = vmatprep.subr.mxu0 0.0
    %3363 = vmatpush2.msra.mxu0 0.0
    %3364 = vmatprep.subr.mxu0 0.0
    %3365 = vmatpush2.msra.mxu0 0.0
    %3366 = vmatprep.subr.mxu0 0.0
    %3367 = vmatpush2.msra.mxu0 0.0
    %3368 = vmatprep.subr.mxu0 0.0
    %3369 = vmatpush2.msra.mxu0 0.0
    %3370 = vmatprep.subr.mxu0 0.0
    %3371 = vmatpush2.msra.mxu0 0.0
    %3372 = vmatprep.subr.mxu0 0.0
    %3373 = vmatpush2.msra.mxu0 0.0
    %3374 = vmatprep.subr.mxu0 0.0
    %3375 = vmatpush2.msra.mxu0 0.0
    %3376 = vmatprep.subr.mxu0 0.0
    %3377 = vmatpush2.msra.mxu0 0.0
    %3378 = vmatprep.mubr.f32.mxu0 0.0
    %v3379 = vand.u32 %v3058, 4294901760
    %v3380 = vsub.f32 %v3058, %v3379
    %v3381 = vand.u32 %v3380, 4294901760
    %3382 = vmatmul.mubr.f32.gmra.mxu0 %v3381
    %v3383 = vpop.f32.mrf.mxu0
    %v3384 = vadd.f32 %v3307, %v3383
    %v3385 = vpop.f32.mrf.mxu0
    %3386 = vdwg.mxu0
    %3387 = vmatprep.subr.mxu0 0.0
    %3388 = vmatpush1.msra.mxu0 0.0
    %3389 = vmatprep.subr.mxu0 0.0
    %3390 = vmatpush1.msra.mxu0 0.0
    %3391 = vmatprep.subr.mxu0 0.0
    %3392 = vmatpush1.msra.mxu0 0.0
    %3393 = vmatprep.subr.mxu0 0.0
    %3394 = vmatpush1.msra.mxu0 0.0
    %3395 = vmatprep.subr.mxu0 0.0
    %3396 = vmatpush1.msra.mxu0 0.0
    %3397 = vmatprep.subr.mxu0 0.0
    %3398 = vmatpush1.msra.mxu0 0.0
    %3399 = vmatprep.subr.mxu0 0.0
    %3400 = vmatpush1.msra.mxu0 0.0
    %3401 = vmatprep.subr.mxu0 0.0
    %3402 = vmatpush1.msra.mxu0 0.0
    %3403 = vmatprep.subr.mxu0 0.0
    %3404 = vmatpush1.msra.mxu0 0.0
    %3405 = vmatprep.subr.mxu0 0.0
    %3406 = vmatpush1.msra.mxu0 0.0
    %3407 = vmatprep.subr.mxu0 0.0
    %3408 = vmatpush1.msra.mxu0 0.0
    %3409 = vmatprep.subr.mxu0 0.0
    %3410 = vmatpush1.msra.mxu0 0.0
    %3411 = vmatprep.subr.mxu0 0.0
    %v3412 = vand.u32 %v59, 4294901760
    %v3413 = vsub.f32 %v59, %v3412
    %v3414 = vand.u32 %v3413, 4294901760
    %3415 = vmatpush1.msra.mxu0 %v3414
    %3416 = vmatprep.subr.mxu0 0.0
    %v3417 = vand.u32 %v58, 4294901760
    %v3418 = vsub.f32 %v58, %v3417
    %v3419 = vand.u32 %v3418, 4294901760
    %3420 = vmatpush1.msra.mxu0 %v3419
    %3421 = vmatprep.subr.mxu0 0.0
    %v3422 = vand.u32 %v57, 4294901760
    %v3423 = vsub.f32 %v57, %v3422
    %v3424 = vand.u32 %v3423, 4294901760
    %3425 = vmatpush1.msra.mxu0 %v3424
    %3426 = vmatprep.subr.mxu0 0.0
    %v3427 = vand.u32 %v56, 4294901760
    %v3428 = vsub.f32 %v56, %v3427
    %v3429 = vand.u32 %v3428, 4294901760
    %3430 = vmatpush1.msra.mxu0 %v3429
    %3431 = vmatprep.subr.mxu0 0.0
    %3432 = vmatpush2.msra.mxu0 0.0
    %3433 = vmatprep.subr.mxu0 0.0
    %3434 = vmatpush2.msra.mxu0 0.0
    %3435 = vmatprep.subr.mxu0 0.0
    %3436 = vmatpush2.msra.mxu0 0.0
    %3437 = vmatprep.subr.mxu0 0.0
    %3438 = vmatpush2.msra.mxu0 0.0
    %3439 = vmatprep.subr.mxu0 0.0
    %3440 = vmatpush2.msra.mxu0 0.0
    %3441 = vmatprep.subr.mxu0 0.0
    %3442 = vmatpush2.msra.mxu0 0.0
    %3443 = vmatprep.subr.mxu0 0.0
    %3444 = vmatpush2.msra.mxu0 0.0
    %3445 = vmatprep.subr.mxu0 0.0
    %3446 = vmatpush2.msra.mxu0 0.0
    %3447 = vmatprep.subr.mxu0 0.0
    %3448 = vmatpush2.msra.mxu0 0.0
    %3449 = vmatprep.subr.mxu0 0.0
    %3450 = vmatpush2.msra.mxu0 0.0
    %3451 = vmatprep.subr.mxu0 0.0
    %3452 = vmatpush2.msra.mxu0 0.0
    %3453 = vmatprep.subr.mxu0 0.0
    %3454 = vmatpush2.msra.mxu0 0.0
    %3455 = vmatprep.subr.mxu0 0.0
    %3456 = vmatpush2.msra.mxu0 0.0
    %3457 = vmatprep.subr.mxu0 0.0
    %3458 = vmatpush2.msra.mxu0 0.0
    %3459 = vmatprep.subr.mxu0 0.0
    %3460 = vmatpush2.msra.mxu0 0.0
    %3461 = vmatprep.subr.mxu0 0.0
    %3462 = vmatpush2.msra.mxu0 0.0
    %3463 = vmatprep.mubr.f32.mxu0 0.0
    %v3464 = vand.u32 %v3058, 4294901760
    %3465 = vmatmul.mubr.f32.gmra.mxu0 %v3464
    %v3466 = vpop.f32.mrf.mxu0
    %v3467 = vadd.f32 %v3384, %v3466
    %v3468 = vpop.f32.mrf.mxu0
    %3469 = vdwg.mxu0
    %3470 = vmatprep.subr.mxu0 0.0
    %3471 = vmatpush1.msra.mxu0 0.0
    %3472 = vmatprep.subr.mxu0 0.0
    %3473 = vmatpush1.msra.mxu0 0.0
    %3474 = vmatprep.subr.mxu0 0.0
    %3475 = vmatpush1.msra.mxu0 0.0
    %3476 = vmatprep.subr.mxu0 0.0
    %3477 = vmatpush1.msra.mxu0 0.0
    %3478 = vmatprep.subr.mxu0 0.0
    %3479 = vmatpush1.msra.mxu0 0.0
    %3480 = vmatprep.subr.mxu0 0.0
    %3481 = vmatpush1.msra.mxu0 0.0
    %3482 = vmatprep.subr.mxu0 0.0
    %3483 = vmatpush1.msra.mxu0 0.0
    %3484 = vmatprep.subr.mxu0 0.0
    %3485 = vmatpush1.msra.mxu0 0.0
    %3486 = vmatprep.subr.mxu0 0.0
    %3487 = vmatpush1.msra.mxu0 0.0
    %3488 = vmatprep.subr.mxu0 0.0
    %3489 = vmatpush1.msra.mxu0 0.0
    %3490 = vmatprep.subr.mxu0 0.0
    %3491 = vmatpush1.msra.mxu0 0.0
    %3492 = vmatprep.subr.mxu0 0.0
    %3493 = vmatpush1.msra.mxu0 0.0
    %3494 = vmatprep.subr.mxu0 0.0
    %v3495 = vand.u32 %v59, 4294901760
    %3496 = vmatpush1.msra.mxu0 %v3495
    %3497 = vmatprep.subr.mxu0 0.0
    %v3498 = vand.u32 %v58, 4294901760
    %3499 = vmatpush1.msra.mxu0 %v3498
    %3500 = vmatprep.subr.mxu0 0.0
    %v3501 = vand.u32 %v57, 4294901760
    %3502 = vmatpush1.msra.mxu0 %v3501
    %3503 = vmatprep.subr.mxu0 0.0
    %v3504 = vand.u32 %v56, 4294901760
    %3505 = vmatpush1.msra.mxu0 %v3504
    %3506 = vmatprep.subr.mxu0 0.0
    %3507 = vmatpush2.msra.mxu0 0.0
    %3508 = vmatprep.subr.mxu0 0.0
    %3509 = vmatpush2.msra.mxu0 0.0
    %3510 = vmatprep.subr.mxu0 0.0
    %3511 = vmatpush2.msra.mxu0 0.0
    %3512 = vmatprep.subr.mxu0 0.0
    %3513 = vmatpush2.msra.mxu0 0.0
    %3514 = vmatprep.subr.mxu0 0.0
    %3515 = vmatpush2.msra.mxu0 0.0
    %3516 = vmatprep.subr.mxu0 0.0
    %3517 = vmatpush2.msra.mxu0 0.0
    %3518 = vmatprep.subr.mxu0 0.0
    %3519 = vmatpush2.msra.mxu0 0.0
    %3520 = vmatprep.subr.mxu0 0.0
    %3521 = vmatpush2.msra.mxu0 0.0
    %3522 = vmatprep.subr.mxu0 0.0
    %3523 = vmatpush2.msra.mxu0 0.0
    %3524 = vmatprep.subr.mxu0 0.0
    %3525 = vmatpush2.msra.mxu0 0.0
    %3526 = vmatprep.subr.mxu0 0.0
    %3527 = vmatpush2.msra.mxu0 0.0
    %3528 = vmatprep.subr.mxu0 0.0
    %3529 = vmatpush2.msra.mxu0 0.0
    %3530 = vmatprep.subr.mxu0 0.0
    %3531 = vmatpush2.msra.mxu0 0.0
    %3532 = vmatprep.subr.mxu0 0.0
    %3533 = vmatpush2.msra.mxu0 0.0
    %3534 = vmatprep.subr.mxu0 0.0
    %3535 = vmatpush2.msra.mxu0 0.0
    %3536 = vmatprep.subr.mxu0 0.0
    %3537 = vmatpush2.msra.mxu0 0.0
    %3538 = vmatprep.mubr.f32.mxu0 0.0
    %v3539 = vand.u32 %v3058, 4294901760
    %3540 = vmatmul.mubr.f32.gmra.mxu0 %v3539
    %v3541 = vpop.f32.mrf.mxu0
    %v3542 = vadd.f32 %v3467, %v3541
    %v3543 = vpop.f32.mrf.mxu0
    %3544 = vdwg.mxu0
    %v3545 = vmax.f32 %v3542, -1.0
    %v3546 = vmin.f32 %v3545, 1.0
    %v3548 = vsel %vm68, %v3052, 0
    %3550 = vmatprep.subr.mxu0 0.0
    %3551 = vmatpush1.msra.mxu0 0.0
    %3552 = vmatprep.subr.mxu0 0.0
    %3553 = vmatpush1.msra.mxu0 0.0
    %3554 = vmatprep.subr.mxu0 0.0
    %3555 = vmatpush1.msra.mxu0 0.0
    %3556 = vmatprep.subr.mxu0 0.0
    %3557 = vmatpush1.msra.mxu0 0.0
    %3558 = vmatprep.subr.mxu0 0.0
    %3559 = vmatpush1.msra.mxu0 0.0
    %3560 = vmatprep.subr.mxu0 0.0
    %3561 = vmatpush1.msra.mxu0 0.0
    %3562 = vmatprep.subr.mxu0 0.0
    %3563 = vmatpush1.msra.mxu0 0.0
    %3564 = vmatprep.subr.mxu0 0.0
    %3565 = vmatpush1.msra.mxu0 0.0
    %3566 = vmatprep.subr.mxu0 0.0
    %3567 = vmatpush1.msra.mxu0 0.0
    %3568 = vmatprep.subr.mxu0 0.0
    %3569 = vmatpush1.msra.mxu0 0.0
    %3570 = vmatprep.subr.mxu0 0.0
    %3571 = vmatpush1.msra.mxu0 0.0
    %3572 = vmatprep.subr.mxu0 0.0
    %3573 = vmatpush1.msra.mxu0 0.0
    %3574 = vmatprep.subr.mxu0 0.0
    %v3575 = vand.u32 %v59, 4294901760
    %3576 = vmatpush1.msra.mxu0 %v3575
    %3577 = vmatprep.subr.mxu0 0.0
    %v3578 = vand.u32 %v58, 4294901760
    %3579 = vmatpush1.msra.mxu0 %v3578
    %3580 = vmatprep.subr.mxu0 0.0
    %v3581 = vand.u32 %v57, 4294901760
    %3582 = vmatpush1.msra.mxu0 %v3581
    %3583 = vmatprep.subr.mxu0 0.0
    %v3584 = vand.u32 %v56, 4294901760
    %3585 = vmatpush1.msra.mxu0 %v3584
    %3586 = vmatprep.subr.mxu0 0.0
    %3587 = vmatpush2.msra.mxu0 0.0
    %3588 = vmatprep.subr.mxu0 0.0
    %3589 = vmatpush2.msra.mxu0 0.0
    %3590 = vmatprep.subr.mxu0 0.0
    %3591 = vmatpush2.msra.mxu0 0.0
    %3592 = vmatprep.subr.mxu0 0.0
    %3593 = vmatpush2.msra.mxu0 0.0
    %3594 = vmatprep.subr.mxu0 0.0
    %3595 = vmatpush2.msra.mxu0 0.0
    %3596 = vmatprep.subr.mxu0 0.0
    %3597 = vmatpush2.msra.mxu0 0.0
    %3598 = vmatprep.subr.mxu0 0.0
    %3599 = vmatpush2.msra.mxu0 0.0
    %3600 = vmatprep.subr.mxu0 0.0
    %3601 = vmatpush2.msra.mxu0 0.0
    %3602 = vmatprep.subr.mxu0 0.0
    %3603 = vmatpush2.msra.mxu0 0.0
    %3604 = vmatprep.subr.mxu0 0.0
    %3605 = vmatpush2.msra.mxu0 0.0
    %3606 = vmatprep.subr.mxu0 0.0
    %3607 = vmatpush2.msra.mxu0 0.0
    %3608 = vmatprep.subr.mxu0 0.0
    %3609 = vmatpush2.msra.mxu0 0.0
    %3610 = vmatprep.subr.mxu0 0.0
    %3611 = vmatpush2.msra.mxu0 0.0
    %3612 = vmatprep.subr.mxu0 0.0
    %3613 = vmatpush2.msra.mxu0 0.0
    %3614 = vmatprep.subr.mxu0 0.0
    %3615 = vmatpush2.msra.mxu0 0.0
    %3616 = vmatprep.subr.mxu0 0.0
    %3617 = vmatpush2.msra.mxu0 0.0
    %3618 = vmatprep.mubr.f32.mxu0 0.0
    %v3619 = vand.u32 %v3548, 4294901760
    %v3620 = vsub.f32 %v3548, %v3619
    %v3621 = vand.u32 %v3620, 4294901760
    %v3622 = vsub.f32 %v3620, %v3621
    %v3623 = vand.u32 %v3622, 4294901760
    %3624 = vmatmul.mubr.f32.gmra.mxu0 %v3623
    %v3625 = vpop.f32.mrf.mxu0
    %v3626 = vadd.f32 %v3056, %v3625
    %v3627 = vpop.f32.mrf.mxu0
    %3628 = vdwg.mxu0
    %3629 = vmatprep.subr.mxu0 0.0
    %3630 = vmatpush1.msra.mxu0 0.0
    %3631 = vmatprep.subr.mxu0 0.0
    %3632 = vmatpush1.msra.mxu0 0.0
    %3633 = vmatprep.subr.mxu0 0.0
    %3634 = vmatpush1.msra.mxu0 0.0
    %3635 = vmatprep.subr.mxu0 0.0
    %3636 = vmatpush1.msra.mxu0 0.0
    %3637 = vmatprep.subr.mxu0 0.0
    %3638 = vmatpush1.msra.mxu0 0.0
    %3639 = vmatprep.subr.mxu0 0.0
    %3640 = vmatpush1.msra.mxu0 0.0
    %3641 = vmatprep.subr.mxu0 0.0
    %3642 = vmatpush1.msra.mxu0 0.0
    %3643 = vmatprep.subr.mxu0 0.0
    %3644 = vmatpush1.msra.mxu0 0.0
    %3645 = vmatprep.subr.mxu0 0.0
    %3646 = vmatpush1.msra.mxu0 0.0
    %3647 = vmatprep.subr.mxu0 0.0
    %3648 = vmatpush1.msra.mxu0 0.0
    %3649 = vmatprep.subr.mxu0 0.0
    %3650 = vmatpush1.msra.mxu0 0.0
    %3651 = vmatprep.subr.mxu0 0.0
    %3652 = vmatpush1.msra.mxu0 0.0
    %3653 = vmatprep.subr.mxu0 0.0
    %v3654 = vand.u32 %v59, 4294901760
    %v3655 = vsub.f32 %v59, %v3654
    %v3656 = vand.u32 %v3655, 4294901760
    %v3657 = vsub.f32 %v3655, %v3656
    %v3658 = vand.u32 %v3657, 4294901760
    %3659 = vmatpush1.msra.mxu0 %v3658
    %3660 = vmatprep.subr.mxu0 0.0
    %v3661 = vand.u32 %v58, 4294901760
    %v3662 = vsub.f32 %v58, %v3661
    %v3663 = vand.u32 %v3662, 4294901760
    %v3664 = vsub.f32 %v3662, %v3663
    %v3665 = vand.u32 %v3664, 4294901760
    %3666 = vmatpush1.msra.mxu0 %v3665
    %3667 = vmatprep.subr.mxu0 0.0
    %v3668 = vand.u32 %v57, 4294901760
    %v3669 = vsub.f32 %v57, %v3668
    %v3670 = vand.u32 %v3669, 4294901760
    %v3671 = vsub.f32 %v3669, %v3670
    %v3672 = vand.u32 %v3671, 4294901760
    %3673 = vmatpush1.msra.mxu0 %v3672
    %3674 = vmatprep.subr.mxu0 0.0
    %v3675 = vand.u32 %v56, 4294901760
    %v3676 = vsub.f32 %v56, %v3675
    %v3677 = vand.u32 %v3676, 4294901760
    %v3678 = vsub.f32 %v3676, %v3677
    %v3679 = vand.u32 %v3678, 4294901760
    %3680 = vmatpush1.msra.mxu0 %v3679
    %3681 = vmatprep.subr.mxu0 0.0
    %3682 = vmatpush2.msra.mxu0 0.0
    %3683 = vmatprep.subr.mxu0 0.0
    %3684 = vmatpush2.msra.mxu0 0.0
    %3685 = vmatprep.subr.mxu0 0.0
    %3686 = vmatpush2.msra.mxu0 0.0
    %3687 = vmatprep.subr.mxu0 0.0
    %3688 = vmatpush2.msra.mxu0 0.0
    %3689 = vmatprep.subr.mxu0 0.0
    %3690 = vmatpush2.msra.mxu0 0.0
    %3691 = vmatprep.subr.mxu0 0.0
    %3692 = vmatpush2.msra.mxu0 0.0
    %3693 = vmatprep.subr.mxu0 0.0
    %3694 = vmatpush2.msra.mxu0 0.0
    %3695 = vmatprep.subr.mxu0 0.0
    %3696 = vmatpush2.msra.mxu0 0.0
    %3697 = vmatprep.subr.mxu0 0.0
    %3698 = vmatpush2.msra.mxu0 0.0
    %3699 = vmatprep.subr.mxu0 0.0
    %3700 = vmatpush2.msra.mxu0 0.0
    %3701 = vmatprep.subr.mxu0 0.0
    %3702 = vmatpush2.msra.mxu0 0.0
    %3703 = vmatprep.subr.mxu0 0.0
    %3704 = vmatpush2.msra.mxu0 0.0
    %3705 = vmatprep.subr.mxu0 0.0
    %3706 = vmatpush2.msra.mxu0 0.0
    %3707 = vmatprep.subr.mxu0 0.0
    %3708 = vmatpush2.msra.mxu0 0.0
    %3709 = vmatprep.subr.mxu0 0.0
    %3710 = vmatpush2.msra.mxu0 0.0
    %3711 = vmatprep.subr.mxu0 0.0
    %3712 = vmatpush2.msra.mxu0 0.0
    %3713 = vmatprep.mubr.f32.mxu0 0.0
    %v3714 = vand.u32 %v3548, 4294901760
    %3715 = vmatmul.mubr.f32.gmra.mxu0 %v3714
    %v3716 = vpop.f32.mrf.mxu0
    %v3717 = vadd.f32 %v3626, %v3716
    %v3718 = vpop.f32.mrf.mxu0
    %3719 = vdwg.mxu0
    %3720 = vmatprep.subr.mxu0 0.0
    %3721 = vmatpush1.msra.mxu0 0.0
    %3722 = vmatprep.subr.mxu0 0.0
    %3723 = vmatpush1.msra.mxu0 0.0
    %3724 = vmatprep.subr.mxu0 0.0
    %3725 = vmatpush1.msra.mxu0 0.0
    %3726 = vmatprep.subr.mxu0 0.0
    %3727 = vmatpush1.msra.mxu0 0.0
    %3728 = vmatprep.subr.mxu0 0.0
    %3729 = vmatpush1.msra.mxu0 0.0
    %3730 = vmatprep.subr.mxu0 0.0
    %3731 = vmatpush1.msra.mxu0 0.0
    %3732 = vmatprep.subr.mxu0 0.0
    %3733 = vmatpush1.msra.mxu0 0.0
    %3734 = vmatprep.subr.mxu0 0.0
    %3735 = vmatpush1.msra.mxu0 0.0
    %3736 = vmatprep.subr.mxu0 0.0
    %3737 = vmatpush1.msra.mxu0 0.0
    %3738 = vmatprep.subr.mxu0 0.0
    %3739 = vmatpush1.msra.mxu0 0.0
    %3740 = vmatprep.subr.mxu0 0.0
    %3741 = vmatpush1.msra.mxu0 0.0
    %3742 = vmatprep.subr.mxu0 0.0
    %3743 = vmatpush1.msra.mxu0 0.0
    %3744 = vmatprep.subr.mxu0 0.0
    %v3745 = vand.u32 %v59, 4294901760
    %v3746 = vsub.f32 %v59, %v3745
    %3747 = vmatpush1.msra.mxu0 %v3746
    %3748 = vmatprep.subr.mxu0 0.0
    %v3749 = vand.u32 %v58, 4294901760
    %v3750 = vsub.f32 %v58, %v3749
    %3751 = vmatpush1.msra.mxu0 %v3750
    %3752 = vmatprep.subr.mxu0 0.0
    %v3753 = vand.u32 %v57, 4294901760
    %v3754 = vsub.f32 %v57, %v3753
    %3755 = vmatpush1.msra.mxu0 %v3754
    %3756 = vmatprep.subr.mxu0 0.0
    %v3757 = vand.u32 %v56, 4294901760
    %v3758 = vsub.f32 %v56, %v3757
    %3759 = vmatpush1.msra.mxu0 %v3758
    %3760 = vmatprep.subr.mxu0 0.0
    %3761 = vmatpush2.msra.mxu0 0.0
    %3762 = vmatprep.subr.mxu0 0.0
    %3763 = vmatpush2.msra.mxu0 0.0
    %3764 = vmatprep.subr.mxu0 0.0
    %3765 = vmatpush2.msra.mxu0 0.0
    %3766 = vmatprep.subr.mxu0 0.0
    %3767 = vmatpush2.msra.mxu0 0.0
    %3768 = vmatprep.subr.mxu0 0.0
    %3769 = vmatpush2.msra.mxu0 0.0
    %3770 = vmatprep.subr.mxu0 0.0
    %3771 = vmatpush2.msra.mxu0 0.0
    %3772 = vmatprep.subr.mxu0 0.0
    %3773 = vmatpush2.msra.mxu0 0.0
    %3774 = vmatprep.subr.mxu0 0.0
    %3775 = vmatpush2.msra.mxu0 0.0
    %3776 = vmatprep.subr.mxu0 0.0
    %3777 = vmatpush2.msra.mxu0 0.0
    %3778 = vmatprep.subr.mxu0 0.0
    %3779 = vmatpush2.msra.mxu0 0.0
    %3780 = vmatprep.subr.mxu0 0.0
    %3781 = vmatpush2.msra.mxu0 0.0
    %3782 = vmatprep.subr.mxu0 0.0
    %3783 = vmatpush2.msra.mxu0 0.0
    %3784 = vmatprep.subr.mxu0 0.0
    %3785 = vmatpush2.msra.mxu0 0.0
    %3786 = vmatprep.subr.mxu0 0.0
    %3787 = vmatpush2.msra.mxu0 0.0
    %3788 = vmatprep.subr.mxu0 0.0
    %3789 = vmatpush2.msra.mxu0 0.0
    %3790 = vmatprep.subr.mxu0 0.0
    %3791 = vmatpush2.msra.mxu0 0.0
    %3792 = vmatprep.mubr.f32.mxu0 0.0
    %v3793 = vand.u32 %v3548, 4294901760
    %v3794 = vsub.f32 %v3548, %v3793
    %3795 = vmatmul.mubr.f32.gmra.mxu0 %v3794
    %v3796 = vpop.f32.mrf.mxu0
    %v3797 = vadd.f32 %v3717, %v3796
    %v3798 = vpop.f32.mrf.mxu0
    %3799 = vdwg.mxu0
    %3800 = vmatprep.subr.mxu0 0.0
    %3801 = vmatpush1.msra.mxu0 0.0
    %3802 = vmatprep.subr.mxu0 0.0
    %3803 = vmatpush1.msra.mxu0 0.0
    %3804 = vmatprep.subr.mxu0 0.0
    %3805 = vmatpush1.msra.mxu0 0.0
    %3806 = vmatprep.subr.mxu0 0.0
    %3807 = vmatpush1.msra.mxu0 0.0
    %3808 = vmatprep.subr.mxu0 0.0
    %3809 = vmatpush1.msra.mxu0 0.0
    %3810 = vmatprep.subr.mxu0 0.0
    %3811 = vmatpush1.msra.mxu0 0.0
    %3812 = vmatprep.subr.mxu0 0.0
    %3813 = vmatpush1.msra.mxu0 0.0
    %3814 = vmatprep.subr.mxu0 0.0
    %3815 = vmatpush1.msra.mxu0 0.0
    %3816 = vmatprep.subr.mxu0 0.0
    %3817 = vmatpush1.msra.mxu0 0.0
    %3818 = vmatprep.subr.mxu0 0.0
    %3819 = vmatpush1.msra.mxu0 0.0
    %3820 = vmatprep.subr.mxu0 0.0
    %3821 = vmatpush1.msra.mxu0 0.0
    %3822 = vmatprep.subr.mxu0 0.0
    %3823 = vmatpush1.msra.mxu0 0.0
    %3824 = vmatprep.subr.mxu0 0.0
    %v3825 = vand.u32 %v59, 4294901760
    %3826 = vmatpush1.msra.mxu0 %v3825
    %3827 = vmatprep.subr.mxu0 0.0
    %v3828 = vand.u32 %v58, 4294901760
    %3829 = vmatpush1.msra.mxu0 %v3828
    %3830 = vmatprep.subr.mxu0 0.0
    %v3831 = vand.u32 %v57, 4294901760
    %3832 = vmatpush1.msra.mxu0 %v3831
    %3833 = vmatprep.subr.mxu0 0.0
    %v3834 = vand.u32 %v56, 4294901760
    %3835 = vmatpush1.msra.mxu0 %v3834
    %3836 = vmatprep.subr.mxu0 0.0
    %3837 = vmatpush2.msra.mxu0 0.0
    %3838 = vmatprep.subr.mxu0 0.0
    %3839 = vmatpush2.msra.mxu0 0.0
    %3840 = vmatprep.subr.mxu0 0.0
    %3841 = vmatpush2.msra.mxu0 0.0
    %3842 = vmatprep.subr.mxu0 0.0
    %3843 = vmatpush2.msra.mxu0 0.0
    %3844 = vmatprep.subr.mxu0 0.0
    %3845 = vmatpush2.msra.mxu0 0.0
    %3846 = vmatprep.subr.mxu0 0.0
    %3847 = vmatpush2.msra.mxu0 0.0
    %3848 = vmatprep.subr.mxu0 0.0
    %3849 = vmatpush2.msra.mxu0 0.0
    %3850 = vmatprep.subr.mxu0 0.0
    %3851 = vmatpush2.msra.mxu0 0.0
    %3852 = vmatprep.subr.mxu0 0.0
    %3853 = vmatpush2.msra.mxu0 0.0
    %3854 = vmatprep.subr.mxu0 0.0
    %3855 = vmatpush2.msra.mxu0 0.0
    %3856 = vmatprep.subr.mxu0 0.0
    %3857 = vmatpush2.msra.mxu0 0.0
    %3858 = vmatprep.subr.mxu0 0.0
    %3859 = vmatpush2.msra.mxu0 0.0
    %3860 = vmatprep.subr.mxu0 0.0
    %3861 = vmatpush2.msra.mxu0 0.0
    %3862 = vmatprep.subr.mxu0 0.0
    %3863 = vmatpush2.msra.mxu0 0.0
    %3864 = vmatprep.subr.mxu0 0.0
    %3865 = vmatpush2.msra.mxu0 0.0
    %3866 = vmatprep.subr.mxu0 0.0
    %3867 = vmatpush2.msra.mxu0 0.0
    %3868 = vmatprep.mubr.f32.mxu0 0.0
    %v3869 = vand.u32 %v3548, 4294901760
    %v3870 = vsub.f32 %v3548, %v3869
    %v3871 = vand.u32 %v3870, 4294901760
    %3872 = vmatmul.mubr.f32.gmra.mxu0 %v3871
    %v3873 = vpop.f32.mrf.mxu0
    %v3874 = vadd.f32 %v3797, %v3873
    %v3875 = vpop.f32.mrf.mxu0
    %3876 = vdwg.mxu0
    %3877 = vmatprep.subr.mxu0 0.0
    %3878 = vmatpush1.msra.mxu0 0.0
    %3879 = vmatprep.subr.mxu0 0.0
    %3880 = vmatpush1.msra.mxu0 0.0
    %3881 = vmatprep.subr.mxu0 0.0
    %3882 = vmatpush1.msra.mxu0 0.0
    %3883 = vmatprep.subr.mxu0 0.0
    %3884 = vmatpush1.msra.mxu0 0.0
    %3885 = vmatprep.subr.mxu0 0.0
    %3886 = vmatpush1.msra.mxu0 0.0
    %3887 = vmatprep.subr.mxu0 0.0
    %3888 = vmatpush1.msra.mxu0 0.0
    %3889 = vmatprep.subr.mxu0 0.0
    %3890 = vmatpush1.msra.mxu0 0.0
    %3891 = vmatprep.subr.mxu0 0.0
    %3892 = vmatpush1.msra.mxu0 0.0
    %3893 = vmatprep.subr.mxu0 0.0
    %3894 = vmatpush1.msra.mxu0 0.0
    %3895 = vmatprep.subr.mxu0 0.0
    %3896 = vmatpush1.msra.mxu0 0.0
    %3897 = vmatprep.subr.mxu0 0.0
    %3898 = vmatpush1.msra.mxu0 0.0
    %3899 = vmatprep.subr.mxu0 0.0
    %3900 = vmatpush1.msra.mxu0 0.0
    %3901 = vmatprep.subr.mxu0 0.0
    %v3902 = vand.u32 %v59, 4294901760
    %v3903 = vsub.f32 %v59, %v3902
    %v3904 = vand.u32 %v3903, 4294901760
    %3905 = vmatpush1.msra.mxu0 %v3904
    %3906 = vmatprep.subr.mxu0 0.0
    %v3907 = vand.u32 %v58, 4294901760
    %v3908 = vsub.f32 %v58, %v3907
    %v3909 = vand.u32 %v3908, 4294901760
    %3910 = vmatpush1.msra.mxu0 %v3909
    %3911 = vmatprep.subr.mxu0 0.0
    %v3912 = vand.u32 %v57, 4294901760
    %v3913 = vsub.f32 %v57, %v3912
    %v3914 = vand.u32 %v3913, 4294901760
    %3915 = vmatpush1.msra.mxu0 %v3914
    %3916 = vmatprep.subr.mxu0 0.0
    %v3917 = vand.u32 %v56, 4294901760
    %v3918 = vsub.f32 %v56, %v3917
    %v3919 = vand.u32 %v3918, 4294901760
    %3920 = vmatpush1.msra.mxu0 %v3919
    %3921 = vmatprep.subr.mxu0 0.0
    %3922 = vmatpush2.msra.mxu0 0.0
    %3923 = vmatprep.subr.mxu0 0.0
    %3924 = vmatpush2.msra.mxu0 0.0
    %3925 = vmatprep.subr.mxu0 0.0
    %3926 = vmatpush2.msra.mxu0 0.0
    %3927 = vmatprep.subr.mxu0 0.0
    %3928 = vmatpush2.msra.mxu0 0.0
    %3929 = vmatprep.subr.mxu0 0.0
    %3930 = vmatpush2.msra.mxu0 0.0
    %3931 = vmatprep.subr.mxu0 0.0
    %3932 = vmatpush2.msra.mxu0 0.0
    %3933 = vmatprep.subr.mxu0 0.0
    %3934 = vmatpush2.msra.mxu0 0.0
    %3935 = vmatprep.subr.mxu0 0.0
    %3936 = vmatpush2.msra.mxu0 0.0
    %3937 = vmatprep.subr.mxu0 0.0
    %3938 = vmatpush2.msra.mxu0 0.0
    %3939 = vmatprep.subr.mxu0 0.0
    %3940 = vmatpush2.msra.mxu0 0.0
    %3941 = vmatprep.subr.mxu0 0.0
    %3942 = vmatpush2.msra.mxu0 0.0
    %3943 = vmatprep.subr.mxu0 0.0
    %3944 = vmatpush2.msra.mxu0 0.0
    %3945 = vmatprep.subr.mxu0 0.0
    %3946 = vmatpush2.msra.mxu0 0.0
    %3947 = vmatprep.subr.mxu0 0.0
    %3948 = vmatpush2.msra.mxu0 0.0
    %3949 = vmatprep.subr.mxu0 0.0
    %3950 = vmatpush2.msra.mxu0 0.0
    %3951 = vmatprep.subr.mxu0 0.0
    %3952 = vmatpush2.msra.mxu0 0.0
    %3953 = vmatprep.mubr.f32.mxu0 0.0
    %v3954 = vand.u32 %v3548, 4294901760
    %3955 = vmatmul.mubr.f32.gmra.mxu0 %v3954
    %v3956 = vpop.f32.mrf.mxu0
    %v3957 = vadd.f32 %v3874, %v3956
    %v3958 = vpop.f32.mrf.mxu0
    %3959 = vdwg.mxu0
    %3960 = vmatprep.subr.mxu0 0.0
    %3961 = vmatpush1.msra.mxu0 0.0
    %3962 = vmatprep.subr.mxu0 0.0
    %3963 = vmatpush1.msra.mxu0 0.0
    %3964 = vmatprep.subr.mxu0 0.0
    %3965 = vmatpush1.msra.mxu0 0.0
    %3966 = vmatprep.subr.mxu0 0.0
    %3967 = vmatpush1.msra.mxu0 0.0
    %3968 = vmatprep.subr.mxu0 0.0
    %3969 = vmatpush1.msra.mxu0 0.0
    %3970 = vmatprep.subr.mxu0 0.0
    %3971 = vmatpush1.msra.mxu0 0.0
    %3972 = vmatprep.subr.mxu0 0.0
    %3973 = vmatpush1.msra.mxu0 0.0
    %3974 = vmatprep.subr.mxu0 0.0
    %3975 = vmatpush1.msra.mxu0 0.0
    %3976 = vmatprep.subr.mxu0 0.0
    %3977 = vmatpush1.msra.mxu0 0.0
    %3978 = vmatprep.subr.mxu0 0.0
    %3979 = vmatpush1.msra.mxu0 0.0
    %3980 = vmatprep.subr.mxu0 0.0
    %3981 = vmatpush1.msra.mxu0 0.0
    %3982 = vmatprep.subr.mxu0 0.0
    %3983 = vmatpush1.msra.mxu0 0.0
    %3984 = vmatprep.subr.mxu0 0.0
    %v3985 = vand.u32 %v59, 4294901760
    %3986 = vmatpush1.msra.mxu0 %v3985
    %3987 = vmatprep.subr.mxu0 0.0
    %v3988 = vand.u32 %v58, 4294901760
    %3989 = vmatpush1.msra.mxu0 %v3988
    %3990 = vmatprep.subr.mxu0 0.0
    %v3991 = vand.u32 %v57, 4294901760
    %3992 = vmatpush1.msra.mxu0 %v3991
    %3993 = vmatprep.subr.mxu0 0.0
    %v3994 = vand.u32 %v56, 4294901760
    %3995 = vmatpush1.msra.mxu0 %v3994
    %3996 = vmatprep.subr.mxu0 0.0
    %3997 = vmatpush2.msra.mxu0 0.0
    %3998 = vmatprep.subr.mxu0 0.0
    %3999 = vmatpush2.msra.mxu0 0.0
    %4000 = vmatprep.subr.mxu0 0.0
    %4001 = vmatpush2.msra.mxu0 0.0
    %4002 = vmatprep.subr.mxu0 0.0
    %4003 = vmatpush2.msra.mxu0 0.0
    %4004 = vmatprep.subr.mxu0 0.0
    %4005 = vmatpush2.msra.mxu0 0.0
    %4006 = vmatprep.subr.mxu0 0.0
    %4007 = vmatpush2.msra.mxu0 0.0
    %4008 = vmatprep.subr.mxu0 0.0
    %4009 = vmatpush2.msra.mxu0 0.0
    %4010 = vmatprep.subr.mxu0 0.0
    %4011 = vmatpush2.msra.mxu0 0.0
    %4012 = vmatprep.subr.mxu0 0.0
    %4013 = vmatpush2.msra.mxu0 0.0
    %4014 = vmatprep.subr.mxu0 0.0
    %4015 = vmatpush2.msra.mxu0 0.0
    %4016 = vmatprep.subr.mxu0 0.0
    %4017 = vmatpush2.msra.mxu0 0.0
    %4018 = vmatprep.subr.mxu0 0.0
    %4019 = vmatpush2.msra.mxu0 0.0
    %4020 = vmatprep.subr.mxu0 0.0
    %4021 = vmatpush2.msra.mxu0 0.0
    %4022 = vmatprep.subr.mxu0 0.0
    %4023 = vmatpush2.msra.mxu0 0.0
    %4024 = vmatprep.subr.mxu0 0.0
    %4025 = vmatpush2.msra.mxu0 0.0
    %4026 = vmatprep.subr.mxu0 0.0
    %4027 = vmatpush2.msra.mxu0 0.0
    %4028 = vmatprep.mubr.f32.mxu0 0.0
    %v4029 = vand.u32 %v3548, 4294901760
    %4030 = vmatmul.mubr.f32.gmra.mxu0 %v4029
    %v4031 = vpop.f32.mrf.mxu0
    %v4032 = vadd.f32 %v3957, %v4031
    %v4033 = vpop.f32.mrf.mxu0
    %4034 = vdwg.mxu0
    %v4035 = vmax.f32 %v4032, -1.0
    %v4036 = vmin.f32 %v4035, 1.0
    %v4037 = vld [vmem:[%s5 + $0x20] sm:$0xf]
    %v4038 = vmul.f32 %v3546, %v4037
    %v4039 = vld [vmem:[%s5 + $0x24] sm:$0xf]
    %v4040 = vmul.f32 %v4036, %v4039
    %v4041 = vld [vmem:[%s2] ss:$2 sm:$0xf]
    %s4042 = scalar_lea.vmem %s2, 1
    %v4043 = vld [vmem:[%s4042] ss:$2 sm:$0xf]
    %v4044 = vmul.f32 %v4038, %v4041
    %vm4045 = vcmask 257024
    %v4046 = vsel %vm4045, %v4044, 0.0
    %4047 = vadd.xlane.f32.xlu0 %v4046
    %v4048 = vpop.xlane.xlu0 %4047
    %v4049 = vxor.u32 %v4048, 2147483648
    %v4050 = vmul.f32 %v4049, 1.442695
    %v4051 = vpow.pop %v4050
    %v4052 = vadd.f32 %v4051, 1.0
    %v4053 = vrcp.pop %v4052
    %v4054 = vmul.f32 1.0, %v4053
    %v4055 = vmul.f32 %v4040, %v4043
    %v4056 = vsel %vm4045, %v4055, 0.0
    %4057 = vadd.xlane.f32.xlu0 %v4056
    %v4058 = vpop.xlane.xlu0 %4057
    %v4059 = vxor.u32 %v4058, 2147483648
    %v4060 = vmul.f32 %v4059, 1.442695
    %v4061 = vpow.pop %v4060
    %v4062 = vadd.f32 %v4061, 1.0
    %v4063 = vrcp.pop %v4062
    %v4064 = vmul.f32 1.0, %v4063
    %4065 = vst [vmem:[%s6] sm:$0xf] %v4054
    %4066 = vst [vmem:[%s6 + $0x4] sm:$0xf] %v4064
    // Predicated region
    $region30: #{complicated_text_model_forward.1} parent=1 // pred_check
      _
    $region31: #{complicated_text_model_forward.1} parent=1 // pred_check_branch
      %4068 = sbr.rel (0) target = $region33
    $region32: #{complicated_text_model_forward.1} parent=1 // pred_region
      _
    $region33: #{complicated_text_model_forward.1} parent=1 // pred_fallthru
      _
    // Predicated region
    $region34: #{complicated_text_model_forward.1} parent=1 // pred_check
      _
    $region35: #{complicated_text_model_forward.1} parent=1 // pred_check_branch
      %4070 = sbr.rel (0) target = $region37
    $region36: #{complicated_text_model_forward.1} parent=1 // pred_region
      _
    $region37: #{complicated_text_model_forward.1} parent=1 // pred_fallthru
      _
    %4071 = vsyncpa [#allocation3], 1

</llo_original>
